<compile_context>
chip_gen: v5e
topology: v5e:2x2
jax: 0.10.0
libtpu: 0.0.40
codegen_flags: <defaults>
</compile_context>

<pallas_src>
import functools

import jax
import jax.numpy as jnp
from jax import lax
from jax.experimental import pallas as pl
from jax.experimental.pallas import tpu as pltpu


def _phase_weight_matrix(weight):
    """Fold the nearest-2x upsample into the 3x3 conv.

    weight: (Cout, Cin, 3, 3) -> (9, 4*Cout, Cin) effective weights.
    Leading axis enumerates input shifts (a, b) in {-1,0,1}^2, t=(a+1)*3+(b+1).
    Middle axis enumerates output rows (co, p, q) with row = co*4 + p*2 + q,
    where (p, q) are the output row/column parities.
    """
    cout, cin = weight.shape[0], weight.shape[1]
    # agg[p, off, k]: 3x3 tap k contributes to input shift (off - 1) for
    # output parity p (from nearest-neighbour index arithmetic).
    agg = jnp.array(
        [[[1.0, 0.0, 0.0], [0.0, 1.0, 1.0], [0.0, 0.0, 0.0]],
         [[0.0, 0.0, 0.0], [1.0, 1.0, 0.0], [0.0, 0.0, 1.0]]],
        dtype=weight.dtype)
    # weff[p, q, r, c, o, i] = sum_{h,w} agg[p,r,h] * agg[q,c,w] * weight[o,i,h,w]
    weff = jnp.einsum("prh,qcw,oihw->pqrcoi", agg, agg, weight)
    return weff.transpose(2, 3, 4, 0, 1, 5).reshape(9, 4 * cout, cin)


def _shift_masks(h, w, dtype):
    """(9, H*W) {0,1} masks: validity of each position under shift (a, b)."""
    k = jnp.arange(h * w, dtype=jnp.int32)
    i = k // w
    j = k - i * w
    rows = []
    for a in (-1, 0, 1):
        for b in (-1, 0, 1):
            ok = (i + a >= 0) & (i + a < h) & (j + b >= 0) & (j + b < w)
            rows.append(ok.astype(dtype))
    return jnp.stack(rows, axis=0)


def _pick_co_tile(c, hw, block_bytes_cap=2 << 20):
    """Output-channel tile: largest divisor of C giving an 8-aligned,
    VMEM-friendly output block, preferring >=2 tiles (pipelining / megacore)."""
    divisors = [d for d in range(1, c + 1) if c % d == 0]
    ok = [d for d in divisors
          if ((4 * d) % 8 == 0 or d == c) and 4 * d * hw * 4 <= block_bytes_cap]
    multi = [d for d in ok if c // d >= 2]
    pool = multi or ok
    return max(pool) if pool else c


def _upsample_conv_kernel(x_ref, w_ref, b_ref, m_ref, o_ref, xp_ref, *, width):
    """One (batch, cout-tile) step of fused nearest-2x upsample + 3x3 conv.

    x_ref : (Cin, H*W)          flattened input image (lane-dense)
    w_ref : (9, 4*co_t, Cin)    effective weights for this cout tile
    b_ref : (4*co_t, 1)         bias, replicated over the 4 output phases
    m_ref : (9, H*W)            {0,1} halo-validity masks per shift
    o_ref : (4*co_t, H*W)       phase-major output rows (co, p, q), lane-dense
    xp_ref: (Cin, H*W+2W+2)     VMEM scratch: flat input with a zero halo
    """
    hw = x_ref.shape[1]
    pad = width + 1

    # Build the zero-haloed flat image in VMEM (no HBM padding pass).
    xp_ref[...] = jnp.zeros_like(xp_ref)
    xp_ref[:, pl.ds(pad, hw)] = x_ref[...]

    acc = jnp.zeros(o_ref.shape, jnp.float32)
    t = 0
    for a in (-1, 0, 1):
        for b in (-1, 0, 1):
            # Shifted patch: x[ci, i+a, j+b] flattened; zero outside the image.
            patch = xp_ref[:, pl.ds(pad + a * width + b, hw)]
            if (a, b) != (0, 0):
                patch = patch * m_ref[pl.ds(t, 1), :]
            # MXU contraction over input channels, all 4 phases of this tile.
            acc = acc + jnp.dot(w_ref[t], patch,
                                preferred_element_type=jnp.float32,
                                precision=lax.Precision.HIGHEST)
            t += 1
    o_ref[...] = (acc + b_ref[...]).astype(o_ref.dtype)


@jax.jit
def upsample_forward(x, weight, bias):
    """x: (B, C, H, W); weight: (C, C, 3, 3); bias: (C,) -> (B, C, 2H, 2W)."""
    B, C, H, W = x.shape
    HW = H * W

    x_flat = x.reshape(B, C, HW)                    # metadata-only reshape
    w_mat = _phase_weight_matrix(weight)            # (9, 4C, C)
    b_col = jnp.repeat(bias, 4).reshape(4 * C, 1)   # (4C, 1), rows (co, p, q)
    masks = _shift_masks(H, W, x.dtype)             # (9, HW)

    co_t = _pick_co_tile(C, HW)
    n_co = C // co_t

    out_flat = pl.pallas_call(
        functools.partial(_upsample_conv_kernel, width=W),
        out_shape=jax.ShapeDtypeStruct((B, 4 * C, HW), x.dtype),
        grid=(B, n_co),
        in_specs=[
            pl.BlockSpec((None, C, HW), lambda bb, tt: (bb, 0, 0)),
            pl.BlockSpec((9, 4 * co_t, C), lambda bb, tt: (0, tt, 0)),
            pl.BlockSpec((4 * co_t, 1), lambda bb, tt: (tt, 0)),
            pl.BlockSpec((9, HW), lambda bb, tt: (0, 0)),
        ],
        out_specs=pl.BlockSpec((None, 4 * co_t, HW), lambda bb, tt: (bb, tt, 0)),
        scratch_shapes=[pltpu.VMEM((C, HW + 2 * W + 2), x.dtype)],
        compiler_params=pltpu.CompilerParams(
            dimension_semantics=("parallel", "parallel")),
    )(x_flat, w_mat, b_col, masks)

    # Phase re-interleave (pure layout): rows (co, p, q) -> the (2H, 2W) grid.
    # TODO(synk): fuse this interleave into the downstream consumer (or emit
    # interleaved rows from the kernel) to save one HBM round trip of the
    # 4x-sized output.
    out = (out_flat.reshape(B, C, 2, 2, H, W)
           .transpose(0, 1, 4, 2, 5, 3)
           .reshape(B, C, 2 * H, 2 * W))
    return out


if __name__ == "__main__":
    key = jax.random.PRNGKey(0)
    kx, kw, kb = jax.random.split(key, 3)

    B, C, H, W = 2, 4, 16, 16
    x = jax.random.normal(kx, (B, C, H, W), jnp.float32)

    # Deterministic Conv2d(C, C, 3, padding=1) parameters (PyTorch fan-in bound).
    fan_in = C * 3 * 3
    bound = 1.0 / (fan_in ** 0.5)
    weight = jax.random.uniform(kw, (C, C, 3, 3), jnp.float32, -bound, bound)
    bias = jax.random.uniform(kb, (C,), jnp.float32, -bound, bound)

    out = jax.block_until_ready(upsample_forward(x, weight, bias))

    # Pure-JAX reference: explicit nearest-2x upsample then 3x3 conv, pad=1.
    x_up = jnp.repeat(jnp.repeat(x, 2, axis=2), 2, axis=3)
    ref = lax.conv_general_dilated(
        x_up, weight, window_strides=(1, 1), padding=((1, 1), (1, 1)),
        dimension_numbers=("NCHW", "OIHW", "NCHW"),
        precision=lax.Precision.HIGHEST) + bias[None, :, None, None]

    assert out.shape == (B, C, 2 * H, 2 * W), out.shape
    err = float(jnp.max(jnp.abs(out - ref)))
    assert jnp.allclose(out, ref, atol=5e-4, rtol=5e-4), err
    print("KERNEL_OK")
</pallas_src>

<mosaic_0001>
module attributes {stable_mosaic.version = 11 : i64} {
  func.func @_upsample_conv_kernel(%arg0: i32, %arg1: i32, %arg2: memref<1x4x256xf32, #tpu.memory_space<vmem>>, %arg3: memref<9x8x4xf32, #tpu.memory_space<vmem>>, %arg4: memref<8x1xf32, #tpu.memory_space<vmem>>, %arg5: memref<9x256xf32, #tpu.memory_space<vmem>>, %arg6: memref<1x8x256xf32, #tpu.memory_space<vmem>>, %arg7: memref<4x290xf32, #tpu.memory_space<vmem>>) attributes {dimension_semantics = [#tpu.dimension_semantics<parallel>, #tpu.dimension_semantics<parallel>], iteration_bounds = array<i64: 2, 2>, scalar_prefetch = 0 : i64, scratch_operands = 1 : i64, tpu.core_type = #tpu.core_type<tc>, window_params = [{transform_indices = @transform_0, window_bounds = array<i64: 1, 4, 256>}, {transform_indices = @transform_1, window_bounds = array<i64: 9, 8, 4>}, {transform_indices = @transform_2, window_bounds = array<i64: 8, 1>}, {pipeline_mode = #tpu.pipeline_mode<synchronous>, transform_indices = @transform_3, window_bounds = array<i64: 9, 256>}, {transform_indices = @transform_4, window_bounds = array<i64: 1, 8, 256>}]} {
    %cst = arith.constant 0.000000e+00 : f32
    %0 = vector.broadcast %cst : f32 to vector<4x290xf32>
    %c0 = arith.constant 0 : index
    %c0_0 = arith.constant 0 : index
    %1 = vector.load %arg7[%c0, %c0_0] : memref<4x290xf32, #tpu.memory_space<vmem>>, vector<4x290xf32>
    tpu.vector_store %arg7[%c0, %c0_0], %0 {strides = array<i32>} : memref<4x290xf32, #tpu.memory_space<vmem>>, vector<4x290xf32>,
    %c0_1 = arith.constant 0 : index
    %c0_2 = arith.constant 0 : index
    %c0_3 = arith.constant 0 : index
    %2 = vector.load %arg2[%c0_1, %c0_2, %c0_3] : memref<1x4x256xf32, #tpu.memory_space<vmem>>, vector<1x4x256xf32>
    %3 = vector.shape_cast %2 : vector<1x4x256xf32> to vector<4x256xf32>
    %c0_4 = arith.constant 0 : index
    %c17 = arith.constant 17 : index
    %4 = vector.load %arg7[%c0_4, %c17] : memref<4x290xf32, #tpu.memory_space<vmem>>, vector<4x256xf32>
    tpu.vector_store %arg7[%c0_4, %c17], %3 {strides = array<i32>} : memref<4x290xf32, #tpu.memory_space<vmem>>, vector<4x256xf32>,
    %cst_5 = arith.constant 0.000000e+00 : f32
    %5 = vector.broadcast %cst_5 : f32 to vector<8x256xf32>
    %c0_6 = arith.constant 0 : index
    %c0_7 = arith.constant 0 : index
    %6 = vector.load %arg7[%c0_6, %c0_7] : memref<4x290xf32, #tpu.memory_space<vmem>>, vector<4x256xf32>
    %c0_8 = arith.constant 0 : index
    %c0_9 = arith.constant 0 : index
    %7 = vector.load %arg5[%c0_8, %c0_9] : memref<9x256xf32, #tpu.memory_space<vmem>>, vector<1x256xf32>
    %8 = vector.broadcast %7 : vector<1x256xf32> to vector<4x256xf32>
    %9 = arith.mulf %6, %8 : vector<4x256xf32>
    %c0_10 = arith.constant 0 : index
    %c0_11 = arith.constant 0 : index
    %c0_12 = arith.constant 0 : index
    %10 = vector.load %arg3[%c0_10, %c0_11, %c0_12] : memref<9x8x4xf32, #tpu.memory_space<vmem>>, vector<1x8x4xf32>
    %11 = vector.shape_cast %10 : vector<1x8x4xf32> to vector<8x4xf32>
    %cst_13 = arith.constant dense<0.000000e+00> : vector<8x256xf32>
    %12 = tpu.matmul %11, %9, %cst_13 {dimension_numbers = #tpu.dot_dimension_numbers<[1], [0], [0], [1], [0, 0, 1, 1], [], []>, precision = #tpu.contract_precision<fp32>} : vector<8x4xf32>, vector<4x256xf32>, vector<8x256xf32> -> vector<8x256xf32>
    %13 = arith.addf %5, %12 : vector<8x256xf32>
    %c0_14 = arith.constant 0 : index
    %c1 = arith.constant 1 : index
    %14 = vector.load %arg7[%c0_14, %c1] : memref<4x290xf32, #tpu.memory_space<vmem>>, vector<4x256xf32>
    %c1_15 = arith.constant 1 : index
    %c0_16 = arith.constant 0 : index
    %15 = vector.load %arg5[%c1_15, %c0_16] : memref<9x256xf32, #tpu.memory_space<vmem>>, vector<1x256xf32>
    %16 = vector.broadcast %15 : vector<1x256xf32> to vector<4x256xf32>
    %17 = arith.mulf %14, %16 : vector<4x256xf32>
    %c1_17 = arith.constant 1 : index
    %c0_18 = arith.constant 0 : index
    %c0_19 = arith.constant 0 : index
    %18 = vector.load %arg3[%c1_17, %c0_18, %c0_19] : memref<9x8x4xf32, #tpu.memory_space<vmem>>, vector<1x8x4xf32>
    %19 = vector.shape_cast %18 : vector<1x8x4xf32> to vector<8x4xf32>
    %cst_20 = arith.constant dense<0.000000e+00> : vector<8x256xf32>
    %20 = tpu.matmul %19, %17, %cst_20 {dimension_numbers = #tpu.dot_dimension_numbers<[1], [0], [0], [1], [0, 0, 1, 1], [], []>, precision = #tpu.contract_precision<fp32>} : vector<8x4xf32>, vector<4x256xf32>, vector<8x256xf32> -> vector<8x256xf32>
    %21 = arith.addf %13, %20 : vector<8x256xf32>
    %c0_21 = arith.constant 0 : index
    %c2 = arith.constant 2 : index
    %22 = vector.load %arg7[%c0_21, %c2] : memref<4x290xf32, #tpu.memory_space<vmem>>, vector<4x256xf32>
    %c2_22 = arith.constant 2 : index
    %c0_23 = arith.constant 0 : index
    %23 = vector.load %arg5[%c2_22, %c0_23] : memref<9x256xf32, #tpu.memory_space<vmem>>, vector<1x256xf32>
    %24 = vector.broadcast %23 : vector<1x256xf32> to vector<4x256xf32>
    %25 = arith.mulf %22, %24 : vector<4x256xf32>
    %c2_24 = arith.constant 2 : index
    %c0_25 = arith.constant 0 : index
    %c0_26 = arith.constant 0 : index
    %26 = vector.load %arg3[%c2_24, %c0_25, %c0_26] : memref<9x8x4xf32, #tpu.memory_space<vmem>>, vector<1x8x4xf32>
    %27 = vector.shape_cast %26 : vector<1x8x4xf32> to vector<8x4xf32>
    %cst_27 = arith.constant dense<0.000000e+00> : vector<8x256xf32>
    %28 = tpu.matmul %27, %25, %cst_27 {dimension_numbers = #tpu.dot_dimension_numbers<[1], [0], [0], [1], [0, 0, 1, 1], [], []>, precision = #tpu.contract_precision<fp32>} : vector<8x4xf32>, vector<4x256xf32>, vector<8x256xf32> -> vector<8x256xf32>
    %29 = arith.addf %21, %28 : vector<8x256xf32>
    %c0_28 = arith.constant 0 : index
    %c16 = arith.constant 16 : index
    %30 = vector.load %arg7[%c0_28, %c16] : memref<4x290xf32, #tpu.memory_space<vmem>>, vector<4x256xf32>
    %c3 = arith.constant 3 : index
    %c0_29 = arith.constant 0 : index
    %31 = vector.load %arg5[%c3, %c0_29] : memref<9x256xf32, #tpu.memory_space<vmem>>, vector<1x256xf32>
    %32 = vector.broadcast %31 : vector<1x256xf32> to vector<4x256xf32>
    %33 = arith.mulf %30, %32 : vector<4x256xf32>
    %c3_30 = arith.constant 3 : index
    %c0_31 = arith.constant 0 : index
    %c0_32 = arith.constant 0 : index
    %34 = vector.load %arg3[%c3_30, %c0_31, %c0_32] : memref<9x8x4xf32, #tpu.memory_space<vmem>>, vector<1x8x4xf32>
    %35 = vector.shape_cast %34 : vector<1x8x4xf32> to vector<8x4xf32>
    %cst_33 = arith.constant dense<0.000000e+00> : vector<8x256xf32>
    %36 = tpu.matmul %35, %33, %cst_33 {dimension_numbers = #tpu.dot_dimension_numbers<[1], [0], [0], [1], [0, 0, 1, 1], [], []>, precision = #tpu.contract_precision<fp32>} : vector<8x4xf32>, vector<4x256xf32>, vector<8x256xf32> -> vector<8x256xf32>
    %37 = arith.addf %29, %36 : vector<8x256xf32>
    %c0_34 = arith.constant 0 : index
    %c17_35 = arith.constant 17 : index
    %38 = vector.load %arg7[%c0_34, %c17_35] : memref<4x290xf32, #tpu.memory_space<vmem>>, vector<4x256xf32>
    %c4 = arith.constant 4 : index
    %c0_36 = arith.constant 0 : index
    %c0_37 = arith.constant 0 : index
    %39 = vector.load %arg3[%c4, %c0_36, %c0_37] : memref<9x8x4xf32, #tpu.memory_space<vmem>>, vector<1x8x4xf32>
    %40 = vector.shape_cast %39 : vector<1x8x4xf32> to vector<8x4xf32>
    %cst_38 = arith.constant dense<0.000000e+00> : vector<8x256xf32>
    %41 = tpu.matmul %40, %38, %cst_38 {dimension_numbers = #tpu.dot_dimension_numbers<[1], [0], [0], [1], [0, 0, 1, 1], [], []>, precision = #tpu.contract_precision<fp32>} : vector<8x4xf32>, vector<4x256xf32>, vector<8x256xf32> -> vector<8x256xf32>
    %42 = arith.addf %37, %41 : vector<8x256xf32>
    %c0_39 = arith.constant 0 : index
    %c18 = arith.constant 18 : index
    %43 = vector.load %arg7[%c0_39, %c18] : memref<4x290xf32, #tpu.memory_space<vmem>>, vector<4x256xf32>
    %c5 = arith.constant 5 : index
    %c0_40 = arith.constant 0 : index
    %44 = vector.load %arg5[%c5, %c0_40] : memref<9x256xf32, #tpu.memory_space<vmem>>, vector<1x256xf32>
    %45 = vector.broadcast %44 : vector<1x256xf32> to vector<4x256xf32>
    %46 = arith.mulf %43, %45 : vector<4x256xf32>
    %c5_41 = arith.constant 5 : index
    %c0_42 = arith.constant 0 : index
    %c0_43 = arith.constant 0 : index
    %47 = vector.load %arg3[%c5_41, %c0_42, %c0_43] : memref<9x8x4xf32, #tpu.memory_space<vmem>>, vector<1x8x4xf32>
    %48 = vector.shape_cast %47 : vector<1x8x4xf32> to vector<8x4xf32>
    %cst_44 = arith.constant dense<0.000000e+00> : vector<8x256xf32>
    %49 = tpu.matmul %48, %46, %cst_44 {dimension_numbers = #tpu.dot_dimension_numbers<[1], [0], [0], [1], [0, 0, 1, 1], [], []>, precision = #tpu.contract_precision<fp32>} : vector<8x4xf32>, vector<4x256xf32>, vector<8x256xf32> -> vector<8x256xf32>
    %50 = arith.addf %42, %49 : vector<8x256xf32>
    %c0_45 = arith.constant 0 : index
    %c32 = arith.constant 32 : index
    %51 = vector.load %arg7[%c0_45, %c32] : memref<4x290xf32, #tpu.memory_space<vmem>>, vector<4x256xf32>
    %c6 = arith.constant 6 : index
    %c0_46 = arith.constant 0 : index
    %52 = vector.load %arg5[%c6, %c0_46] : memref<9x256xf32, #tpu.memory_space<vmem>>, vector<1x256xf32>
    %53 = vector.broadcast %52 : vector<1x256xf32> to vector<4x256xf32>
    %54 = arith.mulf %51, %53 : vector<4x256xf32>
    %c6_47 = arith.constant 6 : index
    %c0_48 = arith.constant 0 : index
    %c0_49 = arith.constant 0 : index
    %55 = vector.load %arg3[%c6_47, %c0_48, %c0_49] : memref<9x8x4xf32, #tpu.memory_space<vmem>>, vector<1x8x4xf32>
    %56 = vector.shape_cast %55 : vector<1x8x4xf32> to vector<8x4xf32>
    %cst_50 = arith.constant dense<0.000000e+00> : vector<8x256xf32>
    %57 = tpu.matmul %56, %54, %cst_50 {dimension_numbers = #tpu.dot_dimension_numbers<[1], [0], [0], [1], [0, 0, 1, 1], [], []>, precision = #tpu.contract_precision<fp32>} : vector<8x4xf32>, vector<4x256xf32>, vector<8x256xf32> -> vector<8x256xf32>
    %58 = arith.addf %50, %57 : vector<8x256xf32>
    %c0_51 = arith.constant 0 : index
    %c33 = arith.constant 33 : index
    %59 = vector.load %arg7[%c0_51, %c33] : memref<4x290xf32, #tpu.memory_space<vmem>>, vector<4x256xf32>
    %c7 = arith.constant 7 : index
    %c0_52 = arith.constant 0 : index
    %60 = vector.load %arg5[%c7, %c0_52] : memref<9x256xf32, #tpu.memory_space<vmem>>, vector<1x256xf32>
    %61 = vector.broadcast %60 : vector<1x256xf32> to vector<4x256xf32>
    %62 = arith.mulf %59, %61 : vector<4x256xf32>
    %c7_53 = arith.constant 7 : index
    %c0_54 = arith.constant 0 : index
    %c0_55 = arith.constant 0 : index
    %63 = vector.load %arg3[%c7_53, %c0_54, %c0_55] : memref<9x8x4xf32, #tpu.memory_space<vmem>>, vector<1x8x4xf32>
    %64 = vector.shape_cast %63 : vector<1x8x4xf32> to vector<8x4xf32>
    %cst_56 = arith.constant dense<0.000000e+00> : vector<8x256xf32>
    %65 = tpu.matmul %64, %62, %cst_56 {dimension_numbers = #tpu.dot_dimension_numbers<[1], [0], [0], [1], [0, 0, 1, 1], [], []>, precision = #tpu.contract_precision<fp32>} : vector<8x4xf32>, vector<4x256xf32>, vector<8x256xf32> -> vector<8x256xf32>
    %66 = arith.addf %58, %65 : vector<8x256xf32>
    %c0_57 = arith.constant 0 : index
    %c34 = arith.constant 34 : index
    %67 = vector.load %arg7[%c0_57, %c34] : memref<4x290xf32, #tpu.memory_space<vmem>>, vector<4x256xf32>
    %c8 = arith.constant 8 : index
    %c0_58 = arith.constant 0 : index
    %68 = vector.load %arg5[%c8, %c0_58] : memref<9x256xf32, #tpu.memory_space<vmem>>, vector<1x256xf32>
    %69 = vector.broadcast %68 : vector<1x256xf32> to vector<4x256xf32>
    %70 = arith.mulf %67, %69 : vector<4x256xf32>
    %c8_59 = arith.constant 8 : index
    %c0_60 = arith.constant 0 : index
    %c0_61 = arith.constant 0 : index
    %71 = vector.load %arg3[%c8_59, %c0_60, %c0_61] : memref<9x8x4xf32, #tpu.memory_space<vmem>>, vector<1x8x4xf32>
    %72 = vector.shape_cast %71 : vector<1x8x4xf32> to vector<8x4xf32>
    %cst_62 = arith.constant dense<0.000000e+00> : vector<8x256xf32>
    %73 = tpu.matmul %72, %70, %cst_62 {dimension_numbers = #tpu.dot_dimension_numbers<[1], [0], [0], [1], [0, 0, 1, 1], [], []>, precision = #tpu.contract_precision<fp32>} : vector<8x4xf32>, vector<4x256xf32>, vector<8x256xf32> -> vector<8x256xf32>
    %74 = arith.addf %66, %73 : vector<8x256xf32>
    %c0_63 = arith.constant 0 : index
    %c0_64 = arith.constant 0 : index
    %75 = vector.load %arg4[%c0_63, %c0_64] : memref<8x1xf32, #tpu.memory_space<vmem>>, vector<8x1xf32>
    %76 = vector.broadcast %75 : vector<8x1xf32> to vector<8x256xf32>
    %77 = arith.addf %74, %76 : vector<8x256xf32>
    %c0_65 = arith.constant 0 : index
    %c0_66 = arith.constant 0 : index
    %c0_67 = arith.constant 0 : index
    %78 = vector.load %arg6[%c0_65, %c0_66, %c0_67] : memref<1x8x256xf32, #tpu.memory_space<vmem>>, vector<1x8x256xf32>
    %79 = vector.shape_cast %78 : vector<1x8x256xf32> to vector<8x256xf32>
    %80 = vector.shape_cast %77 : vector<8x256xf32> to vector<1x8x256xf32>
    tpu.vector_store %arg6[%c0_65, %c0_66, %c0_67], %80 {strides = array<i32>} : memref<1x8x256xf32, #tpu.memory_space<vmem>>, vector<1x8x256xf32>,
    return
  }
  func.func @transform_0(%arg0: i32, %arg1: i32) -> (i32, i32, i32) {
    %c0_i32 = arith.constant 0 : i32
    %c0_i32_0 = arith.constant 0 : i32
    %c0_i32_1 = arith.constant 0 : i32
    return %arg0, %c0_i32, %c0_i32_0 : i32, i32, i32
  }
  func.func @transform_1(%arg0: i32, %arg1: i32) -> (i32, i32, i32) {
    %c0_i32 = arith.constant 0 : i32
    %c0_i32_0 = arith.constant 0 : i32
    %c0_i32_1 = arith.constant 0 : i32
    return %c0_i32, %arg1, %c0_i32_0 : i32, i32, i32
  }
  func.func @transform_2(%arg0: i32, %arg1: i32) -> (i32, i32) {
    %c0_i32 = arith.constant 0 : i32
    %c0_i32_0 = arith.constant 0 : i32
    return %arg1, %c0_i32 : i32, i32
  }
  func.func @transform_3(%arg0: i32, %arg1: i32) -> (i32, i32) {
    %c0_i32 = arith.constant 0 : i32
    %c0_i32_0 = arith.constant 0 : i32
    %c0_i32_1 = arith.constant 0 : i32
    return %c0_i32, %c0_i32_0 : i32, i32
  }
  func.func @transform_4(%arg0: i32, %arg1: i32) -> (i32, i32, i32) {
    %c0_i32 = arith.constant 0 : i32
    %c0_i32_0 = arith.constant 0 : i32
    return %arg0, %arg1, %c0_i32 : i32, i32, i32
  }
}

</mosaic_0001>

<llo_original>
// kernel: upsample_forward.1
$region0: #{upsample_forward.1}
  #allocation0 [shape = 'u32[]', space=smem, size = 0x4, offset = 0x4, fixed_abs, tag = 'smem constant byte address 0x4 - core index']
  #allocation1 [shape = 'u32[72,128]{1,0:T(1,128)}', space=vmem, size = 0x9000, scoped, tag = 'internal scratch']
  #allocation2 [shape = 'f32[4,290]{1,0:T(4,128)}', space=vmem, size = 0x1800, scoped, tag = 'scratch operand']
  %s0 = inlined_call_operand.vmem [shape: f32[2,4,256], index: 0, kind: input, shape index: {}]
  %s1 = inlined_call_operand.vmem [shape: f32[9,16,4], index: 1, kind: input, shape index: {}]
  %s2 = inlined_call_operand.vmem [shape: f32[16,1], index: 2, kind: input, shape index: {}]
  %s3 = inlined_call_operand.vmem [shape: f32[9,256], index: 3, kind: input, shape index: {}]
  %s4 = inlined_call_operand.vmem [shape: f32[2,16,256], index: 4, kind: output, shape index: {}]
  %s5 = sld [smem:[#allocation0]]
  $region87: #{upsample_forward.1} parent=0
    _
  %s7 = ssub.s32 1, %s5
  %s8 = scalar_select 0, %s7, %s5
  $region1: #{upsample_forward.1} parent=0
    #allocation3 [shape = 'u8[73728]{0}', space=vmem, size = 0x12000, scoped, tag = 'input window, operand 1']
    loop: start=0, step=1, limit=6
    $region2: #{upsample_forward.1} parent=1 // loop_pre_header
      _
    $region3: #{upsample_forward.1} parent=1 // loop_header
      %s10 = sphi 0, %s14
      %p11 = scmp.ge.s32.totalorder %s10, 6
      %s17 = sphi 0, %s29
      %s18 = sphi 0, %s25
      %s19 = sphi 0, %s17
      %s20 = sphi 0, %s18
      %s21 = sphi 0, %s19
      %s22 = sphi 0, %s20
      %s32 = sphi 0, %s34
      %s35 = sphi 0, %s32
      %s36 = sphi 0, %s35
      %s52 = sphi 0, %s36
      %s58 = sphi 0, %s60
      %s61 = sphi 0, %s58
      %s62 = sphi 0, %s61
      %s78 = sphi 0, %s62
      %s84 = sphi 0, %s86
      %s87 = sphi 0, %s84
      %s88 = sphi 0, %s87
      %s104 = sphi 0, %s88
      %s108 = sphi 0, %s108
      %s110 = sphi 0, %s108
      %s111 = sphi 0, %s110
      %s125 = sphi 0, %s111
      %s133 = sphi 0, %s135
      %s136 = sphi 0, %s133
      %s137 = sphi 0, %s136
      %s153 = sphi 0, %s137
    $region4: #{upsample_forward.1} parent=1 // loop_header_branch
      %13 = sbr.rel (%p11) target = $region8
    $region5: #{upsample_forward.1} parent=1 // loop_body
      %s15 = ssub.s32 %s10, 1
      %s16 = ssub.s32 %s10, 2
      %s23 = sadd.s32 1, %s18
      %p24 = scmp.ge.s32.totalorder %s23, 2
      %s25 = scalar_select %p24, 0, %s23
      %s26 = sadd.s32 1, %s17
      %s27 = scalar_select %p24, %s26, %s17
      %p28 = scmp.ge.s32.totalorder %s27, 2
      %s29 = scalar_select %p28, 0, %s27
      %s30 = ssub.s32 %s17, %s29
      %p31 = scmp.eq.s32.totalorder %s30, 0
      %s33 = sadd.s32 %s32, 1
      %s34 = scalar_select %p31, %s32, %s33
      %p37 = pneg %p31
      %p38 = scmp.eq.s32.totalorder %s10, 3
      %p39 = por %p37, %p38
      %p40 = scmp.ne.s32.totalorder %s32, %s35
      %p41 = scmp.eq.s32.totalorder %s10, 0
      %p42 = por %p40, %p41
      %p43 = scmp.ne.s32.totalorder %s32, %s35
      %p44 = scmp.eq.s32.totalorder %s15, 3
      %p45 = por %p43, %p44
      %p46 = scmp.ne.s32.totalorder %s35, %s36
      %p47 = scmp.eq.s32.totalorder %s15, 0
      %p48 = por %p46, %p47
      %p49 = scmp.ne.s32.totalorder %s35, %s36
      %p50 = scmp.eq.s32.totalorder %s16, 3
      %p51 = por %p49, %p50
      %p53 = scmp.ne.s32.totalorder %s36, %s52
      %p54 = scmp.eq.s32.totalorder %s16, 0
      %p55 = por %p53, %p54
      %s56 = ssub.s32 %s18, %s25
      %p57 = scmp.eq.s32.totalorder %s56, 0
      %s59 = sadd.s32 %s58, 1
      %s60 = scalar_select %p57, %s58, %s59
      %p63 = pneg %p57
      %p64 = scmp.eq.s32.totalorder %s10, 3
      %p65 = por %p63, %p64
      %p66 = scmp.ne.s32.totalorder %s58, %s61
      %p67 = scmp.eq.s32.totalorder %s10, 0
      %p68 = por %p66, %p67
      %p69 = scmp.ne.s32.totalorder %s58, %s61
      %p70 = scmp.eq.s32.totalorder %s15, 3
      %p71 = por %p69, %p70
      %p72 = scmp.ne.s32.totalorder %s61, %s62
      %p73 = scmp.eq.s32.totalorder %s15, 0
      %p74 = por %p72, %p73
      %p75 = scmp.ne.s32.totalorder %s61, %s62
      %p76 = scmp.eq.s32.totalorder %s16, 3
      %p77 = por %p75, %p76
      %p79 = scmp.ne.s32.totalorder %s62, %s78
      %p80 = scmp.eq.s32.totalorder %s16, 0
      %p81 = por %p79, %p80
      %s82 = ssub.s32 %s18, %s25
      %p83 = scmp.eq.s32.totalorder %s82, 0
      %s85 = sadd.s32 %s84, 1
      %s86 = scalar_select %p83, %s84, %s85
      %p89 = pneg %p83
      %p90 = scmp.eq.s32.totalorder %s10, 3
      %p91 = por %p89, %p90
      %p92 = scmp.ne.s32.totalorder %s84, %s87
      %p93 = scmp.eq.s32.totalorder %s10, 0
      %p94 = por %p92, %p93
      %p95 = scmp.ne.s32.totalorder %s84, %s87
      %p96 = scmp.eq.s32.totalorder %s15, 3
      %p97 = por %p95, %p96
      %p98 = scmp.ne.s32.totalorder %s87, %s88
      %p99 = scmp.eq.s32.totalorder %s15, 0
      %p100 = por %p98, %p99
      %p101 = scmp.ne.s32.totalorder %s87, %s88
      %p102 = scmp.eq.s32.totalorder %s16, 3
      %p103 = por %p101, %p102
      %p105 = scmp.ne.s32.totalorder %s88, %s104
      %p106 = scmp.eq.s32.totalorder %s16, 0
      %p107 = por %p105, %p106
      %s109 = sadd.s32 %s108, 1
      %p112 = scmp.eq.s32.totalorder %s10, 3
      %p113 = scmp.ne.s32.totalorder %s108, %s110
      %p114 = scmp.eq.s32.totalorder %s10, 0
      %p115 = por %p113, %p114
      %p116 = scmp.ne.s32.totalorder %s108, %s110
      %p117 = scmp.eq.s32.totalorder %s15, 3
      %p118 = por %p116, %p117
      %p119 = scmp.ne.s32.totalorder %s110, %s111
      %p120 = scmp.eq.s32.totalorder %s15, 0
      %p121 = por %p119, %p120
      %p122 = scmp.ne.s32.totalorder %s110, %s111
      %p123 = scmp.eq.s32.totalorder %s16, 3
      %p124 = por %p122, %p123
      %p126 = scmp.ne.s32.totalorder %s111, %s125
      %p127 = scmp.eq.s32.totalorder %s16, 0
      %p128 = por %p126, %p127
      %s129 = ssub.s32 %s17, %s29
      %s130 = ssub.s32 %s18, %s25
      %s131 = sor.u32 %s129, %s130
      %p132 = scmp.eq.s32.totalorder %s131, 0
      %s134 = sadd.s32 %s133, 1
      %s135 = scalar_select %p132, %s133, %s134
      %p138 = pneg %p132
      %p139 = scmp.eq.s32.totalorder %s10, 3
      %p140 = por %p138, %p139
      %p141 = scmp.ne.s32.totalorder %s133, %s136
      %p142 = scmp.eq.s32.totalorder %s10, 0
      %p143 = por %p141, %p142
      %p144 = scmp.ne.s32.totalorder %s133, %s136
      %p145 = scmp.eq.s32.totalorder %s15, 3
      %p146 = por %p144, %p145
      %p147 = scmp.ne.s32.totalorder %s136, %s137
      %p148 = scmp.eq.s32.totalorder %s15, 0
      %p149 = por %p147, %p148
      %p150 = scmp.ne.s32.totalorder %s136, %s137
      %p151 = scmp.eq.s32.totalorder %s16, 3
      %p152 = por %p150, %p151
      %p154 = scmp.ne.s32.totalorder %s137, %s153
      %p155 = scmp.eq.s32.totalorder %s16, 0
      %p156 = por %p154, %p155
      %p157 = scmp.le.s32.totalorder 1, %s10
      %p158 = scmp.lt.s32.totalorder %s10, 5
      %p159 = pnand %p157, %p158
      %p160 = pneg %p159
      // Predicated region
      $region9: #{upsample_forward.1} parent=5 // pred_check
        _
      $region10: #{upsample_forward.1} parent=5 // pred_check_branch
        %162 = sbr.rel (%p159) target = $region12
      $region11: #{upsample_forward.1} parent=5 // pred_region
        %s163 = ssub.s32 %s10, 1
        // Predicated region
        $region13: #{upsample_forward.1} parent=11 // pred_check
          %p164 = pneg %p121
        $region14: #{upsample_forward.1} parent=11 // pred_check_branch
          %166 = sbr.rel (%p164) target = $region16
        $region15: #{upsample_forward.1} parent=11 // pred_region
          _
        $region16: #{upsample_forward.1} parent=11 // pred_fallthru
          _
      $region12: #{upsample_forward.1} parent=5 // pred_fallthru
        _
      %p167 = scmp.lt.s32.totalorder %s10, 4
      // Predicated region
      $region17: #{upsample_forward.1} parent=5 // pred_check
        %p168 = pneg %p167
      $region18: #{upsample_forward.1} parent=5 // pred_check_branch
        %170 = sbr.rel (%p168) target = $region20
      $region19: #{upsample_forward.1} parent=5 // pred_region
        // Predicated region
        $region21: #{upsample_forward.1} parent=19 // pred_check
          %p171 = pneg %p42
        $region22: #{upsample_forward.1} parent=19 // pred_check_branch
          %173 = sbr.rel (%p171) target = $region24
        $region23: #{upsample_forward.1} parent=19 // pred_region
          %p174 = scmp.lt.s32.totalorder %s17, 1
          %s175 = scalar_select %p174, %s17, 1
          %s176 = smul.addr %s175, 2
          %s177 = smul.addr %s176, 4
          %s178 = scalar_lea.vmem %s0, %s177
        $region24: #{upsample_forward.1} parent=19 // pred_fallthru
          _
        // Predicated region
        $region25: #{upsample_forward.1} parent=19 // pred_check
          %p179 = pneg %p68
        $region26: #{upsample_forward.1} parent=19 // pred_check_branch
          %181 = sbr.rel (%p179) target = $region28
        $region27: #{upsample_forward.1} parent=19 // pred_region
          %s182 = sand.u32 %s58, 1
          %s183 = sand.u32 %s58, 1
          %s184 = smul.addr %s183, 72
          %s185 = scalar_lea.vmem [#allocation3], %s184
          %s186 = smul.addr %s18, 8
          %s187 = scalar_lea.vmem %s1, %s186
          // Predicated region
          $region29: #{upsample_forward.1} parent=27 // pred_check
            _
          $region30: #{upsample_forward.1} parent=27 // pred_check_branch
            %189 = sbr.rel (0) target = $region32
          $region31: #{upsample_forward.1} parent=27 // pred_region
            // Predicated region
            $region33: #{upsample_forward.1} parent=31 // pred_check
              _
            $region34: #{upsample_forward.1} parent=31 // pred_check_branch
              %191 = sbr.rel (0) target = $region36
            $region35: #{upsample_forward.1} parent=31 // pred_region
              // Predicated region
              $region48: #{upsample_forward.1} parent=35 // pred_check
                _
              $region49: #{upsample_forward.1} parent=35 // pred_check_branch
                %223 = sbr.rel (0) target = $region51
              $region50: #{upsample_forward.1} parent=35 // pred_region
                loop: start=0, step=1, limit=1
                $region52: #{upsample_forward.1} parent=50 // loop_pre_header
                  _
                $region53: #{upsample_forward.1} parent=50 // loop_header
                  %s225 = sphi 0, %s229
                  %p226 = scmp.ge.s32.totalorder %s225, 1
                  %s230 = sphi %s187, %s187
                  %s231 = sphi %s185, %s185
                $region54: #{upsample_forward.1} parent=50 // loop_header_branch
                  %228 = sbr.rel (%p226) target = $region58
                $region55: #{upsample_forward.1} parent=50 // loop_body
                  %v232 = vld [vmem:[%s230] sm:$0xff]
                  %233 = vst [vmem:[%s231] sm:$0xff] %v232
                  %v234 = vld [vmem:[%s230 + $0x10] sm:$0xff]
                  %235 = vst [vmem:[%s231 + $0x8] sm:$0xff] %v234
                  %v236 = vld [vmem:[%s230 + $0x20] sm:$0xff]
                  %237 = vst [vmem:[%s231 + $0x10] sm:$0xff] %v236
                  %v238 = vld [vmem:[%s230 + $0x30] sm:$0xff]
                  %239 = vst [vmem:[%s231 + $0x18] sm:$0xff] %v238
                  %v240 = vld [vmem:[%s230 + $0x40] sm:$0xff]
                  %241 = vst [vmem:[%s231 + $0x20] sm:$0xff] %v240
                  %v242 = vld [vmem:[%s230 + $0x50] sm:$0xff]
                  %243 = vst [vmem:[%s231 + $0x28] sm:$0xff] %v242
                  %v244 = vld [vmem:[%s230 + $0x60] sm:$0xff]
                  %245 = vst [vmem:[%s231 + $0x30] sm:$0xff] %v244
                  %v246 = vld [vmem:[%s230 + $0x70] sm:$0xff]
                  %247 = vst [vmem:[%s231 + $0x38] sm:$0xff] %v246
                  %v248 = vld [vmem:[%s230 + $0x80] sm:$0xff]
                  %249 = vst [vmem:[%s231 + $0x40] sm:$0xff] %v248
                $region56: #{upsample_forward.1} parent=50 // loop_footer
                  %s229 = sadd.s32 1, %s225
                $region57: #{upsample_forward.1} parent=50 // loop_footer_branch
                  %224 = sbr.rel target = $region53
                $region58: #{upsample_forward.1} parent=50 // loop_exit
                  _
              $region51: #{upsample_forward.1} parent=35 // pred_fallthru
                _
              // Predicated region
              $region59: #{upsample_forward.1} parent=35 // pred_check
                _
              $region60: #{upsample_forward.1} parent=35 // pred_check_branch
                %251 = sbr.rel target = $region62
              $region61: #{upsample_forward.1} parent=35 // pred_region
                _
              $region62: #{upsample_forward.1} parent=35 // pred_fallthru
                _
            $region36: #{upsample_forward.1} parent=31 // pred_fallthru
              _
            // Predicated region
            $region37: #{upsample_forward.1} parent=31 // pred_check
              _
            $region38: #{upsample_forward.1} parent=31 // pred_check_branch
              %193 = sbr.rel target = $region40
            $region39: #{upsample_forward.1} parent=31 // pred_region
              %s195 = ssub.s32 256, 1
              loop: start=0, step=1, limit=1
              $region41: #{upsample_forward.1} parent=39 // loop_pre_header
                _
              $region42: #{upsample_forward.1} parent=39 // loop_header
                %s197 = sphi 0, %s201
                %p198 = scmp.ge.s32.totalorder %s197, 1
                %s202 = sphi %s187, %s187
                %s203 = sphi %s185, %s185
              $region43: #{upsample_forward.1} parent=39 // loop_header_branch
                %200 = sbr.rel (%p198) target = $region47
              $region44: #{upsample_forward.1} parent=39 // loop_body
                %v204 = vld [vmem:[%s202] sm:%s195]
                %205 = vst [vmem:[%s203] sm:%s195] %v204
                %v206 = vld [vmem:[%s202 + $0x10] sm:%s195]
                %207 = vst [vmem:[%s203 + $0x8] sm:%s195] %v206
                %v208 = vld [vmem:[%s202 + $0x20] sm:%s195]
                %209 = vst [vmem:[%s203 + $0x10] sm:%s195] %v208
                %v210 = vld [vmem:[%s202 + $0x30] sm:%s195]
                %211 = vst [vmem:[%s203 + $0x18] sm:%s195] %v210
                %v212 = vld [vmem:[%s202 + $0x40] sm:%s195]
                %213 = vst [vmem:[%s203 + $0x20] sm:%s195] %v212
                %v214 = vld [vmem:[%s202 + $0x50] sm:%s195]
                %215 = vst [vmem:[%s203 + $0x28] sm:%s195] %v214
                %v216 = vld [vmem:[%s202 + $0x60] sm:%s195]
                %217 = vst [vmem:[%s203 + $0x30] sm:%s195] %v216
                %v218 = vld [vmem:[%s202 + $0x70] sm:%s195]
                %219 = vst [vmem:[%s203 + $0x38] sm:%s195] %v218
                %v220 = vld [vmem:[%s202 + $0x80] sm:%s195]
                %221 = vst [vmem:[%s203 + $0x40] sm:%s195] %v220
              $region45: #{upsample_forward.1} parent=39 // loop_footer
                %s201 = sadd.s32 1, %s197
              $region46: #{upsample_forward.1} parent=39 // loop_footer_branch
                %196 = sbr.rel target = $region42
              $region47: #{upsample_forward.1} parent=39 // loop_exit
                _
            $region40: #{upsample_forward.1} parent=31 // pred_fallthru
              _
          $region32: #{upsample_forward.1} parent=27 // pred_fallthru
            _
          %252 = vnop
        $region28: #{upsample_forward.1} parent=19 // pred_fallthru
          _
        // Predicated region
        $region63: #{upsample_forward.1} parent=19 // pred_check
          %p253 = pneg %p94
        $region64: #{upsample_forward.1} parent=19 // pred_check_branch
          %255 = sbr.rel (%p253) target = $region66
        $region65: #{upsample_forward.1} parent=19 // pred_region
          %p256 = scmp.lt.s32.totalorder %s18, 1
          %s257 = scalar_select %p256, %s18, 1
          %s258 = smul.addr %s257, 8
          %s259 = scalar_lea.vmem %s2, %s258
        $region66: #{upsample_forward.1} parent=19 // pred_fallthru
          _
      $region20: #{upsample_forward.1} parent=5 // pred_fallthru
        _
      %p260 = scmp.le.s32.totalorder 1, %s10
      %p261 = scmp.lt.s32.totalorder %s10, 5
      %p262 = pnand %p260, %p261
      %p263 = pneg %p262
      // Predicated region
      $region67: #{upsample_forward.1} parent=5 // pred_check
        _
      $region68: #{upsample_forward.1} parent=5 // pred_check_branch
        %265 = sbr.rel (%p262) target = $region70
      $region69: #{upsample_forward.1} parent=5 // pred_region
        %s266 = ssub.s32 %s10, 1
        %s267 = sand.u32 %s61, 1
        %s268 = sand.u32 %s61, 1
        %s269 = smul.addr %s268, 72
        %s270 = scalar_lea.vmem [#allocation3], %s269
        // Predicated region
        $region71: #{upsample_forward.1} parent=69 // pred_check
          %p271 = pneg %p74
        $region72: #{upsample_forward.1} parent=69 // pred_check_branch
          %273 = sbr.rel (%p271) target = $region74
        $region73: #{upsample_forward.1} parent=69 // pred_region
          _
        $region74: #{upsample_forward.1} parent=69 // pred_fallthru
          _
        %p274 = scmp.lt.s32.totalorder %s19, 1
        %s275 = scalar_select %p274, %s19, 1
        %s276 = smul.addr %s275, 2
        %s277 = smul.addr %s276, 4
        %s278 = scalar_lea.vmem %s0, %s277
        %p279 = pneg %p48
        %p280 = pneg %p45
        %s281 = sand.u32 %s61, 1
        %s282 = sand.u32 %s61, 1
        %s283 = smul.addr %s282, 72
        %s284 = scalar_lea.vmem [#allocation3], %s283
        %p285 = pneg %p74
        %p286 = pneg %p71
        %p287 = scmp.lt.s32.totalorder %s20, 1
        %s288 = scalar_select %p287, %s20, 1
        %s289 = smul.addr %s288, 8
        %s290 = scalar_lea.vmem %s2, %s289
        %p291 = pneg %p100
        %p292 = pneg %p97
        %p293 = pneg %p121
        %p294 = pneg %p118
        %p295 = pneg %p149
        %p296 = pneg %p146
        %p297 = scmp.lt.s32.totalorder %s19, 1
        %s298 = scalar_select %p297, %s19, 1
        %p299 = scmp.lt.s32.totalorder %s20, 1
        %s300 = scalar_select %p299, %s20, 1
        %s301 = smul.addr %s300, 2
        %s302 = smul.addr %s298, 4
        %s303 = sadd.s32 %s301, %s302
        %s304 = smul.addr %s303, 8
        %s305 = scalar_lea.vmem %s4, %s304
        %p306 = scmp.lt.s32.totalorder %s19, 1
        %s307 = scalar_select %p306, %s19, 1
        %s308 = smul.addr %s307, 2
        %s309 = smul.addr %s308, 4
        %s310 = scalar_lea.vmem %s0, %s309
        %p311 = scmp.lt.s32.totalorder %s20, 1
        %s312 = scalar_select %p311, %s20, 1
        %s313 = smul.addr %s312, 8
        %s314 = scalar_lea.vmem %s2, %s313
        %p315 = scmp.lt.s32.totalorder %s19, 1
        %s316 = scalar_select %p315, %s19, 1
        %p317 = scmp.lt.s32.totalorder %s20, 1
        %s318 = scalar_select %p317, %s20, 1
        %s319 = smul.addr %s318, 2
        %s320 = smul.addr %s316, 4
        %s321 = sadd.s32 %s319, %s320
        %s322 = smul.addr %s321, 8
        %s323 = scalar_lea.vmem %s4, %s322
        %324 = vst [vmem:[#allocation2] sm:$0xff] 0.0
        %vm325 = vcmask 273408
        %326 = vst.msk [vmem:[#allocation2 + $0x8] sm:$0xf] %vm325, 0.0
        %v327 = vld [vmem:[%s310] sm:$0xff]
        %329 = vrot.lane.b32.xlu0 %v327, 17
        %v330 = vpop.permute.xlu0 %329
        %v331 = vrot.slane %v330, 4
        %vm332 = vcmask 138240
        %v333 = vsel %vm332, %v331, %v330
        %vm336 = vcmask 1043592
        %vm337 = vcmask 1047556
        %vm338 = vmor %vm337, %vm336
        %339 = vst.msk [vmem:[#allocation2] sm:$0xff] %vm338, %v333
        %vm340 = vcmask 134144
        %341 = vst.msk [vmem:[#allocation2 + $0x8] sm:$0xf] %vm340, %v331
        %v342 = vld [vmem:[#allocation2] sm:$0xff]
        %v343 = vld [vmem:[%s3] ss:$8 sm:$0x3]
        %v345 = vperm.slane %v343, 0
        %v346 = vperm.slane %v343, 1
        %v347 = vrot.slane %v346, 4
        %vm348 = vcmask 1043456
        %v349 = vsel %vm348, %v345, %v347
        %v351 = vmul.f32 %v342, %v349
        %v352 = vld [vmem:[%s270] sm:$0xff]
        %v353 = vld [vmem:[#allocation2 + $0x8] sm:$0xf]
        %s354 = scalar_lea.vmem %s3, 1
        %v355 = vld [vmem:[%s354] ss:$8 sm:$0x3]
        %v357 = vperm.slane %v355, 0
        %v358 = vperm.slane %v355, 1
        %v359 = vrot.slane %v358, 4
        %v360 = vsel %vm348, %v357, %v359
        %361 = vrot.lane.b32.xlu0 %v360, 1
        %v362 = vpop.permute.xlu0 %361
        %v363 = vrot.slane %v362, 4
        %vm364 = vcmask 7168
        %v365 = vsel %vm364, %v363, %v362
        %v368 = vmul.f32 %v342, %v365
        %v369 = vmul.f32 %v353, %v363
        %s370 = scalar_lea.vmem %s270, 8 [#allocation3]
        %v371 = vld [vmem:[%s370] sm:$0xff]
        %374 = vst [vmem:[#allocation1] ss:$2 sm:$0xff] %v368
        %s375 = scalar_lea.vmem [#allocation1], 16
        %376 = vst [vmem:[%s375] ss:$2 sm:$0xff] %v369
        %v377 = vld.sshfl [vmem:[#allocation1] sm:$0xff pattern:$0x75316420]
        %v378 = vld.sshfl [vmem:[#allocation1 + $0x8] sm:$0xff pattern:$0x75316420]
        %v379 = vld.sshfl [vmem:[#allocation1 + $0x10] sm:$0xff pattern:$0x75316420]
        %380 = vrot.lane.b32.xlu0 %v377, 127
        %v381 = vpop.permute.xlu0 %380
        %382 = vrot.lane.b32.xlu0 %v378, 127
        %v383 = vpop.permute.xlu0 %382
        %384 = vrot.lane.b32.xlu0 %v379, 127
        %v385 = vpop.permute.xlu0 %384
        %vm386 = vcmask 1039360
        %v387 = vsel %vm386, %v381, %v383
        %v388 = vsel %vm386, %v383, %v385
        %vm389 = vcmask 31744
        %v391 = vsel %vm389, %v371, 0
        %v393 = vsel %vm348, %v387, 0
        %v395 = vsel %vm348, %v388, 0
        %397 = vmatpush.msra.mxu0 0.0
        %398 = vmatpush.msra.mxu0 0.0
        %399 = vmatpush.msra.mxu0 0.0
        %400 = vmatpush.msra.mxu0 0.0
        %401 = vmatpush.msra.mxu0 0.0
        %402 = vmatpush.msra.mxu0 0.0
        %403 = vmatpush.msra.mxu0 0.0
        %404 = vmatpush.msra.mxu0 0.0
        %405 = vmatpush.msra.mxu0 0.0
        %406 = vmatpush.msra.mxu0 0.0
        %407 = vmatpush.msra.mxu0 0.0
        %408 = vmatpush.msra.mxu0 0.0
        %409 = vmatpush.msra.mxu0 0.0
        %410 = vmatpush.msra.mxu0 0.0
        %411 = vmatpush.msra.mxu0 0.0
        %v412 = vand.u32 %v393, 4294901760
        %413 = vmatpush.msra.mxu0 %v412
        %v414 = vand.u32 %v391, 4294901760
        %v415 = vsub.f32 %v391, %v414
        %v416 = vand.u32 %v415, 4294901760
        %v417 = vsub.f32 %v415, %v416
        %v418 = vand.u32 %v417, 4294901760
        %419 = vmatmul.f32.gmra.mxu0 %v418
        %v420 = vpop.f32.mrf.mxu0
        %v421 = vadd.f32 0.0, %v420
        %422 = vdwg.mxu0
        %423 = vmatpush.msra.mxu0 0.0
        %424 = vmatpush.msra.mxu0 0.0
        %425 = vmatpush.msra.mxu0 0.0
        %426 = vmatpush.msra.mxu0 0.0
        %427 = vmatpush.msra.mxu0 0.0
        %428 = vmatpush.msra.mxu0 0.0
        %429 = vmatpush.msra.mxu0 0.0
        %430 = vmatpush.msra.mxu0 0.0
        %431 = vmatpush.msra.mxu0 0.0
        %432 = vmatpush.msra.mxu0 0.0
        %433 = vmatpush.msra.mxu0 0.0
        %434 = vmatpush.msra.mxu0 0.0
        %435 = vmatpush.msra.mxu0 0.0
        %436 = vmatpush.msra.mxu0 0.0
        %437 = vmatpush.msra.mxu0 0.0
        %v438 = vand.u32 %v393, 4294901760
        %v439 = vsub.f32 %v393, %v438
        %v440 = vand.u32 %v439, 4294901760
        %v441 = vsub.f32 %v439, %v440
        %v442 = vand.u32 %v441, 4294901760
        %443 = vmatpush.msra.mxu0 %v442
        %v444 = vand.u32 %v391, 4294901760
        %445 = vmatmul.f32.gmra.mxu0 %v444
        %v446 = vpop.f32.mrf.mxu0
        %v447 = vadd.f32 %v421, %v446
        %448 = vdwg.mxu0
        %449 = vmatpush.msra.mxu0 0.0
        %450 = vmatpush.msra.mxu0 0.0
        %451 = vmatpush.msra.mxu0 0.0
        %452 = vmatpush.msra.mxu0 0.0
        %453 = vmatpush.msra.mxu0 0.0
        %454 = vmatpush.msra.mxu0 0.0
        %455 = vmatpush.msra.mxu0 0.0
        %456 = vmatpush.msra.mxu0 0.0
        %457 = vmatpush.msra.mxu0 0.0
        %458 = vmatpush.msra.mxu0 0.0
        %459 = vmatpush.msra.mxu0 0.0
        %460 = vmatpush.msra.mxu0 0.0
        %461 = vmatpush.msra.mxu0 0.0
        %462 = vmatpush.msra.mxu0 0.0
        %463 = vmatpush.msra.mxu0 0.0
        %v464 = vand.u32 %v393, 4294901760
        %v465 = vsub.f32 %v393, %v464
        %466 = vmatpush.msra.mxu0 %v465
        %v467 = vand.u32 %v391, 4294901760
        %v468 = vsub.f32 %v391, %v467
        %469 = vmatmul.f32.gmra.mxu0 %v468
        %v470 = vpop.f32.mrf.mxu0
        %v471 = vadd.f32 %v447, %v470
        %472 = vdwg.mxu0
        %473 = vmatpush.msra.mxu0 0.0
        %474 = vmatpush.msra.mxu0 0.0
        %475 = vmatpush.msra.mxu0 0.0
        %476 = vmatpush.msra.mxu0 0.0
        %477 = vmatpush.msra.mxu0 0.0
        %478 = vmatpush.msra.mxu0 0.0
        %479 = vmatpush.msra.mxu0 0.0
        %480 = vmatpush.msra.mxu0 0.0
        %481 = vmatpush.msra.mxu0 0.0
        %482 = vmatpush.msra.mxu0 0.0
        %483 = vmatpush.msra.mxu0 0.0
        %484 = vmatpush.msra.mxu0 0.0
        %485 = vmatpush.msra.mxu0 0.0
        %486 = vmatpush.msra.mxu0 0.0
        %487 = vmatpush.msra.mxu0 0.0
        %v488 = vand.u32 %v393, 4294901760
        %489 = vmatpush.msra.mxu0 %v488
        %v490 = vand.u32 %v391, 4294901760
        %v491 = vsub.f32 %v391, %v490
        %v492 = vand.u32 %v491, 4294901760
        %493 = vmatmul.f32.gmra.mxu0 %v492
        %v494 = vpop.f32.mrf.mxu0
        %v495 = vadd.f32 %v471, %v494
        %496 = vdwg.mxu0
        %497 = vmatpush.msra.mxu0 0.0
        %498 = vmatpush.msra.mxu0 0.0
        %499 = vmatpush.msra.mxu0 0.0
        %500 = vmatpush.msra.mxu0 0.0
        %501 = vmatpush.msra.mxu0 0.0
        %502 = vmatpush.msra.mxu0 0.0
        %503 = vmatpush.msra.mxu0 0.0
        %504 = vmatpush.msra.mxu0 0.0
        %505 = vmatpush.msra.mxu0 0.0
        %506 = vmatpush.msra.mxu0 0.0
        %507 = vmatpush.msra.mxu0 0.0
        %508 = vmatpush.msra.mxu0 0.0
        %509 = vmatpush.msra.mxu0 0.0
        %510 = vmatpush.msra.mxu0 0.0
        %511 = vmatpush.msra.mxu0 0.0
        %v512 = vand.u32 %v393, 4294901760
        %v513 = vsub.f32 %v393, %v512
        %v514 = vand.u32 %v513, 4294901760
        %515 = vmatpush.msra.mxu0 %v514
        %v516 = vand.u32 %v391, 4294901760
        %517 = vmatmul.f32.gmra.mxu0 %v516
        %v518 = vpop.f32.mrf.mxu0
        %v519 = vadd.f32 %v495, %v518
        %520 = vdwg.mxu0
        %521 = vmatpush.msra.mxu0 0.0
        %522 = vmatpush.msra.mxu0 0.0
        %523 = vmatpush.msra.mxu0 0.0
        %524 = vmatpush.msra.mxu0 0.0
        %525 = vmatpush.msra.mxu0 0.0
        %526 = vmatpush.msra.mxu0 0.0
        %527 = vmatpush.msra.mxu0 0.0
        %528 = vmatpush.msra.mxu0 0.0
        %529 = vmatpush.msra.mxu0 0.0
        %530 = vmatpush.msra.mxu0 0.0
        %531 = vmatpush.msra.mxu0 0.0
        %532 = vmatpush.msra.mxu0 0.0
        %533 = vmatpush.msra.mxu0 0.0
        %534 = vmatpush.msra.mxu0 0.0
        %535 = vmatpush.msra.mxu0 0.0
        %v536 = vand.u32 %v393, 4294901760
        %537 = vmatpush.msra.mxu0 %v536
        %v538 = vand.u32 %v391, 4294901760
        %539 = vmatmul.f32.gmra.mxu0 %v538
        %v540 = vpop.f32.mrf.mxu0
        %v541 = vadd.f32 %v519, %v540
        %542 = vdwg.mxu0
        %543 = vmatpush.msra.mxu0 0.0
        %544 = vmatpush.msra.mxu0 0.0
        %545 = vmatpush.msra.mxu0 0.0
        %546 = vmatpush.msra.mxu0 0.0
        %547 = vmatpush.msra.mxu0 0.0
        %548 = vmatpush.msra.mxu0 0.0
        %549 = vmatpush.msra.mxu0 0.0
        %550 = vmatpush.msra.mxu0 0.0
        %551 = vmatpush.msra.mxu0 0.0
        %552 = vmatpush.msra.mxu0 0.0
        %553 = vmatpush.msra.mxu0 0.0
        %554 = vmatpush.msra.mxu0 0.0
        %555 = vmatpush.msra.mxu0 0.0
        %556 = vmatpush.msra.mxu0 0.0
        %557 = vmatpush.msra.mxu0 0.0
        %v558 = vand.u32 %v395, 4294901760
        %559 = vmatpush.msra.mxu0 %v558
        %v560 = vand.u32 %v391, 4294901760
        %v561 = vsub.f32 %v391, %v560
        %v562 = vand.u32 %v561, 4294901760
        %v563 = vsub.f32 %v561, %v562
        %v564 = vand.u32 %v563, 4294901760
        %565 = vmatmul.f32.gmra.mxu0 %v564
        %v566 = vpop.f32.mrf.mxu0
        %v567 = vadd.f32 0.0, %v566
        %568 = vdwg.mxu0
        %569 = vmatpush.msra.mxu0 0.0
        %570 = vmatpush.msra.mxu0 0.0
        %571 = vmatpush.msra.mxu0 0.0
        %572 = vmatpush.msra.mxu0 0.0
        %573 = vmatpush.msra.mxu0 0.0
        %574 = vmatpush.msra.mxu0 0.0
        %575 = vmatpush.msra.mxu0 0.0
        %576 = vmatpush.msra.mxu0 0.0
        %577 = vmatpush.msra.mxu0 0.0
        %578 = vmatpush.msra.mxu0 0.0
        %579 = vmatpush.msra.mxu0 0.0
        %580 = vmatpush.msra.mxu0 0.0
        %581 = vmatpush.msra.mxu0 0.0
        %582 = vmatpush.msra.mxu0 0.0
        %583 = vmatpush.msra.mxu0 0.0
        %v584 = vand.u32 %v395, 4294901760
        %v585 = vsub.f32 %v395, %v584
        %v586 = vand.u32 %v585, 4294901760
        %v587 = vsub.f32 %v585, %v586
        %v588 = vand.u32 %v587, 4294901760
        %589 = vmatpush.msra.mxu0 %v588
        %v590 = vand.u32 %v391, 4294901760
        %591 = vmatmul.f32.gmra.mxu0 %v590
        %v592 = vpop.f32.mrf.mxu0
        %v593 = vadd.f32 %v567, %v592
        %594 = vdwg.mxu0
        %595 = vmatpush.msra.mxu0 0.0
        %596 = vmatpush.msra.mxu0 0.0
        %597 = vmatpush.msra.mxu0 0.0
        %598 = vmatpush.msra.mxu0 0.0
        %599 = vmatpush.msra.mxu0 0.0
        %600 = vmatpush.msra.mxu0 0.0
        %601 = vmatpush.msra.mxu0 0.0
        %602 = vmatpush.msra.mxu0 0.0
        %603 = vmatpush.msra.mxu0 0.0
        %604 = vmatpush.msra.mxu0 0.0
        %605 = vmatpush.msra.mxu0 0.0
        %606 = vmatpush.msra.mxu0 0.0
        %607 = vmatpush.msra.mxu0 0.0
        %608 = vmatpush.msra.mxu0 0.0
        %609 = vmatpush.msra.mxu0 0.0
        %v610 = vand.u32 %v395, 4294901760
        %v611 = vsub.f32 %v395, %v610
        %612 = vmatpush.msra.mxu0 %v611
        %v613 = vand.u32 %v391, 4294901760
        %v614 = vsub.f32 %v391, %v613
        %615 = vmatmul.f32.gmra.mxu0 %v614
        %v616 = vpop.f32.mrf.mxu0
        %v617 = vadd.f32 %v593, %v616
        %618 = vdwg.mxu0
        %619 = vmatpush.msra.mxu0 0.0
        %620 = vmatpush.msra.mxu0 0.0
        %621 = vmatpush.msra.mxu0 0.0
        %622 = vmatpush.msra.mxu0 0.0
        %623 = vmatpush.msra.mxu0 0.0
        %624 = vmatpush.msra.mxu0 0.0
        %625 = vmatpush.msra.mxu0 0.0
        %626 = vmatpush.msra.mxu0 0.0
        %627 = vmatpush.msra.mxu0 0.0
        %628 = vmatpush.msra.mxu0 0.0
        %629 = vmatpush.msra.mxu0 0.0
        %630 = vmatpush.msra.mxu0 0.0
        %631 = vmatpush.msra.mxu0 0.0
        %632 = vmatpush.msra.mxu0 0.0
        %633 = vmatpush.msra.mxu0 0.0
        %v634 = vand.u32 %v395, 4294901760
        %635 = vmatpush.msra.mxu0 %v634
        %v636 = vand.u32 %v391, 4294901760
        %v637 = vsub.f32 %v391, %v636
        %v638 = vand.u32 %v637, 4294901760
        %639 = vmatmul.f32.gmra.mxu0 %v638
        %v640 = vpop.f32.mrf.mxu0
        %v641 = vadd.f32 %v617, %v640
        %642 = vdwg.mxu0
        %643 = vmatpush.msra.mxu0 0.0
        %644 = vmatpush.msra.mxu0 0.0
        %645 = vmatpush.msra.mxu0 0.0
        %646 = vmatpush.msra.mxu0 0.0
        %647 = vmatpush.msra.mxu0 0.0
        %648 = vmatpush.msra.mxu0 0.0
        %649 = vmatpush.msra.mxu0 0.0
        %650 = vmatpush.msra.mxu0 0.0
        %651 = vmatpush.msra.mxu0 0.0
        %652 = vmatpush.msra.mxu0 0.0
        %653 = vmatpush.msra.mxu0 0.0
        %654 = vmatpush.msra.mxu0 0.0
        %655 = vmatpush.msra.mxu0 0.0
        %656 = vmatpush.msra.mxu0 0.0
        %657 = vmatpush.msra.mxu0 0.0
        %v658 = vand.u32 %v395, 4294901760
        %v659 = vsub.f32 %v395, %v658
        %v660 = vand.u32 %v659, 4294901760
        %661 = vmatpush.msra.mxu0 %v660
        %v662 = vand.u32 %v391, 4294901760
        %663 = vmatmul.f32.gmra.mxu0 %v662
        %v664 = vpop.f32.mrf.mxu0
        %v665 = vadd.f32 %v641, %v664
        %666 = vdwg.mxu0
        %667 = vmatpush.msra.mxu0 0.0
        %668 = vmatpush.msra.mxu0 0.0
        %669 = vmatpush.msra.mxu0 0.0
        %670 = vmatpush.msra.mxu0 0.0
        %671 = vmatpush.msra.mxu0 0.0
        %672 = vmatpush.msra.mxu0 0.0
        %673 = vmatpush.msra.mxu0 0.0
        %674 = vmatpush.msra.mxu0 0.0
        %675 = vmatpush.msra.mxu0 0.0
        %676 = vmatpush.msra.mxu0 0.0
        %677 = vmatpush.msra.mxu0 0.0
        %678 = vmatpush.msra.mxu0 0.0
        %679 = vmatpush.msra.mxu0 0.0
        %680 = vmatpush.msra.mxu0 0.0
        %681 = vmatpush.msra.mxu0 0.0
        %v682 = vand.u32 %v395, 4294901760
        %683 = vmatpush.msra.mxu0 %v682
        %v684 = vand.u32 %v391, 4294901760
        %685 = vmatmul.f32.gmra.mxu0 %v684
        %v686 = vpop.f32.mrf.mxu0
        %v687 = vadd.f32 %v665, %v686
        %688 = vdwg.mxu0
        %690 = vst [vmem:[#allocation1] ss:$2 sm:$0xff] %v351
        %v691 = vld.sshfl [vmem:[#allocation1] sm:$0xff pattern:$0x75316420]
        %v692 = vld.sshfl [vmem:[#allocation1 + $0x8] sm:$0xff pattern:$0x75316420]
        %v694 = vsel %vm389, %v352, 0
        %v696 = vsel %vm348, %v691, 0
        %v698 = vsel %vm348, %v692, 0
        %700 = vmatpush.msra.mxu0 0.0
        %701 = vmatpush.msra.mxu0 0.0
        %702 = vmatpush.msra.mxu0 0.0
        %703 = vmatpush.msra.mxu0 0.0
        %704 = vmatpush.msra.mxu0 0.0
        %705 = vmatpush.msra.mxu0 0.0
        %706 = vmatpush.msra.mxu0 0.0
        %707 = vmatpush.msra.mxu0 0.0
        %708 = vmatpush.msra.mxu0 0.0
        %709 = vmatpush.msra.mxu0 0.0
        %710 = vmatpush.msra.mxu0 0.0
        %711 = vmatpush.msra.mxu0 0.0
        %712 = vmatpush.msra.mxu0 0.0
        %713 = vmatpush.msra.mxu0 0.0
        %714 = vmatpush.msra.mxu0 0.0
        %v715 = vand.u32 %v696, 4294901760
        %716 = vmatpush.msra.mxu0 %v715
        %v717 = vand.u32 %v694, 4294901760
        %v718 = vsub.f32 %v694, %v717
        %v719 = vand.u32 %v718, 4294901760
        %v720 = vsub.f32 %v718, %v719
        %v721 = vand.u32 %v720, 4294901760
        %722 = vmatmul.f32.gmra.mxu0 %v721
        %v723 = vpop.f32.mrf.mxu0
        %v724 = vadd.f32 %v541, %v723
        %725 = vdwg.mxu0
        %726 = vmatpush.msra.mxu0 0.0
        %727 = vmatpush.msra.mxu0 0.0
        %728 = vmatpush.msra.mxu0 0.0
        %729 = vmatpush.msra.mxu0 0.0
        %730 = vmatpush.msra.mxu0 0.0
        %731 = vmatpush.msra.mxu0 0.0
        %732 = vmatpush.msra.mxu0 0.0
        %733 = vmatpush.msra.mxu0 0.0
        %734 = vmatpush.msra.mxu0 0.0
        %735 = vmatpush.msra.mxu0 0.0
        %736 = vmatpush.msra.mxu0 0.0
        %737 = vmatpush.msra.mxu0 0.0
        %738 = vmatpush.msra.mxu0 0.0
        %739 = vmatpush.msra.mxu0 0.0
        %740 = vmatpush.msra.mxu0 0.0
        %v741 = vand.u32 %v696, 4294901760
        %v742 = vsub.f32 %v696, %v741
        %v743 = vand.u32 %v742, 4294901760
        %v744 = vsub.f32 %v742, %v743
        %v745 = vand.u32 %v744, 4294901760
        %746 = vmatpush.msra.mxu0 %v745
        %v747 = vand.u32 %v694, 4294901760
        %748 = vmatmul.f32.gmra.mxu0 %v747
        %v749 = vpop.f32.mrf.mxu0
        %v750 = vadd.f32 %v724, %v749
        %751 = vdwg.mxu0
        %752 = vmatpush.msra.mxu0 0.0
        %753 = vmatpush.msra.mxu0 0.0
        %754 = vmatpush.msra.mxu0 0.0
        %755 = vmatpush.msra.mxu0 0.0
        %756 = vmatpush.msra.mxu0 0.0
        %757 = vmatpush.msra.mxu0 0.0
        %758 = vmatpush.msra.mxu0 0.0
        %759 = vmatpush.msra.mxu0 0.0
        %760 = vmatpush.msra.mxu0 0.0
        %761 = vmatpush.msra.mxu0 0.0
        %762 = vmatpush.msra.mxu0 0.0
        %763 = vmatpush.msra.mxu0 0.0
        %764 = vmatpush.msra.mxu0 0.0
        %765 = vmatpush.msra.mxu0 0.0
        %766 = vmatpush.msra.mxu0 0.0
        %v767 = vand.u32 %v696, 4294901760
        %v768 = vsub.f32 %v696, %v767
        %769 = vmatpush.msra.mxu0 %v768
        %v770 = vand.u32 %v694, 4294901760
        %v771 = vsub.f32 %v694, %v770
        %772 = vmatmul.f32.gmra.mxu0 %v771
        %v773 = vpop.f32.mrf.mxu0
        %v774 = vadd.f32 %v750, %v773
        %775 = vdwg.mxu0
        %776 = vmatpush.msra.mxu0 0.0
        %777 = vmatpush.msra.mxu0 0.0
        %778 = vmatpush.msra.mxu0 0.0
        %779 = vmatpush.msra.mxu0 0.0
        %780 = vmatpush.msra.mxu0 0.0
        %781 = vmatpush.msra.mxu0 0.0
        %782 = vmatpush.msra.mxu0 0.0
        %783 = vmatpush.msra.mxu0 0.0
        %784 = vmatpush.msra.mxu0 0.0
        %785 = vmatpush.msra.mxu0 0.0
        %786 = vmatpush.msra.mxu0 0.0
        %787 = vmatpush.msra.mxu0 0.0
        %788 = vmatpush.msra.mxu0 0.0
        %789 = vmatpush.msra.mxu0 0.0
        %790 = vmatpush.msra.mxu0 0.0
        %v791 = vand.u32 %v696, 4294901760
        %792 = vmatpush.msra.mxu0 %v791
        %v793 = vand.u32 %v694, 4294901760
        %v794 = vsub.f32 %v694, %v793
        %v795 = vand.u32 %v794, 4294901760
        %796 = vmatmul.f32.gmra.mxu0 %v795
        %v797 = vpop.f32.mrf.mxu0
        %v798 = vadd.f32 %v774, %v797
        %799 = vdwg.mxu0
        %800 = vmatpush.msra.mxu0 0.0
        %801 = vmatpush.msra.mxu0 0.0
        %802 = vmatpush.msra.mxu0 0.0
        %803 = vmatpush.msra.mxu0 0.0
        %804 = vmatpush.msra.mxu0 0.0
        %805 = vmatpush.msra.mxu0 0.0
        %806 = vmatpush.msra.mxu0 0.0
        %807 = vmatpush.msra.mxu0 0.0
        %808 = vmatpush.msra.mxu0 0.0
        %809 = vmatpush.msra.mxu0 0.0
        %810 = vmatpush.msra.mxu0 0.0
        %811 = vmatpush.msra.mxu0 0.0
        %812 = vmatpush.msra.mxu0 0.0
        %813 = vmatpush.msra.mxu0 0.0
        %814 = vmatpush.msra.mxu0 0.0
        %v815 = vand.u32 %v696, 4294901760
        %v816 = vsub.f32 %v696, %v815
        %v817 = vand.u32 %v816, 4294901760
        %818 = vmatpush.msra.mxu0 %v817
        %v819 = vand.u32 %v694, 4294901760
        %820 = vmatmul.f32.gmra.mxu0 %v819
        %v821 = vpop.f32.mrf.mxu0
        %v822 = vadd.f32 %v798, %v821
        %823 = vdwg.mxu0
        %824 = vmatpush.msra.mxu0 0.0
        %825 = vmatpush.msra.mxu0 0.0
        %826 = vmatpush.msra.mxu0 0.0
        %827 = vmatpush.msra.mxu0 0.0
        %828 = vmatpush.msra.mxu0 0.0
        %829 = vmatpush.msra.mxu0 0.0
        %830 = vmatpush.msra.mxu0 0.0
        %831 = vmatpush.msra.mxu0 0.0
        %832 = vmatpush.msra.mxu0 0.0
        %833 = vmatpush.msra.mxu0 0.0
        %834 = vmatpush.msra.mxu0 0.0
        %835 = vmatpush.msra.mxu0 0.0
        %836 = vmatpush.msra.mxu0 0.0
        %837 = vmatpush.msra.mxu0 0.0
        %838 = vmatpush.msra.mxu0 0.0
        %v839 = vand.u32 %v696, 4294901760
        %840 = vmatpush.msra.mxu0 %v839
        %v841 = vand.u32 %v694, 4294901760
        %842 = vmatmul.f32.gmra.mxu0 %v841
        %v843 = vpop.f32.mrf.mxu0
        %v844 = vadd.f32 %v822, %v843
        %845 = vdwg.mxu0
        %846 = vmatpush.msra.mxu0 0.0
        %847 = vmatpush.msra.mxu0 0.0
        %848 = vmatpush.msra.mxu0 0.0
        %849 = vmatpush.msra.mxu0 0.0
        %850 = vmatpush.msra.mxu0 0.0
        %851 = vmatpush.msra.mxu0 0.0
        %852 = vmatpush.msra.mxu0 0.0
        %853 = vmatpush.msra.mxu0 0.0
        %854 = vmatpush.msra.mxu0 0.0
        %855 = vmatpush.msra.mxu0 0.0
        %856 = vmatpush.msra.mxu0 0.0
        %857 = vmatpush.msra.mxu0 0.0
        %858 = vmatpush.msra.mxu0 0.0
        %859 = vmatpush.msra.mxu0 0.0
        %860 = vmatpush.msra.mxu0 0.0
        %v861 = vand.u32 %v698, 4294901760
        %862 = vmatpush.msra.mxu0 %v861
        %v863 = vand.u32 %v694, 4294901760
        %v864 = vsub.f32 %v694, %v863
        %v865 = vand.u32 %v864, 4294901760
        %v866 = vsub.f32 %v864, %v865
        %v867 = vand.u32 %v866, 4294901760
        %868 = vmatmul.f32.gmra.mxu0 %v867
        %v869 = vpop.f32.mrf.mxu0
        %v870 = vadd.f32 %v687, %v869
        %871 = vdwg.mxu0
        %872 = vmatpush.msra.mxu0 0.0
        %873 = vmatpush.msra.mxu0 0.0
        %874 = vmatpush.msra.mxu0 0.0
        %875 = vmatpush.msra.mxu0 0.0
        %876 = vmatpush.msra.mxu0 0.0
        %877 = vmatpush.msra.mxu0 0.0
        %878 = vmatpush.msra.mxu0 0.0
        %879 = vmatpush.msra.mxu0 0.0
        %880 = vmatpush.msra.mxu0 0.0
        %881 = vmatpush.msra.mxu0 0.0
        %882 = vmatpush.msra.mxu0 0.0
        %883 = vmatpush.msra.mxu0 0.0
        %884 = vmatpush.msra.mxu0 0.0
        %885 = vmatpush.msra.mxu0 0.0
        %886 = vmatpush.msra.mxu0 0.0
        %v887 = vand.u32 %v698, 4294901760
        %v888 = vsub.f32 %v698, %v887
        %v889 = vand.u32 %v888, 4294901760
        %v890 = vsub.f32 %v888, %v889
        %v891 = vand.u32 %v890, 4294901760
        %892 = vmatpush.msra.mxu0 %v891
        %v893 = vand.u32 %v694, 4294901760
        %894 = vmatmul.f32.gmra.mxu0 %v893
        %v895 = vpop.f32.mrf.mxu0
        %v896 = vadd.f32 %v870, %v895
        %897 = vdwg.mxu0
        %898 = vmatpush.msra.mxu0 0.0
        %899 = vmatpush.msra.mxu0 0.0
        %900 = vmatpush.msra.mxu0 0.0
        %901 = vmatpush.msra.mxu0 0.0
        %902 = vmatpush.msra.mxu0 0.0
        %903 = vmatpush.msra.mxu0 0.0
        %904 = vmatpush.msra.mxu0 0.0
        %905 = vmatpush.msra.mxu0 0.0
        %906 = vmatpush.msra.mxu0 0.0
        %907 = vmatpush.msra.mxu0 0.0
        %908 = vmatpush.msra.mxu0 0.0
        %909 = vmatpush.msra.mxu0 0.0
        %910 = vmatpush.msra.mxu0 0.0
        %911 = vmatpush.msra.mxu0 0.0
        %912 = vmatpush.msra.mxu0 0.0
        %v913 = vand.u32 %v698, 4294901760
        %v914 = vsub.f32 %v698, %v913
        %915 = vmatpush.msra.mxu0 %v914
        %v916 = vand.u32 %v694, 4294901760
        %v917 = vsub.f32 %v694, %v916
        %918 = vmatmul.f32.gmra.mxu0 %v917
        %v919 = vpop.f32.mrf.mxu0
        %v920 = vadd.f32 %v896, %v919
        %921 = vdwg.mxu0
        %922 = vmatpush.msra.mxu0 0.0
        %923 = vmatpush.msra.mxu0 0.0
        %924 = vmatpush.msra.mxu0 0.0
        %925 = vmatpush.msra.mxu0 0.0
        %926 = vmatpush.msra.mxu0 0.0
        %927 = vmatpush.msra.mxu0 0.0
        %928 = vmatpush.msra.mxu0 0.0
        %929 = vmatpush.msra.mxu0 0.0
        %930 = vmatpush.msra.mxu0 0.0
        %931 = vmatpush.msra.mxu0 0.0
        %932 = vmatpush.msra.mxu0 0.0
        %933 = vmatpush.msra.mxu0 0.0
        %934 = vmatpush.msra.mxu0 0.0
        %935 = vmatpush.msra.mxu0 0.0
        %936 = vmatpush.msra.mxu0 0.0
        %v937 = vand.u32 %v698, 4294901760
        %938 = vmatpush.msra.mxu0 %v937
        %v939 = vand.u32 %v694, 4294901760
        %v940 = vsub.f32 %v694, %v939
        %v941 = vand.u32 %v940, 4294901760
        %942 = vmatmul.f32.gmra.mxu0 %v941
        %v943 = vpop.f32.mrf.mxu0
        %v944 = vadd.f32 %v920, %v943
        %945 = vdwg.mxu0
        %946 = vmatpush.msra.mxu0 0.0
        %947 = vmatpush.msra.mxu0 0.0
        %948 = vmatpush.msra.mxu0 0.0
        %949 = vmatpush.msra.mxu0 0.0
        %950 = vmatpush.msra.mxu0 0.0
        %951 = vmatpush.msra.mxu0 0.0
        %952 = vmatpush.msra.mxu0 0.0
        %953 = vmatpush.msra.mxu0 0.0
        %954 = vmatpush.msra.mxu0 0.0
        %955 = vmatpush.msra.mxu0 0.0
        %956 = vmatpush.msra.mxu0 0.0
        %957 = vmatpush.msra.mxu0 0.0
        %958 = vmatpush.msra.mxu0 0.0
        %959 = vmatpush.msra.mxu0 0.0
        %960 = vmatpush.msra.mxu0 0.0
        %v961 = vand.u32 %v698, 4294901760
        %v962 = vsub.f32 %v698, %v961
        %v963 = vand.u32 %v962, 4294901760
        %964 = vmatpush.msra.mxu0 %v963
        %v965 = vand.u32 %v694, 4294901760
        %966 = vmatmul.f32.gmra.mxu0 %v965
        %v967 = vpop.f32.mrf.mxu0
        %v968 = vadd.f32 %v944, %v967
        %969 = vdwg.mxu0
        %970 = vmatpush.msra.mxu0 0.0
        %971 = vmatpush.msra.mxu0 0.0
        %972 = vmatpush.msra.mxu0 0.0
        %973 = vmatpush.msra.mxu0 0.0
        %974 = vmatpush.msra.mxu0 0.0
        %975 = vmatpush.msra.mxu0 0.0
        %976 = vmatpush.msra.mxu0 0.0
        %977 = vmatpush.msra.mxu0 0.0
        %978 = vmatpush.msra.mxu0 0.0
        %979 = vmatpush.msra.mxu0 0.0
        %980 = vmatpush.msra.mxu0 0.0
        %981 = vmatpush.msra.mxu0 0.0
        %982 = vmatpush.msra.mxu0 0.0
        %983 = vmatpush.msra.mxu0 0.0
        %984 = vmatpush.msra.mxu0 0.0
        %v985 = vand.u32 %v698, 4294901760
        %986 = vmatpush.msra.mxu0 %v985
        %v987 = vand.u32 %v694, 4294901760
        %988 = vmatmul.f32.gmra.mxu0 %v987
        %v989 = vpop.f32.mrf.mxu0
        %v990 = vadd.f32 %v968, %v989
        %991 = vdwg.mxu0
        %v992 = vld [vmem:[#allocation2] sm:$0xff]
        %v993 = vld [vmem:[#allocation2 + $0x8] sm:$0xf]
        %s994 = scalar_lea.vmem %s3, 2
        %v995 = vld [vmem:[%s994] ss:$8 sm:$0x3]
        %v997 = vperm.slane %v995, 0
        %v998 = vperm.slane %v995, 1
        %v999 = vrot.slane %v998, 4
        %v1000 = vsel %vm348, %v997, %v999
        %1001 = vrot.lane.b32.xlu0 %v1000, 2
        %v1002 = vpop.permute.xlu0 %1001
        %v1003 = vrot.slane %v1002, 4
        %vm1004 = vcmask 15360
        %v1005 = vsel %vm1004, %v1003, %v1002
        %v1008 = vmul.f32 %v992, %v1005
        %v1009 = vmul.f32 %v993, %v1003
        %s1010 = scalar_lea.vmem %s270, 16 [#allocation3]
        %v1011 = vld [vmem:[%s1010] sm:$0xff]
        %1014 = vst [vmem:[#allocation1] ss:$2 sm:$0xff] %v1008
        %s1015 = scalar_lea.vmem [#allocation1], 16
        %1016 = vst [vmem:[%s1015] ss:$2 sm:$0xff] %v1009
        %v1017 = vld.sshfl [vmem:[#allocation1] sm:$0xff pattern:$0x75316420]
        %v1018 = vld.sshfl [vmem:[#allocation1 + $0x8] sm:$0xff pattern:$0x75316420]
        %v1019 = vld.sshfl [vmem:[#allocation1 + $0x10] sm:$0xff pattern:$0x75316420]
        %1020 = vrot.lane.b32.xlu0 %v1017, 126
        %v1021 = vpop.permute.xlu0 %1020
        %1022 = vrot.lane.b32.xlu0 %v1018, 126
        %v1023 = vpop.permute.xlu0 %1022
        %1024 = vrot.lane.b32.xlu0 %v1019, 126
        %v1025 = vpop.permute.xlu0 %1024
        %vm1026 = vcmask 1031168
        %v1027 = vsel %vm1026, %v1021, %v1023
        %v1028 = vsel %vm1026, %v1023, %v1025
        %v1030 = vsel %vm389, %v1011, 0
        %v1032 = vsel %vm348, %v1027, 0
        %v1034 = vsel %vm348, %v1028, 0
        %1036 = vmatpush.msra.mxu0 0.0
        %1037 = vmatpush.msra.mxu0 0.0
        %1038 = vmatpush.msra.mxu0 0.0
        %1039 = vmatpush.msra.mxu0 0.0
        %1040 = vmatpush.msra.mxu0 0.0
        %1041 = vmatpush.msra.mxu0 0.0
        %1042 = vmatpush.msra.mxu0 0.0
        %1043 = vmatpush.msra.mxu0 0.0
        %1044 = vmatpush.msra.mxu0 0.0
        %1045 = vmatpush.msra.mxu0 0.0
        %1046 = vmatpush.msra.mxu0 0.0
        %1047 = vmatpush.msra.mxu0 0.0
        %1048 = vmatpush.msra.mxu0 0.0
        %1049 = vmatpush.msra.mxu0 0.0
        %1050 = vmatpush.msra.mxu0 0.0
        %v1051 = vand.u32 %v1032, 4294901760
        %1052 = vmatpush.msra.mxu0 %v1051
        %v1053 = vand.u32 %v1030, 4294901760
        %v1054 = vsub.f32 %v1030, %v1053
        %v1055 = vand.u32 %v1054, 4294901760
        %v1056 = vsub.f32 %v1054, %v1055
        %v1057 = vand.u32 %v1056, 4294901760
        %1058 = vmatmul.f32.gmra.mxu0 %v1057
        %v1059 = vpop.f32.mrf.mxu0
        %v1060 = vadd.f32 0.0, %v1059
        %1061 = vdwg.mxu0
        %1062 = vmatpush.msra.mxu0 0.0
        %1063 = vmatpush.msra.mxu0 0.0
        %1064 = vmatpush.msra.mxu0 0.0
        %1065 = vmatpush.msra.mxu0 0.0
        %1066 = vmatpush.msra.mxu0 0.0
        %1067 = vmatpush.msra.mxu0 0.0
        %1068 = vmatpush.msra.mxu0 0.0
        %1069 = vmatpush.msra.mxu0 0.0
        %1070 = vmatpush.msra.mxu0 0.0
        %1071 = vmatpush.msra.mxu0 0.0
        %1072 = vmatpush.msra.mxu0 0.0
        %1073 = vmatpush.msra.mxu0 0.0
        %1074 = vmatpush.msra.mxu0 0.0
        %1075 = vmatpush.msra.mxu0 0.0
        %1076 = vmatpush.msra.mxu0 0.0
        %v1077 = vand.u32 %v1032, 4294901760
        %v1078 = vsub.f32 %v1032, %v1077
        %v1079 = vand.u32 %v1078, 4294901760
        %v1080 = vsub.f32 %v1078, %v1079
        %v1081 = vand.u32 %v1080, 4294901760
        %1082 = vmatpush.msra.mxu0 %v1081
        %v1083 = vand.u32 %v1030, 4294901760
        %1084 = vmatmul.f32.gmra.mxu0 %v1083
        %v1085 = vpop.f32.mrf.mxu0
        %v1086 = vadd.f32 %v1060, %v1085
        %1087 = vdwg.mxu0
        %1088 = vmatpush.msra.mxu0 0.0
        %1089 = vmatpush.msra.mxu0 0.0
        %1090 = vmatpush.msra.mxu0 0.0
        %1091 = vmatpush.msra.mxu0 0.0
        %1092 = vmatpush.msra.mxu0 0.0
        %1093 = vmatpush.msra.mxu0 0.0
        %1094 = vmatpush.msra.mxu0 0.0
        %1095 = vmatpush.msra.mxu0 0.0
        %1096 = vmatpush.msra.mxu0 0.0
        %1097 = vmatpush.msra.mxu0 0.0
        %1098 = vmatpush.msra.mxu0 0.0
        %1099 = vmatpush.msra.mxu0 0.0
        %1100 = vmatpush.msra.mxu0 0.0
        %1101 = vmatpush.msra.mxu0 0.0
        %1102 = vmatpush.msra.mxu0 0.0
        %v1103 = vand.u32 %v1032, 4294901760
        %v1104 = vsub.f32 %v1032, %v1103
        %1105 = vmatpush.msra.mxu0 %v1104
        %v1106 = vand.u32 %v1030, 4294901760
        %v1107 = vsub.f32 %v1030, %v1106
        %1108 = vmatmul.f32.gmra.mxu0 %v1107
        %v1109 = vpop.f32.mrf.mxu0
        %v1110 = vadd.f32 %v1086, %v1109
        %1111 = vdwg.mxu0
        %1112 = vmatpush.msra.mxu0 0.0
        %1113 = vmatpush.msra.mxu0 0.0
        %1114 = vmatpush.msra.mxu0 0.0
        %1115 = vmatpush.msra.mxu0 0.0
        %1116 = vmatpush.msra.mxu0 0.0
        %1117 = vmatpush.msra.mxu0 0.0
        %1118 = vmatpush.msra.mxu0 0.0
        %1119 = vmatpush.msra.mxu0 0.0
        %1120 = vmatpush.msra.mxu0 0.0
        %1121 = vmatpush.msra.mxu0 0.0
        %1122 = vmatpush.msra.mxu0 0.0
        %1123 = vmatpush.msra.mxu0 0.0
        %1124 = vmatpush.msra.mxu0 0.0
        %1125 = vmatpush.msra.mxu0 0.0
        %1126 = vmatpush.msra.mxu0 0.0
        %v1127 = vand.u32 %v1032, 4294901760
        %1128 = vmatpush.msra.mxu0 %v1127
        %v1129 = vand.u32 %v1030, 4294901760
        %v1130 = vsub.f32 %v1030, %v1129
        %v1131 = vand.u32 %v1130, 4294901760
        %1132 = vmatmul.f32.gmra.mxu0 %v1131
        %v1133 = vpop.f32.mrf.mxu0
        %v1134 = vadd.f32 %v1110, %v1133
        %1135 = vdwg.mxu0
        %1136 = vmatpush.msra.mxu0 0.0
        %1137 = vmatpush.msra.mxu0 0.0
        %1138 = vmatpush.msra.mxu0 0.0
        %1139 = vmatpush.msra.mxu0 0.0
        %1140 = vmatpush.msra.mxu0 0.0
        %1141 = vmatpush.msra.mxu0 0.0
        %1142 = vmatpush.msra.mxu0 0.0
        %1143 = vmatpush.msra.mxu0 0.0
        %1144 = vmatpush.msra.mxu0 0.0
        %1145 = vmatpush.msra.mxu0 0.0
        %1146 = vmatpush.msra.mxu0 0.0
        %1147 = vmatpush.msra.mxu0 0.0
        %1148 = vmatpush.msra.mxu0 0.0
        %1149 = vmatpush.msra.mxu0 0.0
        %1150 = vmatpush.msra.mxu0 0.0
        %v1151 = vand.u32 %v1032, 4294901760
        %v1152 = vsub.f32 %v1032, %v1151
        %v1153 = vand.u32 %v1152, 4294901760
        %1154 = vmatpush.msra.mxu0 %v1153
        %v1155 = vand.u32 %v1030, 4294901760
        %1156 = vmatmul.f32.gmra.mxu0 %v1155
        %v1157 = vpop.f32.mrf.mxu0
        %v1158 = vadd.f32 %v1134, %v1157
        %1159 = vdwg.mxu0
        %1160 = vmatpush.msra.mxu0 0.0
        %1161 = vmatpush.msra.mxu0 0.0
        %1162 = vmatpush.msra.mxu0 0.0
        %1163 = vmatpush.msra.mxu0 0.0
        %1164 = vmatpush.msra.mxu0 0.0
        %1165 = vmatpush.msra.mxu0 0.0
        %1166 = vmatpush.msra.mxu0 0.0
        %1167 = vmatpush.msra.mxu0 0.0
        %1168 = vmatpush.msra.mxu0 0.0
        %1169 = vmatpush.msra.mxu0 0.0
        %1170 = vmatpush.msra.mxu0 0.0
        %1171 = vmatpush.msra.mxu0 0.0
        %1172 = vmatpush.msra.mxu0 0.0
        %1173 = vmatpush.msra.mxu0 0.0
        %1174 = vmatpush.msra.mxu0 0.0
        %v1175 = vand.u32 %v1032, 4294901760
        %1176 = vmatpush.msra.mxu0 %v1175
        %v1177 = vand.u32 %v1030, 4294901760
        %1178 = vmatmul.f32.gmra.mxu0 %v1177
        %v1179 = vpop.f32.mrf.mxu0
        %v1180 = vadd.f32 %v1158, %v1179
        %1181 = vdwg.mxu0
        %1182 = vmatpush.msra.mxu0 0.0
        %1183 = vmatpush.msra.mxu0 0.0
        %1184 = vmatpush.msra.mxu0 0.0
        %1185 = vmatpush.msra.mxu0 0.0
        %1186 = vmatpush.msra.mxu0 0.0
        %1187 = vmatpush.msra.mxu0 0.0
        %1188 = vmatpush.msra.mxu0 0.0
        %1189 = vmatpush.msra.mxu0 0.0
        %1190 = vmatpush.msra.mxu0 0.0
        %1191 = vmatpush.msra.mxu0 0.0
        %1192 = vmatpush.msra.mxu0 0.0
        %1193 = vmatpush.msra.mxu0 0.0
        %1194 = vmatpush.msra.mxu0 0.0
        %1195 = vmatpush.msra.mxu0 0.0
        %1196 = vmatpush.msra.mxu0 0.0
        %v1197 = vand.u32 %v1034, 4294901760
        %1198 = vmatpush.msra.mxu0 %v1197
        %v1199 = vand.u32 %v1030, 4294901760
        %v1200 = vsub.f32 %v1030, %v1199
        %v1201 = vand.u32 %v1200, 4294901760
        %v1202 = vsub.f32 %v1200, %v1201
        %v1203 = vand.u32 %v1202, 4294901760
        %1204 = vmatmul.f32.gmra.mxu0 %v1203
        %v1205 = vpop.f32.mrf.mxu0
        %v1206 = vadd.f32 0.0, %v1205
        %1207 = vdwg.mxu0
        %1208 = vmatpush.msra.mxu0 0.0
        %1209 = vmatpush.msra.mxu0 0.0
        %1210 = vmatpush.msra.mxu0 0.0
        %1211 = vmatpush.msra.mxu0 0.0
        %1212 = vmatpush.msra.mxu0 0.0
        %1213 = vmatpush.msra.mxu0 0.0
        %1214 = vmatpush.msra.mxu0 0.0
        %1215 = vmatpush.msra.mxu0 0.0
        %1216 = vmatpush.msra.mxu0 0.0
        %1217 = vmatpush.msra.mxu0 0.0
        %1218 = vmatpush.msra.mxu0 0.0
        %1219 = vmatpush.msra.mxu0 0.0
        %1220 = vmatpush.msra.mxu0 0.0
        %1221 = vmatpush.msra.mxu0 0.0
        %1222 = vmatpush.msra.mxu0 0.0
        %v1223 = vand.u32 %v1034, 4294901760
        %v1224 = vsub.f32 %v1034, %v1223
        %v1225 = vand.u32 %v1224, 4294901760
        %v1226 = vsub.f32 %v1224, %v1225
        %v1227 = vand.u32 %v1226, 4294901760
        %1228 = vmatpush.msra.mxu0 %v1227
        %v1229 = vand.u32 %v1030, 4294901760
        %1230 = vmatmul.f32.gmra.mxu0 %v1229
        %v1231 = vpop.f32.mrf.mxu0
        %v1232 = vadd.f32 %v1206, %v1231
        %1233 = vdwg.mxu0
        %1234 = vmatpush.msra.mxu0 0.0
        %1235 = vmatpush.msra.mxu0 0.0
        %1236 = vmatpush.msra.mxu0 0.0
        %1237 = vmatpush.msra.mxu0 0.0
        %1238 = vmatpush.msra.mxu0 0.0
        %1239 = vmatpush.msra.mxu0 0.0
        %1240 = vmatpush.msra.mxu0 0.0
        %1241 = vmatpush.msra.mxu0 0.0
        %1242 = vmatpush.msra.mxu0 0.0
        %1243 = vmatpush.msra.mxu0 0.0
        %1244 = vmatpush.msra.mxu0 0.0
        %1245 = vmatpush.msra.mxu0 0.0
        %1246 = vmatpush.msra.mxu0 0.0
        %1247 = vmatpush.msra.mxu0 0.0
        %1248 = vmatpush.msra.mxu0 0.0
        %v1249 = vand.u32 %v1034, 4294901760
        %v1250 = vsub.f32 %v1034, %v1249
        %1251 = vmatpush.msra.mxu0 %v1250
        %v1252 = vand.u32 %v1030, 4294901760
        %v1253 = vsub.f32 %v1030, %v1252
        %1254 = vmatmul.f32.gmra.mxu0 %v1253
        %v1255 = vpop.f32.mrf.mxu0
        %v1256 = vadd.f32 %v1232, %v1255
        %1257 = vdwg.mxu0
        %1258 = vmatpush.msra.mxu0 0.0
        %1259 = vmatpush.msra.mxu0 0.0
        %1260 = vmatpush.msra.mxu0 0.0
        %1261 = vmatpush.msra.mxu0 0.0
        %1262 = vmatpush.msra.mxu0 0.0
        %1263 = vmatpush.msra.mxu0 0.0
        %1264 = vmatpush.msra.mxu0 0.0
        %1265 = vmatpush.msra.mxu0 0.0
        %1266 = vmatpush.msra.mxu0 0.0
        %1267 = vmatpush.msra.mxu0 0.0
        %1268 = vmatpush.msra.mxu0 0.0
        %1269 = vmatpush.msra.mxu0 0.0
        %1270 = vmatpush.msra.mxu0 0.0
        %1271 = vmatpush.msra.mxu0 0.0
        %1272 = vmatpush.msra.mxu0 0.0
        %v1273 = vand.u32 %v1034, 4294901760
        %1274 = vmatpush.msra.mxu0 %v1273
        %v1275 = vand.u32 %v1030, 4294901760
        %v1276 = vsub.f32 %v1030, %v1275
        %v1277 = vand.u32 %v1276, 4294901760
        %1278 = vmatmul.f32.gmra.mxu0 %v1277
        %v1279 = vpop.f32.mrf.mxu0
        %v1280 = vadd.f32 %v1256, %v1279
        %1281 = vdwg.mxu0
        %1282 = vmatpush.msra.mxu0 0.0
        %1283 = vmatpush.msra.mxu0 0.0
        %1284 = vmatpush.msra.mxu0 0.0
        %1285 = vmatpush.msra.mxu0 0.0
        %1286 = vmatpush.msra.mxu0 0.0
        %1287 = vmatpush.msra.mxu0 0.0
        %1288 = vmatpush.msra.mxu0 0.0
        %1289 = vmatpush.msra.mxu0 0.0
        %1290 = vmatpush.msra.mxu0 0.0
        %1291 = vmatpush.msra.mxu0 0.0
        %1292 = vmatpush.msra.mxu0 0.0
        %1293 = vmatpush.msra.mxu0 0.0
        %1294 = vmatpush.msra.mxu0 0.0
        %1295 = vmatpush.msra.mxu0 0.0
        %1296 = vmatpush.msra.mxu0 0.0
        %v1297 = vand.u32 %v1034, 4294901760
        %v1298 = vsub.f32 %v1034, %v1297
        %v1299 = vand.u32 %v1298, 4294901760
        %1300 = vmatpush.msra.mxu0 %v1299
        %v1301 = vand.u32 %v1030, 4294901760
        %1302 = vmatmul.f32.gmra.mxu0 %v1301
        %v1303 = vpop.f32.mrf.mxu0
        %v1304 = vadd.f32 %v1280, %v1303
        %1305 = vdwg.mxu0
        %1306 = vmatpush.msra.mxu0 0.0
        %1307 = vmatpush.msra.mxu0 0.0
        %1308 = vmatpush.msra.mxu0 0.0
        %1309 = vmatpush.msra.mxu0 0.0
        %1310 = vmatpush.msra.mxu0 0.0
        %1311 = vmatpush.msra.mxu0 0.0
        %1312 = vmatpush.msra.mxu0 0.0
        %1313 = vmatpush.msra.mxu0 0.0
        %1314 = vmatpush.msra.mxu0 0.0
        %1315 = vmatpush.msra.mxu0 0.0
        %1316 = vmatpush.msra.mxu0 0.0
        %1317 = vmatpush.msra.mxu0 0.0
        %1318 = vmatpush.msra.mxu0 0.0
        %1319 = vmatpush.msra.mxu0 0.0
        %1320 = vmatpush.msra.mxu0 0.0
        %v1321 = vand.u32 %v1034, 4294901760
        %1322 = vmatpush.msra.mxu0 %v1321
        %v1323 = vand.u32 %v1030, 4294901760
        %1324 = vmatmul.f32.gmra.mxu0 %v1323
        %v1325 = vpop.f32.mrf.mxu0
        %v1326 = vadd.f32 %v1304, %v1325
        %1327 = vdwg.mxu0
        %v1328 = vadd.f32 %v844, %v1180
        %v1329 = vadd.f32 %v990, %v1326
        %v1330 = vld [vmem:[#allocation2] sm:$0xff]
        %v1331 = vld [vmem:[#allocation2 + $0x8] sm:$0xf]
        %s1332 = scalar_lea.vmem %s3, 3
        %v1333 = vld [vmem:[%s1332] ss:$8 sm:$0x3]
        %v1335 = vperm.slane %v1333, 0
        %v1336 = vperm.slane %v1333, 1
        %v1337 = vrot.slane %v1336, 4
        %v1338 = vsel %vm348, %v1335, %v1337
        %1339 = vrot.lane.b32.xlu0 %v1338, 16
        %v1340 = vpop.permute.xlu0 %1339
        %v1341 = vrot.slane %v1340, 4
        %vm1342 = vcmask 130048
        %v1343 = vsel %vm1342, %v1341, %v1340
        %v1346 = vmul.f32 %v1330, %v1343
        %v1347 = vmul.f32 %v1331, %v1341
        %s1348 = scalar_lea.vmem %s270, 24 [#allocation3]
        %v1349 = vld [vmem:[%s1348] sm:$0xff]
        %1352 = vst [vmem:[#allocation1] ss:$2 sm:$0xff] %v1346
        %s1353 = scalar_lea.vmem [#allocation1], 16
        %1354 = vst [vmem:[%s1353] ss:$2 sm:$0xff] %v1347
        %v1355 = vld.sshfl [vmem:[#allocation1] sm:$0xff pattern:$0x75316420]
        %v1356 = vld.sshfl [vmem:[#allocation1 + $0x8] sm:$0xff pattern:$0x75316420]
        %v1357 = vld.sshfl [vmem:[#allocation1 + $0x10] sm:$0xff pattern:$0x75316420]
        %1358 = vrot.lane.b32.xlu0 %v1355, 112
        %v1359 = vpop.permute.xlu0 %1358
        %1360 = vrot.lane.b32.xlu0 %v1356, 112
        %v1361 = vpop.permute.xlu0 %1360
        %1362 = vrot.lane.b32.xlu0 %v1357, 112
        %v1363 = vpop.permute.xlu0 %1362
        %vm1364 = vcmask 916480
        %v1365 = vsel %vm1364, %v1359, %v1361
        %v1366 = vsel %vm1364, %v1361, %v1363
        %v1368 = vsel %vm389, %v1349, 0
        %v1370 = vsel %vm348, %v1365, 0
        %v1372 = vsel %vm348, %v1366, 0
        %1374 = vmatpush.msra.mxu0 0.0
        %1375 = vmatpush.msra.mxu0 0.0
        %1376 = vmatpush.msra.mxu0 0.0
        %1377 = vmatpush.msra.mxu0 0.0
        %1378 = vmatpush.msra.mxu0 0.0
        %1379 = vmatpush.msra.mxu0 0.0
        %1380 = vmatpush.msra.mxu0 0.0
        %1381 = vmatpush.msra.mxu0 0.0
        %1382 = vmatpush.msra.mxu0 0.0
        %1383 = vmatpush.msra.mxu0 0.0
        %1384 = vmatpush.msra.mxu0 0.0
        %1385 = vmatpush.msra.mxu0 0.0
        %1386 = vmatpush.msra.mxu0 0.0
        %1387 = vmatpush.msra.mxu0 0.0
        %1388 = vmatpush.msra.mxu0 0.0
        %v1389 = vand.u32 %v1370, 4294901760
        %1390 = vmatpush.msra.mxu0 %v1389
        %v1391 = vand.u32 %v1368, 4294901760
        %v1392 = vsub.f32 %v1368, %v1391
        %v1393 = vand.u32 %v1392, 4294901760
        %v1394 = vsub.f32 %v1392, %v1393
        %v1395 = vand.u32 %v1394, 4294901760
        %1396 = vmatmul.f32.gmra.mxu0 %v1395
        %v1397 = vpop.f32.mrf.mxu0
        %v1398 = vadd.f32 0.0, %v1397
        %1399 = vdwg.mxu0
        %1400 = vmatpush.msra.mxu0 0.0
        %1401 = vmatpush.msra.mxu0 0.0
        %1402 = vmatpush.msra.mxu0 0.0
        %1403 = vmatpush.msra.mxu0 0.0
        %1404 = vmatpush.msra.mxu0 0.0
        %1405 = vmatpush.msra.mxu0 0.0
        %1406 = vmatpush.msra.mxu0 0.0
        %1407 = vmatpush.msra.mxu0 0.0
        %1408 = vmatpush.msra.mxu0 0.0
        %1409 = vmatpush.msra.mxu0 0.0
        %1410 = vmatpush.msra.mxu0 0.0
        %1411 = vmatpush.msra.mxu0 0.0
        %1412 = vmatpush.msra.mxu0 0.0
        %1413 = vmatpush.msra.mxu0 0.0
        %1414 = vmatpush.msra.mxu0 0.0
        %v1415 = vand.u32 %v1370, 4294901760
        %v1416 = vsub.f32 %v1370, %v1415
        %v1417 = vand.u32 %v1416, 4294901760
        %v1418 = vsub.f32 %v1416, %v1417
        %v1419 = vand.u32 %v1418, 4294901760
        %1420 = vmatpush.msra.mxu0 %v1419
        %v1421 = vand.u32 %v1368, 4294901760
        %1422 = vmatmul.f32.gmra.mxu0 %v1421
        %v1423 = vpop.f32.mrf.mxu0
        %v1424 = vadd.f32 %v1398, %v1423
        %1425 = vdwg.mxu0
        %1426 = vmatpush.msra.mxu0 0.0
        %1427 = vmatpush.msra.mxu0 0.0
        %1428 = vmatpush.msra.mxu0 0.0
        %1429 = vmatpush.msra.mxu0 0.0
        %1430 = vmatpush.msra.mxu0 0.0
        %1431 = vmatpush.msra.mxu0 0.0
        %1432 = vmatpush.msra.mxu0 0.0
        %1433 = vmatpush.msra.mxu0 0.0
        %1434 = vmatpush.msra.mxu0 0.0
        %1435 = vmatpush.msra.mxu0 0.0
        %1436 = vmatpush.msra.mxu0 0.0
        %1437 = vmatpush.msra.mxu0 0.0
        %1438 = vmatpush.msra.mxu0 0.0
        %1439 = vmatpush.msra.mxu0 0.0
        %1440 = vmatpush.msra.mxu0 0.0
        %v1441 = vand.u32 %v1370, 4294901760
        %v1442 = vsub.f32 %v1370, %v1441
        %1443 = vmatpush.msra.mxu0 %v1442
        %v1444 = vand.u32 %v1368, 4294901760
        %v1445 = vsub.f32 %v1368, %v1444
        %1446 = vmatmul.f32.gmra.mxu0 %v1445
        %v1447 = vpop.f32.mrf.mxu0
        %v1448 = vadd.f32 %v1424, %v1447
        %1449 = vdwg.mxu0
        %1450 = vmatpush.msra.mxu0 0.0
        %1451 = vmatpush.msra.mxu0 0.0
        %1452 = vmatpush.msra.mxu0 0.0
        %1453 = vmatpush.msra.mxu0 0.0
        %1454 = vmatpush.msra.mxu0 0.0
        %1455 = vmatpush.msra.mxu0 0.0
        %1456 = vmatpush.msra.mxu0 0.0
        %1457 = vmatpush.msra.mxu0 0.0
        %1458 = vmatpush.msra.mxu0 0.0
        %1459 = vmatpush.msra.mxu0 0.0
        %1460 = vmatpush.msra.mxu0 0.0
        %1461 = vmatpush.msra.mxu0 0.0
        %1462 = vmatpush.msra.mxu0 0.0
        %1463 = vmatpush.msra.mxu0 0.0
        %1464 = vmatpush.msra.mxu0 0.0
        %v1465 = vand.u32 %v1370, 4294901760
        %1466 = vmatpush.msra.mxu0 %v1465
        %v1467 = vand.u32 %v1368, 4294901760
        %v1468 = vsub.f32 %v1368, %v1467
        %v1469 = vand.u32 %v1468, 4294901760
        %1470 = vmatmul.f32.gmra.mxu0 %v1469
        %v1471 = vpop.f32.mrf.mxu0
        %v1472 = vadd.f32 %v1448, %v1471
        %1473 = vdwg.mxu0
        %1474 = vmatpush.msra.mxu0 0.0
        %1475 = vmatpush.msra.mxu0 0.0
        %1476 = vmatpush.msra.mxu0 0.0
        %1477 = vmatpush.msra.mxu0 0.0
        %1478 = vmatpush.msra.mxu0 0.0
        %1479 = vmatpush.msra.mxu0 0.0
        %1480 = vmatpush.msra.mxu0 0.0
        %1481 = vmatpush.msra.mxu0 0.0
        %1482 = vmatpush.msra.mxu0 0.0
        %1483 = vmatpush.msra.mxu0 0.0
        %1484 = vmatpush.msra.mxu0 0.0
        %1485 = vmatpush.msra.mxu0 0.0
        %1486 = vmatpush.msra.mxu0 0.0
        %1487 = vmatpush.msra.mxu0 0.0
        %1488 = vmatpush.msra.mxu0 0.0
        %v1489 = vand.u32 %v1370, 4294901760
        %v1490 = vsub.f32 %v1370, %v1489
        %v1491 = vand.u32 %v1490, 4294901760
        %1492 = vmatpush.msra.mxu0 %v1491
        %v1493 = vand.u32 %v1368, 4294901760
        %1494 = vmatmul.f32.gmra.mxu0 %v1493
        %v1495 = vpop.f32.mrf.mxu0
        %v1496 = vadd.f32 %v1472, %v1495
        %1497 = vdwg.mxu0
        %1498 = vmatpush.msra.mxu0 0.0
        %1499 = vmatpush.msra.mxu0 0.0
        %1500 = vmatpush.msra.mxu0 0.0
        %1501 = vmatpush.msra.mxu0 0.0
        %1502 = vmatpush.msra.mxu0 0.0
        %1503 = vmatpush.msra.mxu0 0.0
        %1504 = vmatpush.msra.mxu0 0.0
        %1505 = vmatpush.msra.mxu0 0.0
        %1506 = vmatpush.msra.mxu0 0.0
        %1507 = vmatpush.msra.mxu0 0.0
        %1508 = vmatpush.msra.mxu0 0.0
        %1509 = vmatpush.msra.mxu0 0.0
        %1510 = vmatpush.msra.mxu0 0.0
        %1511 = vmatpush.msra.mxu0 0.0
        %1512 = vmatpush.msra.mxu0 0.0
        %v1513 = vand.u32 %v1370, 4294901760
        %1514 = vmatpush.msra.mxu0 %v1513
        %v1515 = vand.u32 %v1368, 4294901760
        %1516 = vmatmul.f32.gmra.mxu0 %v1515
        %v1517 = vpop.f32.mrf.mxu0
        %v1518 = vadd.f32 %v1496, %v1517
        %1519 = vdwg.mxu0
        %1520 = vmatpush.msra.mxu0 0.0
        %1521 = vmatpush.msra.mxu0 0.0
        %1522 = vmatpush.msra.mxu0 0.0
        %1523 = vmatpush.msra.mxu0 0.0
        %1524 = vmatpush.msra.mxu0 0.0
        %1525 = vmatpush.msra.mxu0 0.0
        %1526 = vmatpush.msra.mxu0 0.0
        %1527 = vmatpush.msra.mxu0 0.0
        %1528 = vmatpush.msra.mxu0 0.0
        %1529 = vmatpush.msra.mxu0 0.0
        %1530 = vmatpush.msra.mxu0 0.0
        %1531 = vmatpush.msra.mxu0 0.0
        %1532 = vmatpush.msra.mxu0 0.0
        %1533 = vmatpush.msra.mxu0 0.0
        %1534 = vmatpush.msra.mxu0 0.0
        %v1535 = vand.u32 %v1372, 4294901760
        %1536 = vmatpush.msra.mxu0 %v1535
        %v1537 = vand.u32 %v1368, 4294901760
        %v1538 = vsub.f32 %v1368, %v1537
        %v1539 = vand.u32 %v1538, 4294901760
        %v1540 = vsub.f32 %v1538, %v1539
        %v1541 = vand.u32 %v1540, 4294901760
        %1542 = vmatmul.f32.gmra.mxu0 %v1541
        %v1543 = vpop.f32.mrf.mxu0
        %v1544 = vadd.f32 0.0, %v1543
        %1545 = vdwg.mxu0
        %1546 = vmatpush.msra.mxu0 0.0
        %1547 = vmatpush.msra.mxu0 0.0
        %1548 = vmatpush.msra.mxu0 0.0
        %1549 = vmatpush.msra.mxu0 0.0
        %1550 = vmatpush.msra.mxu0 0.0
        %1551 = vmatpush.msra.mxu0 0.0
        %1552 = vmatpush.msra.mxu0 0.0
        %1553 = vmatpush.msra.mxu0 0.0
        %1554 = vmatpush.msra.mxu0 0.0
        %1555 = vmatpush.msra.mxu0 0.0
        %1556 = vmatpush.msra.mxu0 0.0
        %1557 = vmatpush.msra.mxu0 0.0
        %1558 = vmatpush.msra.mxu0 0.0
        %1559 = vmatpush.msra.mxu0 0.0
        %1560 = vmatpush.msra.mxu0 0.0
        %v1561 = vand.u32 %v1372, 4294901760
        %v1562 = vsub.f32 %v1372, %v1561
        %v1563 = vand.u32 %v1562, 4294901760
        %v1564 = vsub.f32 %v1562, %v1563
        %v1565 = vand.u32 %v1564, 4294901760
        %1566 = vmatpush.msra.mxu0 %v1565
        %v1567 = vand.u32 %v1368, 4294901760
        %1568 = vmatmul.f32.gmra.mxu0 %v1567
        %v1569 = vpop.f32.mrf.mxu0
        %v1570 = vadd.f32 %v1544, %v1569
        %1571 = vdwg.mxu0
        %1572 = vmatpush.msra.mxu0 0.0
        %1573 = vmatpush.msra.mxu0 0.0
        %1574 = vmatpush.msra.mxu0 0.0
        %1575 = vmatpush.msra.mxu0 0.0
        %1576 = vmatpush.msra.mxu0 0.0
        %1577 = vmatpush.msra.mxu0 0.0
        %1578 = vmatpush.msra.mxu0 0.0
        %1579 = vmatpush.msra.mxu0 0.0
        %1580 = vmatpush.msra.mxu0 0.0
        %1581 = vmatpush.msra.mxu0 0.0
        %1582 = vmatpush.msra.mxu0 0.0
        %1583 = vmatpush.msra.mxu0 0.0
        %1584 = vmatpush.msra.mxu0 0.0
        %1585 = vmatpush.msra.mxu0 0.0
        %1586 = vmatpush.msra.mxu0 0.0
        %v1587 = vand.u32 %v1372, 4294901760
        %v1588 = vsub.f32 %v1372, %v1587
        %1589 = vmatpush.msra.mxu0 %v1588
        %v1590 = vand.u32 %v1368, 4294901760
        %v1591 = vsub.f32 %v1368, %v1590
        %1592 = vmatmul.f32.gmra.mxu0 %v1591
        %v1593 = vpop.f32.mrf.mxu0
        %v1594 = vadd.f32 %v1570, %v1593
        %1595 = vdwg.mxu0
        %1596 = vmatpush.msra.mxu0 0.0
        %1597 = vmatpush.msra.mxu0 0.0
        %1598 = vmatpush.msra.mxu0 0.0
        %1599 = vmatpush.msra.mxu0 0.0
        %1600 = vmatpush.msra.mxu0 0.0
        %1601 = vmatpush.msra.mxu0 0.0
        %1602 = vmatpush.msra.mxu0 0.0
        %1603 = vmatpush.msra.mxu0 0.0
        %1604 = vmatpush.msra.mxu0 0.0
        %1605 = vmatpush.msra.mxu0 0.0
        %1606 = vmatpush.msra.mxu0 0.0
        %1607 = vmatpush.msra.mxu0 0.0
        %1608 = vmatpush.msra.mxu0 0.0
        %1609 = vmatpush.msra.mxu0 0.0
        %1610 = vmatpush.msra.mxu0 0.0
        %v1611 = vand.u32 %v1372, 4294901760
        %1612 = vmatpush.msra.mxu0 %v1611
        %v1613 = vand.u32 %v1368, 4294901760
        %v1614 = vsub.f32 %v1368, %v1613
        %v1615 = vand.u32 %v1614, 4294901760
        %1616 = vmatmul.f32.gmra.mxu0 %v1615
        %v1617 = vpop.f32.mrf.mxu0
        %v1618 = vadd.f32 %v1594, %v1617
        %1619 = vdwg.mxu0
        %1620 = vmatpush.msra.mxu0 0.0
        %1621 = vmatpush.msra.mxu0 0.0
        %1622 = vmatpush.msra.mxu0 0.0
        %1623 = vmatpush.msra.mxu0 0.0
        %1624 = vmatpush.msra.mxu0 0.0
        %1625 = vmatpush.msra.mxu0 0.0
        %1626 = vmatpush.msra.mxu0 0.0
        %1627 = vmatpush.msra.mxu0 0.0
        %1628 = vmatpush.msra.mxu0 0.0
        %1629 = vmatpush.msra.mxu0 0.0
        %1630 = vmatpush.msra.mxu0 0.0
        %1631 = vmatpush.msra.mxu0 0.0
        %1632 = vmatpush.msra.mxu0 0.0
        %1633 = vmatpush.msra.mxu0 0.0
        %1634 = vmatpush.msra.mxu0 0.0
        %v1635 = vand.u32 %v1372, 4294901760
        %v1636 = vsub.f32 %v1372, %v1635
        %v1637 = vand.u32 %v1636, 4294901760
        %1638 = vmatpush.msra.mxu0 %v1637
        %v1639 = vand.u32 %v1368, 4294901760
        %1640 = vmatmul.f32.gmra.mxu0 %v1639
        %v1641 = vpop.f32.mrf.mxu0
        %v1642 = vadd.f32 %v1618, %v1641
        %1643 = vdwg.mxu0
        %1644 = vmatpush.msra.mxu0 0.0
        %1645 = vmatpush.msra.mxu0 0.0
        %1646 = vmatpush.msra.mxu0 0.0
        %1647 = vmatpush.msra.mxu0 0.0
        %1648 = vmatpush.msra.mxu0 0.0
        %1649 = vmatpush.msra.mxu0 0.0
        %1650 = vmatpush.msra.mxu0 0.0
        %1651 = vmatpush.msra.mxu0 0.0
        %1652 = vmatpush.msra.mxu0 0.0
        %1653 = vmatpush.msra.mxu0 0.0
        %1654 = vmatpush.msra.mxu0 0.0
        %1655 = vmatpush.msra.mxu0 0.0
        %1656 = vmatpush.msra.mxu0 0.0
        %1657 = vmatpush.msra.mxu0 0.0
        %1658 = vmatpush.msra.mxu0 0.0
        %v1659 = vand.u32 %v1372, 4294901760
        %1660 = vmatpush.msra.mxu0 %v1659
        %v1661 = vand.u32 %v1368, 4294901760
        %1662 = vmatmul.f32.gmra.mxu0 %v1661
        %v1663 = vpop.f32.mrf.mxu0
        %v1664 = vadd.f32 %v1642, %v1663
        %1665 = vdwg.mxu0
        %v1666 = vadd.f32 %v1328, %v1518
        %v1667 = vadd.f32 %v1329, %v1664
        %v1668 = vld [vmem:[#allocation2] sm:$0xff]
        %v1669 = vld [vmem:[#allocation2 + $0x8] sm:$0xf]
        %s1670 = scalar_lea.vmem %s270, 32 [#allocation3]
        %v1671 = vld [vmem:[%s1670] sm:$0xff]
        %1674 = vst [vmem:[#allocation1] ss:$2 sm:$0xff] %v1668
        %s1675 = scalar_lea.vmem [#allocation1], 16
        %1676 = vst [vmem:[%s1675] ss:$2 sm:$0xff] %v1669
        %v1677 = vld.sshfl [vmem:[#allocation1] sm:$0xff pattern:$0x75316420]
        %v1678 = vld.sshfl [vmem:[#allocation1 + $0x8] sm:$0xff pattern:$0x75316420]
        %v1679 = vld.sshfl [vmem:[#allocation1 + $0x10] sm:$0xff pattern:$0x75316420]
        %1680 = vrot.lane.b32.xlu0 %v1677, 111
        %v1681 = vpop.permute.xlu0 %1680
        %1682 = vrot.lane.b32.xlu0 %v1678, 111
        %v1683 = vpop.permute.xlu0 %1682
        %1684 = vrot.lane.b32.xlu0 %v1679, 111
        %v1685 = vpop.permute.xlu0 %1684
        %vm1686 = vcmask 908288
        %v1687 = vsel %vm1686, %v1681, %v1683
        %v1688 = vsel %vm1686, %v1683, %v1685
        %v1690 = vsel %vm389, %v1671, 0
        %v1692 = vsel %vm348, %v1687, 0
        %v1694 = vsel %vm348, %v1688, 0
        %1696 = vmatpush.msra.mxu0 0.0
        %1697 = vmatpush.msra.mxu0 0.0
        %1698 = vmatpush.msra.mxu0 0.0
        %1699 = vmatpush.msra.mxu0 0.0
        %1700 = vmatpush.msra.mxu0 0.0
        %1701 = vmatpush.msra.mxu0 0.0
        %1702 = vmatpush.msra.mxu0 0.0
        %1703 = vmatpush.msra.mxu0 0.0
        %1704 = vmatpush.msra.mxu0 0.0
        %1705 = vmatpush.msra.mxu0 0.0
        %1706 = vmatpush.msra.mxu0 0.0
        %1707 = vmatpush.msra.mxu0 0.0
        %1708 = vmatpush.msra.mxu0 0.0
        %1709 = vmatpush.msra.mxu0 0.0
        %1710 = vmatpush.msra.mxu0 0.0
        %v1711 = vand.u32 %v1692, 4294901760
        %1712 = vmatpush.msra.mxu0 %v1711
        %v1713 = vand.u32 %v1690, 4294901760
        %v1714 = vsub.f32 %v1690, %v1713
        %v1715 = vand.u32 %v1714, 4294901760
        %v1716 = vsub.f32 %v1714, %v1715
        %v1717 = vand.u32 %v1716, 4294901760
        %1718 = vmatmul.f32.gmra.mxu0 %v1717
        %v1719 = vpop.f32.mrf.mxu0
        %v1720 = vadd.f32 0.0, %v1719
        %1721 = vdwg.mxu0
        %1722 = vmatpush.msra.mxu0 0.0
        %1723 = vmatpush.msra.mxu0 0.0
        %1724 = vmatpush.msra.mxu0 0.0
        %1725 = vmatpush.msra.mxu0 0.0
        %1726 = vmatpush.msra.mxu0 0.0
        %1727 = vmatpush.msra.mxu0 0.0
        %1728 = vmatpush.msra.mxu0 0.0
        %1729 = vmatpush.msra.mxu0 0.0
        %1730 = vmatpush.msra.mxu0 0.0
        %1731 = vmatpush.msra.mxu0 0.0
        %1732 = vmatpush.msra.mxu0 0.0
        %1733 = vmatpush.msra.mxu0 0.0
        %1734 = vmatpush.msra.mxu0 0.0
        %1735 = vmatpush.msra.mxu0 0.0
        %1736 = vmatpush.msra.mxu0 0.0
        %v1737 = vand.u32 %v1692, 4294901760
        %v1738 = vsub.f32 %v1692, %v1737
        %v1739 = vand.u32 %v1738, 4294901760
        %v1740 = vsub.f32 %v1738, %v1739
        %v1741 = vand.u32 %v1740, 4294901760
        %1742 = vmatpush.msra.mxu0 %v1741
        %v1743 = vand.u32 %v1690, 4294901760
        %1744 = vmatmul.f32.gmra.mxu0 %v1743
        %v1745 = vpop.f32.mrf.mxu0
        %v1746 = vadd.f32 %v1720, %v1745
        %1747 = vdwg.mxu0
        %1748 = vmatpush.msra.mxu0 0.0
        %1749 = vmatpush.msra.mxu0 0.0
        %1750 = vmatpush.msra.mxu0 0.0
        %1751 = vmatpush.msra.mxu0 0.0
        %1752 = vmatpush.msra.mxu0 0.0
        %1753 = vmatpush.msra.mxu0 0.0
        %1754 = vmatpush.msra.mxu0 0.0
        %1755 = vmatpush.msra.mxu0 0.0
        %1756 = vmatpush.msra.mxu0 0.0
        %1757 = vmatpush.msra.mxu0 0.0
        %1758 = vmatpush.msra.mxu0 0.0
        %1759 = vmatpush.msra.mxu0 0.0
        %1760 = vmatpush.msra.mxu0 0.0
        %1761 = vmatpush.msra.mxu0 0.0
        %1762 = vmatpush.msra.mxu0 0.0
        %v1763 = vand.u32 %v1692, 4294901760
        %v1764 = vsub.f32 %v1692, %v1763
        %1765 = vmatpush.msra.mxu0 %v1764
        %v1766 = vand.u32 %v1690, 4294901760
        %v1767 = vsub.f32 %v1690, %v1766
        %1768 = vmatmul.f32.gmra.mxu0 %v1767
        %v1769 = vpop.f32.mrf.mxu0
        %v1770 = vadd.f32 %v1746, %v1769
        %1771 = vdwg.mxu0
        %1772 = vmatpush.msra.mxu0 0.0
        %1773 = vmatpush.msra.mxu0 0.0
        %1774 = vmatpush.msra.mxu0 0.0
        %1775 = vmatpush.msra.mxu0 0.0
        %1776 = vmatpush.msra.mxu0 0.0
        %1777 = vmatpush.msra.mxu0 0.0
        %1778 = vmatpush.msra.mxu0 0.0
        %1779 = vmatpush.msra.mxu0 0.0
        %1780 = vmatpush.msra.mxu0 0.0
        %1781 = vmatpush.msra.mxu0 0.0
        %1782 = vmatpush.msra.mxu0 0.0
        %1783 = vmatpush.msra.mxu0 0.0
        %1784 = vmatpush.msra.mxu0 0.0
        %1785 = vmatpush.msra.mxu0 0.0
        %1786 = vmatpush.msra.mxu0 0.0
        %v1787 = vand.u32 %v1692, 4294901760
        %1788 = vmatpush.msra.mxu0 %v1787
        %v1789 = vand.u32 %v1690, 4294901760
        %v1790 = vsub.f32 %v1690, %v1789
        %v1791 = vand.u32 %v1790, 4294901760
        %1792 = vmatmul.f32.gmra.mxu0 %v1791
        %v1793 = vpop.f32.mrf.mxu0
        %v1794 = vadd.f32 %v1770, %v1793
        %1795 = vdwg.mxu0
        %1796 = vmatpush.msra.mxu0 0.0
        %1797 = vmatpush.msra.mxu0 0.0
        %1798 = vmatpush.msra.mxu0 0.0
        %1799 = vmatpush.msra.mxu0 0.0
        %1800 = vmatpush.msra.mxu0 0.0
        %1801 = vmatpush.msra.mxu0 0.0
        %1802 = vmatpush.msra.mxu0 0.0
        %1803 = vmatpush.msra.mxu0 0.0
        %1804 = vmatpush.msra.mxu0 0.0
        %1805 = vmatpush.msra.mxu0 0.0
        %1806 = vmatpush.msra.mxu0 0.0
        %1807 = vmatpush.msra.mxu0 0.0
        %1808 = vmatpush.msra.mxu0 0.0
        %1809 = vmatpush.msra.mxu0 0.0
        %1810 = vmatpush.msra.mxu0 0.0
        %v1811 = vand.u32 %v1692, 4294901760
        %v1812 = vsub.f32 %v1692, %v1811
        %v1813 = vand.u32 %v1812, 4294901760
        %1814 = vmatpush.msra.mxu0 %v1813
        %v1815 = vand.u32 %v1690, 4294901760
        %1816 = vmatmul.f32.gmra.mxu0 %v1815
        %v1817 = vpop.f32.mrf.mxu0
        %v1818 = vadd.f32 %v1794, %v1817
        %1819 = vdwg.mxu0
        %1820 = vmatpush.msra.mxu0 0.0
        %1821 = vmatpush.msra.mxu0 0.0
        %1822 = vmatpush.msra.mxu0 0.0
        %1823 = vmatpush.msra.mxu0 0.0
        %1824 = vmatpush.msra.mxu0 0.0
        %1825 = vmatpush.msra.mxu0 0.0
        %1826 = vmatpush.msra.mxu0 0.0
        %1827 = vmatpush.msra.mxu0 0.0
        %1828 = vmatpush.msra.mxu0 0.0
        %1829 = vmatpush.msra.mxu0 0.0
        %1830 = vmatpush.msra.mxu0 0.0
        %1831 = vmatpush.msra.mxu0 0.0
        %1832 = vmatpush.msra.mxu0 0.0
        %1833 = vmatpush.msra.mxu0 0.0
        %1834 = vmatpush.msra.mxu0 0.0
        %v1835 = vand.u32 %v1692, 4294901760
        %1836 = vmatpush.msra.mxu0 %v1835
        %v1837 = vand.u32 %v1690, 4294901760
        %1838 = vmatmul.f32.gmra.mxu0 %v1837
        %v1839 = vpop.f32.mrf.mxu0
        %v1840 = vadd.f32 %v1818, %v1839
        %1841 = vdwg.mxu0
        %1842 = vmatpush.msra.mxu0 0.0
        %1843 = vmatpush.msra.mxu0 0.0
        %1844 = vmatpush.msra.mxu0 0.0
        %1845 = vmatpush.msra.mxu0 0.0
        %1846 = vmatpush.msra.mxu0 0.0
        %1847 = vmatpush.msra.mxu0 0.0
        %1848 = vmatpush.msra.mxu0 0.0
        %1849 = vmatpush.msra.mxu0 0.0
        %1850 = vmatpush.msra.mxu0 0.0
        %1851 = vmatpush.msra.mxu0 0.0
        %1852 = vmatpush.msra.mxu0 0.0
        %1853 = vmatpush.msra.mxu0 0.0
        %1854 = vmatpush.msra.mxu0 0.0
        %1855 = vmatpush.msra.mxu0 0.0
        %1856 = vmatpush.msra.mxu0 0.0
        %v1857 = vand.u32 %v1694, 4294901760
        %1858 = vmatpush.msra.mxu0 %v1857
        %v1859 = vand.u32 %v1690, 4294901760
        %v1860 = vsub.f32 %v1690, %v1859
        %v1861 = vand.u32 %v1860, 4294901760
        %v1862 = vsub.f32 %v1860, %v1861
        %v1863 = vand.u32 %v1862, 4294901760
        %1864 = vmatmul.f32.gmra.mxu0 %v1863
        %v1865 = vpop.f32.mrf.mxu0
        %v1866 = vadd.f32 0.0, %v1865
        %1867 = vdwg.mxu0
        %1868 = vmatpush.msra.mxu0 0.0
        %1869 = vmatpush.msra.mxu0 0.0
        %1870 = vmatpush.msra.mxu0 0.0
        %1871 = vmatpush.msra.mxu0 0.0
        %1872 = vmatpush.msra.mxu0 0.0
        %1873 = vmatpush.msra.mxu0 0.0
        %1874 = vmatpush.msra.mxu0 0.0
        %1875 = vmatpush.msra.mxu0 0.0
        %1876 = vmatpush.msra.mxu0 0.0
        %1877 = vmatpush.msra.mxu0 0.0
        %1878 = vmatpush.msra.mxu0 0.0
        %1879 = vmatpush.msra.mxu0 0.0
        %1880 = vmatpush.msra.mxu0 0.0
        %1881 = vmatpush.msra.mxu0 0.0
        %1882 = vmatpush.msra.mxu0 0.0
        %v1883 = vand.u32 %v1694, 4294901760
        %v1884 = vsub.f32 %v1694, %v1883
        %v1885 = vand.u32 %v1884, 4294901760
        %v1886 = vsub.f32 %v1884, %v1885
        %v1887 = vand.u32 %v1886, 4294901760
        %1888 = vmatpush.msra.mxu0 %v1887
        %v1889 = vand.u32 %v1690, 4294901760
        %1890 = vmatmul.f32.gmra.mxu0 %v1889
        %v1891 = vpop.f32.mrf.mxu0
        %v1892 = vadd.f32 %v1866, %v1891
        %1893 = vdwg.mxu0
        %1894 = vmatpush.msra.mxu0 0.0
        %1895 = vmatpush.msra.mxu0 0.0
        %1896 = vmatpush.msra.mxu0 0.0
        %1897 = vmatpush.msra.mxu0 0.0
        %1898 = vmatpush.msra.mxu0 0.0
        %1899 = vmatpush.msra.mxu0 0.0
        %1900 = vmatpush.msra.mxu0 0.0
        %1901 = vmatpush.msra.mxu0 0.0
        %1902 = vmatpush.msra.mxu0 0.0
        %1903 = vmatpush.msra.mxu0 0.0
        %1904 = vmatpush.msra.mxu0 0.0
        %1905 = vmatpush.msra.mxu0 0.0
        %1906 = vmatpush.msra.mxu0 0.0
        %1907 = vmatpush.msra.mxu0 0.0
        %1908 = vmatpush.msra.mxu0 0.0
        %v1909 = vand.u32 %v1694, 4294901760
        %v1910 = vsub.f32 %v1694, %v1909
        %1911 = vmatpush.msra.mxu0 %v1910
        %v1912 = vand.u32 %v1690, 4294901760
        %v1913 = vsub.f32 %v1690, %v1912
        %1914 = vmatmul.f32.gmra.mxu0 %v1913
        %v1915 = vpop.f32.mrf.mxu0
        %v1916 = vadd.f32 %v1892, %v1915
        %1917 = vdwg.mxu0
        %1918 = vmatpush.msra.mxu0 0.0
        %1919 = vmatpush.msra.mxu0 0.0
        %1920 = vmatpush.msra.mxu0 0.0
        %1921 = vmatpush.msra.mxu0 0.0
        %1922 = vmatpush.msra.mxu0 0.0
        %1923 = vmatpush.msra.mxu0 0.0
        %1924 = vmatpush.msra.mxu0 0.0
        %1925 = vmatpush.msra.mxu0 0.0
        %1926 = vmatpush.msra.mxu0 0.0
        %1927 = vmatpush.msra.mxu0 0.0
        %1928 = vmatpush.msra.mxu0 0.0
        %1929 = vmatpush.msra.mxu0 0.0
        %1930 = vmatpush.msra.mxu0 0.0
        %1931 = vmatpush.msra.mxu0 0.0
        %1932 = vmatpush.msra.mxu0 0.0
        %v1933 = vand.u32 %v1694, 4294901760
        %1934 = vmatpush.msra.mxu0 %v1933
        %v1935 = vand.u32 %v1690, 4294901760
        %v1936 = vsub.f32 %v1690, %v1935
        %v1937 = vand.u32 %v1936, 4294901760
        %1938 = vmatmul.f32.gmra.mxu0 %v1937
        %v1939 = vpop.f32.mrf.mxu0
        %v1940 = vadd.f32 %v1916, %v1939
        %1941 = vdwg.mxu0
        %1942 = vmatpush.msra.mxu0 0.0
        %1943 = vmatpush.msra.mxu0 0.0
        %1944 = vmatpush.msra.mxu0 0.0
        %1945 = vmatpush.msra.mxu0 0.0
        %1946 = vmatpush.msra.mxu0 0.0
        %1947 = vmatpush.msra.mxu0 0.0
        %1948 = vmatpush.msra.mxu0 0.0
        %1949 = vmatpush.msra.mxu0 0.0
        %1950 = vmatpush.msra.mxu0 0.0
        %1951 = vmatpush.msra.mxu0 0.0
        %1952 = vmatpush.msra.mxu0 0.0
        %1953 = vmatpush.msra.mxu0 0.0
        %1954 = vmatpush.msra.mxu0 0.0
        %1955 = vmatpush.msra.mxu0 0.0
        %1956 = vmatpush.msra.mxu0 0.0
        %v1957 = vand.u32 %v1694, 4294901760
        %v1958 = vsub.f32 %v1694, %v1957
        %v1959 = vand.u32 %v1958, 4294901760
        %1960 = vmatpush.msra.mxu0 %v1959
        %v1961 = vand.u32 %v1690, 4294901760
        %1962 = vmatmul.f32.gmra.mxu0 %v1961
        %v1963 = vpop.f32.mrf.mxu0
        %v1964 = vadd.f32 %v1940, %v1963
        %1965 = vdwg.mxu0
        %1966 = vmatpush.msra.mxu0 0.0
        %1967 = vmatpush.msra.mxu0 0.0
        %1968 = vmatpush.msra.mxu0 0.0
        %1969 = vmatpush.msra.mxu0 0.0
        %1970 = vmatpush.msra.mxu0 0.0
        %1971 = vmatpush.msra.mxu0 0.0
        %1972 = vmatpush.msra.mxu0 0.0
        %1973 = vmatpush.msra.mxu0 0.0
        %1974 = vmatpush.msra.mxu0 0.0
        %1975 = vmatpush.msra.mxu0 0.0
        %1976 = vmatpush.msra.mxu0 0.0
        %1977 = vmatpush.msra.mxu0 0.0
        %1978 = vmatpush.msra.mxu0 0.0
        %1979 = vmatpush.msra.mxu0 0.0
        %1980 = vmatpush.msra.mxu0 0.0
        %v1981 = vand.u32 %v1694, 4294901760
        %1982 = vmatpush.msra.mxu0 %v1981
        %v1983 = vand.u32 %v1690, 4294901760
        %1984 = vmatmul.f32.gmra.mxu0 %v1983
        %v1985 = vpop.f32.mrf.mxu0
        %v1986 = vadd.f32 %v1964, %v1985
        %1987 = vdwg.mxu0
        %v1988 = vadd.f32 %v1666, %v1840
        %v1989 = vadd.f32 %v1667, %v1986
        %v1990 = vld [vmem:[#allocation2] sm:$0xff]
        %v1991 = vld [vmem:[#allocation2 + $0x8] sm:$0xf]
        %s1992 = scalar_lea.vmem %s3, 5
        %v1993 = vld [vmem:[%s1992] ss:$8 sm:$0x3]
        %v1995 = vperm.slane %v1993, 0
        %v1996 = vperm.slane %v1993, 1
        %v1997 = vrot.slane %v1996, 4
        %v1998 = vsel %vm348, %v1995, %v1997
        %1999 = vrot.lane.b32.xlu0 %v1998, 18
        %v2000 = vpop.permute.xlu0 %1999
        %v2001 = vrot.slane %v2000, 4
        %vm2002 = vcmask 146432
        %v2003 = vsel %vm2002, %v2001, %v2000
        %v2006 = vmul.f32 %v1990, %v2003
        %v2007 = vmul.f32 %v1991, %v2001
        %s2008 = scalar_lea.vmem %s270, 40 [#allocation3]
        %v2009 = vld [vmem:[%s2008] sm:$0xff]
        %2012 = vst [vmem:[#allocation1] ss:$2 sm:$0xff] %v2006
        %s2013 = scalar_lea.vmem [#allocation1], 16
        %2014 = vst [vmem:[%s2013] ss:$2 sm:$0xff] %v2007
        %v2015 = vld.sshfl [vmem:[#allocation1] sm:$0xff pattern:$0x75316420]
        %v2016 = vld.sshfl [vmem:[#allocation1 + $0x8] sm:$0xff pattern:$0x75316420]
        %v2017 = vld.sshfl [vmem:[#allocation1 + $0x10] sm:$0xff pattern:$0x75316420]
        %2018 = vrot.lane.b32.xlu0 %v2015, 110
        %v2019 = vpop.permute.xlu0 %2018
        %2020 = vrot.lane.b32.xlu0 %v2016, 110
        %v2021 = vpop.permute.xlu0 %2020
        %2022 = vrot.lane.b32.xlu0 %v2017, 110
        %v2023 = vpop.permute.xlu0 %2022
        %vm2024 = vcmask 900096
        %v2025 = vsel %vm2024, %v2019, %v2021
        %v2026 = vsel %vm2024, %v2021, %v2023
        %v2028 = vsel %vm389, %v2009, 0
        %v2030 = vsel %vm348, %v2025, 0
        %v2032 = vsel %vm348, %v2026, 0
        %2034 = vmatpush.msra.mxu0 0.0
        %2035 = vmatpush.msra.mxu0 0.0
        %2036 = vmatpush.msra.mxu0 0.0
        %2037 = vmatpush.msra.mxu0 0.0
        %2038 = vmatpush.msra.mxu0 0.0
        %2039 = vmatpush.msra.mxu0 0.0
        %2040 = vmatpush.msra.mxu0 0.0
        %2041 = vmatpush.msra.mxu0 0.0
        %2042 = vmatpush.msra.mxu0 0.0
        %2043 = vmatpush.msra.mxu0 0.0
        %2044 = vmatpush.msra.mxu0 0.0
        %2045 = vmatpush.msra.mxu0 0.0
        %2046 = vmatpush.msra.mxu0 0.0
        %2047 = vmatpush.msra.mxu0 0.0
        %2048 = vmatpush.msra.mxu0 0.0
        %v2049 = vand.u32 %v2030, 4294901760
        %2050 = vmatpush.msra.mxu0 %v2049
        %v2051 = vand.u32 %v2028, 4294901760
        %v2052 = vsub.f32 %v2028, %v2051
        %v2053 = vand.u32 %v2052, 4294901760
        %v2054 = vsub.f32 %v2052, %v2053
        %v2055 = vand.u32 %v2054, 4294901760
        %2056 = vmatmul.f32.gmra.mxu0 %v2055
        %v2057 = vpop.f32.mrf.mxu0
        %v2058 = vadd.f32 0.0, %v2057
        %2059 = vdwg.mxu0
        %2060 = vmatpush.msra.mxu0 0.0
        %2061 = vmatpush.msra.mxu0 0.0
        %2062 = vmatpush.msra.mxu0 0.0
        %2063 = vmatpush.msra.mxu0 0.0
        %2064 = vmatpush.msra.mxu0 0.0
        %2065 = vmatpush.msra.mxu0 0.0
        %2066 = vmatpush.msra.mxu0 0.0
        %2067 = vmatpush.msra.mxu0 0.0
        %2068 = vmatpush.msra.mxu0 0.0
        %2069 = vmatpush.msra.mxu0 0.0
        %2070 = vmatpush.msra.mxu0 0.0
        %2071 = vmatpush.msra.mxu0 0.0
        %2072 = vmatpush.msra.mxu0 0.0
        %2073 = vmatpush.msra.mxu0 0.0
        %2074 = vmatpush.msra.mxu0 0.0
        %v2075 = vand.u32 %v2030, 4294901760
        %v2076 = vsub.f32 %v2030, %v2075
        %v2077 = vand.u32 %v2076, 4294901760
        %v2078 = vsub.f32 %v2076, %v2077
        %v2079 = vand.u32 %v2078, 4294901760
        %2080 = vmatpush.msra.mxu0 %v2079
        %v2081 = vand.u32 %v2028, 4294901760
        %2082 = vmatmul.f32.gmra.mxu0 %v2081
        %v2083 = vpop.f32.mrf.mxu0
        %v2084 = vadd.f32 %v2058, %v2083
        %2085 = vdwg.mxu0
        %2086 = vmatpush.msra.mxu0 0.0
        %2087 = vmatpush.msra.mxu0 0.0
        %2088 = vmatpush.msra.mxu0 0.0
        %2089 = vmatpush.msra.mxu0 0.0
        %2090 = vmatpush.msra.mxu0 0.0
        %2091 = vmatpush.msra.mxu0 0.0
        %2092 = vmatpush.msra.mxu0 0.0
        %2093 = vmatpush.msra.mxu0 0.0
        %2094 = vmatpush.msra.mxu0 0.0
        %2095 = vmatpush.msra.mxu0 0.0
        %2096 = vmatpush.msra.mxu0 0.0
        %2097 = vmatpush.msra.mxu0 0.0
        %2098 = vmatpush.msra.mxu0 0.0
        %2099 = vmatpush.msra.mxu0 0.0
        %2100 = vmatpush.msra.mxu0 0.0
        %v2101 = vand.u32 %v2030, 4294901760
        %v2102 = vsub.f32 %v2030, %v2101
        %2103 = vmatpush.msra.mxu0 %v2102
        %v2104 = vand.u32 %v2028, 4294901760
        %v2105 = vsub.f32 %v2028, %v2104
        %2106 = vmatmul.f32.gmra.mxu0 %v2105
        %v2107 = vpop.f32.mrf.mxu0
        %v2108 = vadd.f32 %v2084, %v2107
        %2109 = vdwg.mxu0
        %2110 = vmatpush.msra.mxu0 0.0
        %2111 = vmatpush.msra.mxu0 0.0
        %2112 = vmatpush.msra.mxu0 0.0
        %2113 = vmatpush.msra.mxu0 0.0
        %2114 = vmatpush.msra.mxu0 0.0
        %2115 = vmatpush.msra.mxu0 0.0
        %2116 = vmatpush.msra.mxu0 0.0
        %2117 = vmatpush.msra.mxu0 0.0
        %2118 = vmatpush.msra.mxu0 0.0
        %2119 = vmatpush.msra.mxu0 0.0
        %2120 = vmatpush.msra.mxu0 0.0
        %2121 = vmatpush.msra.mxu0 0.0
        %2122 = vmatpush.msra.mxu0 0.0
        %2123 = vmatpush.msra.mxu0 0.0
        %2124 = vmatpush.msra.mxu0 0.0
        %v2125 = vand.u32 %v2030, 4294901760
        %2126 = vmatpush.msra.mxu0 %v2125
        %v2127 = vand.u32 %v2028, 4294901760
        %v2128 = vsub.f32 %v2028, %v2127
        %v2129 = vand.u32 %v2128, 4294901760
        %2130 = vmatmul.f32.gmra.mxu0 %v2129
        %v2131 = vpop.f32.mrf.mxu0
        %v2132 = vadd.f32 %v2108, %v2131
        %2133 = vdwg.mxu0
        %2134 = vmatpush.msra.mxu0 0.0
        %2135 = vmatpush.msra.mxu0 0.0
        %2136 = vmatpush.msra.mxu0 0.0
        %2137 = vmatpush.msra.mxu0 0.0
        %2138 = vmatpush.msra.mxu0 0.0
        %2139 = vmatpush.msra.mxu0 0.0
        %2140 = vmatpush.msra.mxu0 0.0
        %2141 = vmatpush.msra.mxu0 0.0
        %2142 = vmatpush.msra.mxu0 0.0
        %2143 = vmatpush.msra.mxu0 0.0
        %2144 = vmatpush.msra.mxu0 0.0
        %2145 = vmatpush.msra.mxu0 0.0
        %2146 = vmatpush.msra.mxu0 0.0
        %2147 = vmatpush.msra.mxu0 0.0
        %2148 = vmatpush.msra.mxu0 0.0
        %v2149 = vand.u32 %v2030, 4294901760
        %v2150 = vsub.f32 %v2030, %v2149
        %v2151 = vand.u32 %v2150, 4294901760
        %2152 = vmatpush.msra.mxu0 %v2151
        %v2153 = vand.u32 %v2028, 4294901760
        %2154 = vmatmul.f32.gmra.mxu0 %v2153
        %v2155 = vpop.f32.mrf.mxu0
        %v2156 = vadd.f32 %v2132, %v2155
        %2157 = vdwg.mxu0
        %2158 = vmatpush.msra.mxu0 0.0
        %2159 = vmatpush.msra.mxu0 0.0
        %2160 = vmatpush.msra.mxu0 0.0
        %2161 = vmatpush.msra.mxu0 0.0
        %2162 = vmatpush.msra.mxu0 0.0
        %2163 = vmatpush.msra.mxu0 0.0
        %2164 = vmatpush.msra.mxu0 0.0
        %2165 = vmatpush.msra.mxu0 0.0
        %2166 = vmatpush.msra.mxu0 0.0
        %2167 = vmatpush.msra.mxu0 0.0
        %2168 = vmatpush.msra.mxu0 0.0
        %2169 = vmatpush.msra.mxu0 0.0
        %2170 = vmatpush.msra.mxu0 0.0
        %2171 = vmatpush.msra.mxu0 0.0
        %2172 = vmatpush.msra.mxu0 0.0
        %v2173 = vand.u32 %v2030, 4294901760
        %2174 = vmatpush.msra.mxu0 %v2173
        %v2175 = vand.u32 %v2028, 4294901760
        %2176 = vmatmul.f32.gmra.mxu0 %v2175
        %v2177 = vpop.f32.mrf.mxu0
        %v2178 = vadd.f32 %v2156, %v2177
        %2179 = vdwg.mxu0
        %2180 = vmatpush.msra.mxu0 0.0
        %2181 = vmatpush.msra.mxu0 0.0
        %2182 = vmatpush.msra.mxu0 0.0
        %2183 = vmatpush.msra.mxu0 0.0
        %2184 = vmatpush.msra.mxu0 0.0
        %2185 = vmatpush.msra.mxu0 0.0
        %2186 = vmatpush.msra.mxu0 0.0
        %2187 = vmatpush.msra.mxu0 0.0
        %2188 = vmatpush.msra.mxu0 0.0
        %2189 = vmatpush.msra.mxu0 0.0
        %2190 = vmatpush.msra.mxu0 0.0
        %2191 = vmatpush.msra.mxu0 0.0
        %2192 = vmatpush.msra.mxu0 0.0
        %2193 = vmatpush.msra.mxu0 0.0
        %2194 = vmatpush.msra.mxu0 0.0
        %v2195 = vand.u32 %v2032, 4294901760
        %2196 = vmatpush.msra.mxu0 %v2195
        %v2197 = vand.u32 %v2028, 4294901760
        %v2198 = vsub.f32 %v2028, %v2197
        %v2199 = vand.u32 %v2198, 4294901760
        %v2200 = vsub.f32 %v2198, %v2199
        %v2201 = vand.u32 %v2200, 4294901760
        %2202 = vmatmul.f32.gmra.mxu0 %v2201
        %v2203 = vpop.f32.mrf.mxu0
        %v2204 = vadd.f32 0.0, %v2203
        %2205 = vdwg.mxu0
        %2206 = vmatpush.msra.mxu0 0.0
        %2207 = vmatpush.msra.mxu0 0.0
        %2208 = vmatpush.msra.mxu0 0.0
        %2209 = vmatpush.msra.mxu0 0.0
        %2210 = vmatpush.msra.mxu0 0.0
        %2211 = vmatpush.msra.mxu0 0.0
        %2212 = vmatpush.msra.mxu0 0.0
        %2213 = vmatpush.msra.mxu0 0.0
        %2214 = vmatpush.msra.mxu0 0.0
        %2215 = vmatpush.msra.mxu0 0.0
        %2216 = vmatpush.msra.mxu0 0.0
        %2217 = vmatpush.msra.mxu0 0.0
        %2218 = vmatpush.msra.mxu0 0.0
        %2219 = vmatpush.msra.mxu0 0.0
        %2220 = vmatpush.msra.mxu0 0.0
        %v2221 = vand.u32 %v2032, 4294901760
        %v2222 = vsub.f32 %v2032, %v2221
        %v2223 = vand.u32 %v2222, 4294901760
        %v2224 = vsub.f32 %v2222, %v2223
        %v2225 = vand.u32 %v2224, 4294901760
        %2226 = vmatpush.msra.mxu0 %v2225
        %v2227 = vand.u32 %v2028, 4294901760
        %2228 = vmatmul.f32.gmra.mxu0 %v2227
        %v2229 = vpop.f32.mrf.mxu0
        %v2230 = vadd.f32 %v2204, %v2229
        %2231 = vdwg.mxu0
        %2232 = vmatpush.msra.mxu0 0.0
        %2233 = vmatpush.msra.mxu0 0.0
        %2234 = vmatpush.msra.mxu0 0.0
        %2235 = vmatpush.msra.mxu0 0.0
        %2236 = vmatpush.msra.mxu0 0.0
        %2237 = vmatpush.msra.mxu0 0.0
        %2238 = vmatpush.msra.mxu0 0.0
        %2239 = vmatpush.msra.mxu0 0.0
        %2240 = vmatpush.msra.mxu0 0.0
        %2241 = vmatpush.msra.mxu0 0.0
        %2242 = vmatpush.msra.mxu0 0.0
        %2243 = vmatpush.msra.mxu0 0.0
        %2244 = vmatpush.msra.mxu0 0.0
        %2245 = vmatpush.msra.mxu0 0.0
        %2246 = vmatpush.msra.mxu0 0.0
        %v2247 = vand.u32 %v2032, 4294901760
        %v2248 = vsub.f32 %v2032, %v2247
        %2249 = vmatpush.msra.mxu0 %v2248
        %v2250 = vand.u32 %v2028, 4294901760
        %v2251 = vsub.f32 %v2028, %v2250
        %2252 = vmatmul.f32.gmra.mxu0 %v2251
        %v2253 = vpop.f32.mrf.mxu0
        %v2254 = vadd.f32 %v2230, %v2253
        %2255 = vdwg.mxu0
        %2256 = vmatpush.msra.mxu0 0.0
        %2257 = vmatpush.msra.mxu0 0.0
        %2258 = vmatpush.msra.mxu0 0.0
        %2259 = vmatpush.msra.mxu0 0.0
        %2260 = vmatpush.msra.mxu0 0.0
        %2261 = vmatpush.msra.mxu0 0.0
        %2262 = vmatpush.msra.mxu0 0.0
        %2263 = vmatpush.msra.mxu0 0.0
        %2264 = vmatpush.msra.mxu0 0.0
        %2265 = vmatpush.msra.mxu0 0.0
        %2266 = vmatpush.msra.mxu0 0.0
        %2267 = vmatpush.msra.mxu0 0.0
        %2268 = vmatpush.msra.mxu0 0.0
        %2269 = vmatpush.msra.mxu0 0.0
        %2270 = vmatpush.msra.mxu0 0.0
        %v2271 = vand.u32 %v2032, 4294901760
        %2272 = vmatpush.msra.mxu0 %v2271
        %v2273 = vand.u32 %v2028, 4294901760
        %v2274 = vsub.f32 %v2028, %v2273
        %v2275 = vand.u32 %v2274, 4294901760
        %2276 = vmatmul.f32.gmra.mxu0 %v2275
        %v2277 = vpop.f32.mrf.mxu0
        %v2278 = vadd.f32 %v2254, %v2277
        %2279 = vdwg.mxu0
        %2280 = vmatpush.msra.mxu0 0.0
        %2281 = vmatpush.msra.mxu0 0.0
        %2282 = vmatpush.msra.mxu0 0.0
        %2283 = vmatpush.msra.mxu0 0.0
        %2284 = vmatpush.msra.mxu0 0.0
        %2285 = vmatpush.msra.mxu0 0.0
        %2286 = vmatpush.msra.mxu0 0.0
        %2287 = vmatpush.msra.mxu0 0.0
        %2288 = vmatpush.msra.mxu0 0.0
        %2289 = vmatpush.msra.mxu0 0.0
        %2290 = vmatpush.msra.mxu0 0.0
        %2291 = vmatpush.msra.mxu0 0.0
        %2292 = vmatpush.msra.mxu0 0.0
        %2293 = vmatpush.msra.mxu0 0.0
        %2294 = vmatpush.msra.mxu0 0.0
        %v2295 = vand.u32 %v2032, 4294901760
        %v2296 = vsub.f32 %v2032, %v2295
        %v2297 = vand.u32 %v2296, 4294901760
        %2298 = vmatpush.msra.mxu0 %v2297
        %v2299 = vand.u32 %v2028, 4294901760
        %2300 = vmatmul.f32.gmra.mxu0 %v2299
        %v2301 = vpop.f32.mrf.mxu0
        %v2302 = vadd.f32 %v2278, %v2301
        %2303 = vdwg.mxu0
        %2304 = vmatpush.msra.mxu0 0.0
        %2305 = vmatpush.msra.mxu0 0.0
        %2306 = vmatpush.msra.mxu0 0.0
        %2307 = vmatpush.msra.mxu0 0.0
        %2308 = vmatpush.msra.mxu0 0.0
        %2309 = vmatpush.msra.mxu0 0.0
        %2310 = vmatpush.msra.mxu0 0.0
        %2311 = vmatpush.msra.mxu0 0.0
        %2312 = vmatpush.msra.mxu0 0.0
        %2313 = vmatpush.msra.mxu0 0.0
        %2314 = vmatpush.msra.mxu0 0.0
        %2315 = vmatpush.msra.mxu0 0.0
        %2316 = vmatpush.msra.mxu0 0.0
        %2317 = vmatpush.msra.mxu0 0.0
        %2318 = vmatpush.msra.mxu0 0.0
        %v2319 = vand.u32 %v2032, 4294901760
        %2320 = vmatpush.msra.mxu0 %v2319
        %v2321 = vand.u32 %v2028, 4294901760
        %2322 = vmatmul.f32.gmra.mxu0 %v2321
        %v2323 = vpop.f32.mrf.mxu0
        %v2324 = vadd.f32 %v2302, %v2323
        %2325 = vdwg.mxu0
        %v2326 = vadd.f32 %v1988, %v2178
        %v2327 = vadd.f32 %v1989, %v2324
        %v2328 = vld [vmem:[#allocation2] sm:$0xff]
        %v2329 = vld [vmem:[#allocation2 + $0x8] sm:$0xf]
        %s2330 = scalar_lea.vmem %s3, 6
        %v2331 = vld [vmem:[%s2330] ss:$8 sm:$0x3]
        %v2333 = vperm.slane %v2331, 0
        %v2334 = vperm.slane %v2331, 1
        %v2335 = vrot.slane %v2334, 4
        %v2336 = vsel %vm348, %v2333, %v2335
        %2337 = vrot.lane.b32.xlu0 %v2336, 32
        %v2338 = vpop.permute.xlu0 %2337
        %v2339 = vrot.slane %v2338, 4
        %vm2340 = vcmask 261120
        %v2341 = vsel %vm2340, %v2339, %v2338
        %v2344 = vmul.f32 %v2328, %v2341
        %v2345 = vmul.f32 %v2329, %v2339
        %s2346 = scalar_lea.vmem %s270, 48 [#allocation3]
        %v2347 = vld [vmem:[%s2346] sm:$0xff]
        %2350 = vst [vmem:[#allocation1] ss:$2 sm:$0xff] %v2344
        %s2351 = scalar_lea.vmem [#allocation1], 16
        %2352 = vst [vmem:[%s2351] ss:$2 sm:$0xff] %v2345
        %v2353 = vld.sshfl [vmem:[#allocation1] sm:$0xff pattern:$0x75316420]
        %v2354 = vld.sshfl [vmem:[#allocation1 + $0x8] sm:$0xff pattern:$0x75316420]
        %v2355 = vld.sshfl [vmem:[#allocation1 + $0x10] sm:$0xff pattern:$0x75316420]
        %2356 = vrot.lane.b32.xlu0 %v2353, 96
        %v2357 = vpop.permute.xlu0 %2356
        %2358 = vrot.lane.b32.xlu0 %v2354, 96
        %v2359 = vpop.permute.xlu0 %2358
        %2360 = vrot.lane.b32.xlu0 %v2355, 96
        %v2361 = vpop.permute.xlu0 %2360
        %vm2362 = vcmask 785408
        %v2363 = vsel %vm2362, %v2357, %v2359
        %v2364 = vsel %vm2362, %v2359, %v2361
        %v2366 = vsel %vm389, %v2347, 0
        %v2368 = vsel %vm348, %v2363, 0
        %v2370 = vsel %vm348, %v2364, 0
        %2372 = vmatpush.msra.mxu0 0.0
        %2373 = vmatpush.msra.mxu0 0.0
        %2374 = vmatpush.msra.mxu0 0.0
        %2375 = vmatpush.msra.mxu0 0.0
        %2376 = vmatpush.msra.mxu0 0.0
        %2377 = vmatpush.msra.mxu0 0.0
        %2378 = vmatpush.msra.mxu0 0.0
        %2379 = vmatpush.msra.mxu0 0.0
        %2380 = vmatpush.msra.mxu0 0.0
        %2381 = vmatpush.msra.mxu0 0.0
        %2382 = vmatpush.msra.mxu0 0.0
        %2383 = vmatpush.msra.mxu0 0.0
        %2384 = vmatpush.msra.mxu0 0.0
        %2385 = vmatpush.msra.mxu0 0.0
        %2386 = vmatpush.msra.mxu0 0.0
        %v2387 = vand.u32 %v2368, 4294901760
        %2388 = vmatpush.msra.mxu0 %v2387
        %v2389 = vand.u32 %v2366, 4294901760
        %v2390 = vsub.f32 %v2366, %v2389
        %v2391 = vand.u32 %v2390, 4294901760
        %v2392 = vsub.f32 %v2390, %v2391
        %v2393 = vand.u32 %v2392, 4294901760
        %2394 = vmatmul.f32.gmra.mxu0 %v2393
        %v2395 = vpop.f32.mrf.mxu0
        %v2396 = vadd.f32 0.0, %v2395
        %2397 = vdwg.mxu0
        %2398 = vmatpush.msra.mxu0 0.0
        %2399 = vmatpush.msra.mxu0 0.0
        %2400 = vmatpush.msra.mxu0 0.0
        %2401 = vmatpush.msra.mxu0 0.0
        %2402 = vmatpush.msra.mxu0 0.0
        %2403 = vmatpush.msra.mxu0 0.0
        %2404 = vmatpush.msra.mxu0 0.0
        %2405 = vmatpush.msra.mxu0 0.0
        %2406 = vmatpush.msra.mxu0 0.0
        %2407 = vmatpush.msra.mxu0 0.0
        %2408 = vmatpush.msra.mxu0 0.0
        %2409 = vmatpush.msra.mxu0 0.0
        %2410 = vmatpush.msra.mxu0 0.0
        %2411 = vmatpush.msra.mxu0 0.0
        %2412 = vmatpush.msra.mxu0 0.0
        %v2413 = vand.u32 %v2368, 4294901760
        %v2414 = vsub.f32 %v2368, %v2413
        %v2415 = vand.u32 %v2414, 4294901760
        %v2416 = vsub.f32 %v2414, %v2415
        %v2417 = vand.u32 %v2416, 4294901760
        %2418 = vmatpush.msra.mxu0 %v2417
        %v2419 = vand.u32 %v2366, 4294901760
        %2420 = vmatmul.f32.gmra.mxu0 %v2419
        %v2421 = vpop.f32.mrf.mxu0
        %v2422 = vadd.f32 %v2396, %v2421
        %2423 = vdwg.mxu0
        %2424 = vmatpush.msra.mxu0 0.0
        %2425 = vmatpush.msra.mxu0 0.0
        %2426 = vmatpush.msra.mxu0 0.0
        %2427 = vmatpush.msra.mxu0 0.0
        %2428 = vmatpush.msra.mxu0 0.0
        %2429 = vmatpush.msra.mxu0 0.0
        %2430 = vmatpush.msra.mxu0 0.0
        %2431 = vmatpush.msra.mxu0 0.0
        %2432 = vmatpush.msra.mxu0 0.0
        %2433 = vmatpush.msra.mxu0 0.0
        %2434 = vmatpush.msra.mxu0 0.0
        %2435 = vmatpush.msra.mxu0 0.0
        %2436 = vmatpush.msra.mxu0 0.0
        %2437 = vmatpush.msra.mxu0 0.0
        %2438 = vmatpush.msra.mxu0 0.0
        %v2439 = vand.u32 %v2368, 4294901760
        %v2440 = vsub.f32 %v2368, %v2439
        %2441 = vmatpush.msra.mxu0 %v2440
        %v2442 = vand.u32 %v2366, 4294901760
        %v2443 = vsub.f32 %v2366, %v2442
        %2444 = vmatmul.f32.gmra.mxu0 %v2443
        %v2445 = vpop.f32.mrf.mxu0
        %v2446 = vadd.f32 %v2422, %v2445
        %2447 = vdwg.mxu0
        %2448 = vmatpush.msra.mxu0 0.0
        %2449 = vmatpush.msra.mxu0 0.0
        %2450 = vmatpush.msra.mxu0 0.0
        %2451 = vmatpush.msra.mxu0 0.0
        %2452 = vmatpush.msra.mxu0 0.0
        %2453 = vmatpush.msra.mxu0 0.0
        %2454 = vmatpush.msra.mxu0 0.0
        %2455 = vmatpush.msra.mxu0 0.0
        %2456 = vmatpush.msra.mxu0 0.0
        %2457 = vmatpush.msra.mxu0 0.0
        %2458 = vmatpush.msra.mxu0 0.0
        %2459 = vmatpush.msra.mxu0 0.0
        %2460 = vmatpush.msra.mxu0 0.0
        %2461 = vmatpush.msra.mxu0 0.0
        %2462 = vmatpush.msra.mxu0 0.0
        %v2463 = vand.u32 %v2368, 4294901760
        %2464 = vmatpush.msra.mxu0 %v2463
        %v2465 = vand.u32 %v2366, 4294901760
        %v2466 = vsub.f32 %v2366, %v2465
        %v2467 = vand.u32 %v2466, 4294901760
        %2468 = vmatmul.f32.gmra.mxu0 %v2467
        %v2469 = vpop.f32.mrf.mxu0
        %v2470 = vadd.f32 %v2446, %v2469
        %2471 = vdwg.mxu0
        %2472 = vmatpush.msra.mxu0 0.0
        %2473 = vmatpush.msra.mxu0 0.0
        %2474 = vmatpush.msra.mxu0 0.0
        %2475 = vmatpush.msra.mxu0 0.0
        %2476 = vmatpush.msra.mxu0 0.0
        %2477 = vmatpush.msra.mxu0 0.0
        %2478 = vmatpush.msra.mxu0 0.0
        %2479 = vmatpush.msra.mxu0 0.0
        %2480 = vmatpush.msra.mxu0 0.0
        %2481 = vmatpush.msra.mxu0 0.0
        %2482 = vmatpush.msra.mxu0 0.0
        %2483 = vmatpush.msra.mxu0 0.0
        %2484 = vmatpush.msra.mxu0 0.0
        %2485 = vmatpush.msra.mxu0 0.0
        %2486 = vmatpush.msra.mxu0 0.0
        %v2487 = vand.u32 %v2368, 4294901760
        %v2488 = vsub.f32 %v2368, %v2487
        %v2489 = vand.u32 %v2488, 4294901760
        %2490 = vmatpush.msra.mxu0 %v2489
        %v2491 = vand.u32 %v2366, 4294901760
        %2492 = vmatmul.f32.gmra.mxu0 %v2491
        %v2493 = vpop.f32.mrf.mxu0
        %v2494 = vadd.f32 %v2470, %v2493
        %2495 = vdwg.mxu0
        %2496 = vmatpush.msra.mxu0 0.0
        %2497 = vmatpush.msra.mxu0 0.0
        %2498 = vmatpush.msra.mxu0 0.0
        %2499 = vmatpush.msra.mxu0 0.0
        %2500 = vmatpush.msra.mxu0 0.0
        %2501 = vmatpush.msra.mxu0 0.0
        %2502 = vmatpush.msra.mxu0 0.0
        %2503 = vmatpush.msra.mxu0 0.0
        %2504 = vmatpush.msra.mxu0 0.0
        %2505 = vmatpush.msra.mxu0 0.0
        %2506 = vmatpush.msra.mxu0 0.0
        %2507 = vmatpush.msra.mxu0 0.0
        %2508 = vmatpush.msra.mxu0 0.0
        %2509 = vmatpush.msra.mxu0 0.0
        %2510 = vmatpush.msra.mxu0 0.0
        %v2511 = vand.u32 %v2368, 4294901760
        %2512 = vmatpush.msra.mxu0 %v2511
        %v2513 = vand.u32 %v2366, 4294901760
        %2514 = vmatmul.f32.gmra.mxu0 %v2513
        %v2515 = vpop.f32.mrf.mxu0
        %v2516 = vadd.f32 %v2494, %v2515
        %2517 = vdwg.mxu0
        %2518 = vmatpush.msra.mxu0 0.0
        %2519 = vmatpush.msra.mxu0 0.0
        %2520 = vmatpush.msra.mxu0 0.0
        %2521 = vmatpush.msra.mxu0 0.0
        %2522 = vmatpush.msra.mxu0 0.0
        %2523 = vmatpush.msra.mxu0 0.0
        %2524 = vmatpush.msra.mxu0 0.0
        %2525 = vmatpush.msra.mxu0 0.0
        %2526 = vmatpush.msra.mxu0 0.0
        %2527 = vmatpush.msra.mxu0 0.0
        %2528 = vmatpush.msra.mxu0 0.0
        %2529 = vmatpush.msra.mxu0 0.0
        %2530 = vmatpush.msra.mxu0 0.0
        %2531 = vmatpush.msra.mxu0 0.0
        %2532 = vmatpush.msra.mxu0 0.0
        %v2533 = vand.u32 %v2370, 4294901760
        %2534 = vmatpush.msra.mxu0 %v2533
        %v2535 = vand.u32 %v2366, 4294901760
        %v2536 = vsub.f32 %v2366, %v2535
        %v2537 = vand.u32 %v2536, 4294901760
        %v2538 = vsub.f32 %v2536, %v2537
        %v2539 = vand.u32 %v2538, 4294901760
        %2540 = vmatmul.f32.gmra.mxu0 %v2539
        %v2541 = vpop.f32.mrf.mxu0
        %v2542 = vadd.f32 0.0, %v2541
        %2543 = vdwg.mxu0
        %2544 = vmatpush.msra.mxu0 0.0
        %2545 = vmatpush.msra.mxu0 0.0
        %2546 = vmatpush.msra.mxu0 0.0
        %2547 = vmatpush.msra.mxu0 0.0
        %2548 = vmatpush.msra.mxu0 0.0
        %2549 = vmatpush.msra.mxu0 0.0
        %2550 = vmatpush.msra.mxu0 0.0
        %2551 = vmatpush.msra.mxu0 0.0
        %2552 = vmatpush.msra.mxu0 0.0
        %2553 = vmatpush.msra.mxu0 0.0
        %2554 = vmatpush.msra.mxu0 0.0
        %2555 = vmatpush.msra.mxu0 0.0
        %2556 = vmatpush.msra.mxu0 0.0
        %2557 = vmatpush.msra.mxu0 0.0
        %2558 = vmatpush.msra.mxu0 0.0
        %v2559 = vand.u32 %v2370, 4294901760
        %v2560 = vsub.f32 %v2370, %v2559
        %v2561 = vand.u32 %v2560, 4294901760
        %v2562 = vsub.f32 %v2560, %v2561
        %v2563 = vand.u32 %v2562, 4294901760
        %2564 = vmatpush.msra.mxu0 %v2563
        %v2565 = vand.u32 %v2366, 4294901760
        %2566 = vmatmul.f32.gmra.mxu0 %v2565
        %v2567 = vpop.f32.mrf.mxu0
        %v2568 = vadd.f32 %v2542, %v2567
        %2569 = vdwg.mxu0
        %2570 = vmatpush.msra.mxu0 0.0
        %2571 = vmatpush.msra.mxu0 0.0
        %2572 = vmatpush.msra.mxu0 0.0
        %2573 = vmatpush.msra.mxu0 0.0
        %2574 = vmatpush.msra.mxu0 0.0
        %2575 = vmatpush.msra.mxu0 0.0
        %2576 = vmatpush.msra.mxu0 0.0
        %2577 = vmatpush.msra.mxu0 0.0
        %2578 = vmatpush.msra.mxu0 0.0
        %2579 = vmatpush.msra.mxu0 0.0
        %2580 = vmatpush.msra.mxu0 0.0
        %2581 = vmatpush.msra.mxu0 0.0
        %2582 = vmatpush.msra.mxu0 0.0
        %2583 = vmatpush.msra.mxu0 0.0
        %2584 = vmatpush.msra.mxu0 0.0
        %v2585 = vand.u32 %v2370, 4294901760
        %v2586 = vsub.f32 %v2370, %v2585
        %2587 = vmatpush.msra.mxu0 %v2586
        %v2588 = vand.u32 %v2366, 4294901760
        %v2589 = vsub.f32 %v2366, %v2588
        %2590 = vmatmul.f32.gmra.mxu0 %v2589
        %v2591 = vpop.f32.mrf.mxu0
        %v2592 = vadd.f32 %v2568, %v2591
        %2593 = vdwg.mxu0
        %2594 = vmatpush.msra.mxu0 0.0
        %2595 = vmatpush.msra.mxu0 0.0
        %2596 = vmatpush.msra.mxu0 0.0
        %2597 = vmatpush.msra.mxu0 0.0
        %2598 = vmatpush.msra.mxu0 0.0
        %2599 = vmatpush.msra.mxu0 0.0
        %2600 = vmatpush.msra.mxu0 0.0
        %2601 = vmatpush.msra.mxu0 0.0
        %2602 = vmatpush.msra.mxu0 0.0
        %2603 = vmatpush.msra.mxu0 0.0
        %2604 = vmatpush.msra.mxu0 0.0
        %2605 = vmatpush.msra.mxu0 0.0
        %2606 = vmatpush.msra.mxu0 0.0
        %2607 = vmatpush.msra.mxu0 0.0
        %2608 = vmatpush.msra.mxu0 0.0
        %v2609 = vand.u32 %v2370, 4294901760
        %2610 = vmatpush.msra.mxu0 %v2609
        %v2611 = vand.u32 %v2366, 4294901760
        %v2612 = vsub.f32 %v2366, %v2611
        %v2613 = vand.u32 %v2612, 4294901760
        %2614 = vmatmul.f32.gmra.mxu0 %v2613
        %v2615 = vpop.f32.mrf.mxu0
        %v2616 = vadd.f32 %v2592, %v2615
        %2617 = vdwg.mxu0
        %2618 = vmatpush.msra.mxu0 0.0
        %2619 = vmatpush.msra.mxu0 0.0
        %2620 = vmatpush.msra.mxu0 0.0
        %2621 = vmatpush.msra.mxu0 0.0
        %2622 = vmatpush.msra.mxu0 0.0
        %2623 = vmatpush.msra.mxu0 0.0
        %2624 = vmatpush.msra.mxu0 0.0
        %2625 = vmatpush.msra.mxu0 0.0
        %2626 = vmatpush.msra.mxu0 0.0
        %2627 = vmatpush.msra.mxu0 0.0
        %2628 = vmatpush.msra.mxu0 0.0
        %2629 = vmatpush.msra.mxu0 0.0
        %2630 = vmatpush.msra.mxu0 0.0
        %2631 = vmatpush.msra.mxu0 0.0
        %2632 = vmatpush.msra.mxu0 0.0
        %v2633 = vand.u32 %v2370, 4294901760
        %v2634 = vsub.f32 %v2370, %v2633
        %v2635 = vand.u32 %v2634, 4294901760
        %2636 = vmatpush.msra.mxu0 %v2635
        %v2637 = vand.u32 %v2366, 4294901760
        %2638 = vmatmul.f32.gmra.mxu0 %v2637
        %v2639 = vpop.f32.mrf.mxu0
        %v2640 = vadd.f32 %v2616, %v2639
        %2641 = vdwg.mxu0
        %2642 = vmatpush.msra.mxu0 0.0
        %2643 = vmatpush.msra.mxu0 0.0
        %2644 = vmatpush.msra.mxu0 0.0
        %2645 = vmatpush.msra.mxu0 0.0
        %2646 = vmatpush.msra.mxu0 0.0
        %2647 = vmatpush.msra.mxu0 0.0
        %2648 = vmatpush.msra.mxu0 0.0
        %2649 = vmatpush.msra.mxu0 0.0
        %2650 = vmatpush.msra.mxu0 0.0
        %2651 = vmatpush.msra.mxu0 0.0
        %2652 = vmatpush.msra.mxu0 0.0
        %2653 = vmatpush.msra.mxu0 0.0
        %2654 = vmatpush.msra.mxu0 0.0
        %2655 = vmatpush.msra.mxu0 0.0
        %2656 = vmatpush.msra.mxu0 0.0
        %v2657 = vand.u32 %v2370, 4294901760
        %2658 = vmatpush.msra.mxu0 %v2657
        %v2659 = vand.u32 %v2366, 4294901760
        %2660 = vmatmul.f32.gmra.mxu0 %v2659
        %v2661 = vpop.f32.mrf.mxu0
        %v2662 = vadd.f32 %v2640, %v2661
        %2663 = vdwg.mxu0
        %v2664 = vadd.f32 %v2326, %v2516
        %v2665 = vadd.f32 %v2327, %v2662
        %v2666 = vld [vmem:[#allocation2] sm:$0xff]
        %v2667 = vld [vmem:[#allocation2 + $0x8] sm:$0xf]
        %s2668 = scalar_lea.vmem %s3, 7
        %v2669 = vld [vmem:[%s2668] ss:$8 sm:$0x3]
        %v2671 = vperm.slane %v2669, 0
        %v2672 = vperm.slane %v2669, 1
        %v2673 = vrot.slane %v2672, 4
        %v2674 = vsel %vm348, %v2671, %v2673
        %2675 = vrot.lane.b32.xlu0 %v2674, 33
        %v2676 = vpop.permute.xlu0 %2675
        %v2677 = vrot.slane %v2676, 4
        %vm2678 = vcmask 269312
        %v2679 = vsel %vm2678, %v2677, %v2676
        %v2682 = vmul.f32 %v2666, %v2679
        %v2683 = vmul.f32 %v2667, %v2677
        %s2684 = scalar_lea.vmem %s270, 56 [#allocation3]
        %v2685 = vld [vmem:[%s2684] sm:$0xff]
        %2688 = vst [vmem:[#allocation1] ss:$2 sm:$0xff] %v2682
        %s2689 = scalar_lea.vmem [#allocation1], 16
        %2690 = vst [vmem:[%s2689] ss:$2 sm:$0xff] %v2683
        %v2691 = vld.sshfl [vmem:[#allocation1] sm:$0xff pattern:$0x75316420]
        %v2692 = vld.sshfl [vmem:[#allocation1 + $0x8] sm:$0xff pattern:$0x75316420]
        %v2693 = vld.sshfl [vmem:[#allocation1 + $0x10] sm:$0xff pattern:$0x75316420]
        %2694 = vrot.lane.b32.xlu0 %v2691, 95
        %v2695 = vpop.permute.xlu0 %2694
        %2696 = vrot.lane.b32.xlu0 %v2692, 95
        %v2697 = vpop.permute.xlu0 %2696
        %2698 = vrot.lane.b32.xlu0 %v2693, 95
        %v2699 = vpop.permute.xlu0 %2698
        %vm2700 = vcmask 777216
        %v2701 = vsel %vm2700, %v2695, %v2697
        %v2702 = vsel %vm2700, %v2697, %v2699
        %v2704 = vsel %vm389, %v2685, 0
        %v2706 = vsel %vm348, %v2701, 0
        %v2708 = vsel %vm348, %v2702, 0
        %2710 = vmatpush.msra.mxu0 0.0
        %2711 = vmatpush.msra.mxu0 0.0
        %2712 = vmatpush.msra.mxu0 0.0
        %2713 = vmatpush.msra.mxu0 0.0
        %2714 = vmatpush.msra.mxu0 0.0
        %2715 = vmatpush.msra.mxu0 0.0
        %2716 = vmatpush.msra.mxu0 0.0
        %2717 = vmatpush.msra.mxu0 0.0
        %2718 = vmatpush.msra.mxu0 0.0
        %2719 = vmatpush.msra.mxu0 0.0
        %2720 = vmatpush.msra.mxu0 0.0
        %2721 = vmatpush.msra.mxu0 0.0
        %2722 = vmatpush.msra.mxu0 0.0
        %2723 = vmatpush.msra.mxu0 0.0
        %2724 = vmatpush.msra.mxu0 0.0
        %v2725 = vand.u32 %v2706, 4294901760
        %2726 = vmatpush.msra.mxu0 %v2725
        %v2727 = vand.u32 %v2704, 4294901760
        %v2728 = vsub.f32 %v2704, %v2727
        %v2729 = vand.u32 %v2728, 4294901760
        %v2730 = vsub.f32 %v2728, %v2729
        %v2731 = vand.u32 %v2730, 4294901760
        %2732 = vmatmul.f32.gmra.mxu0 %v2731
        %v2733 = vpop.f32.mrf.mxu0
        %v2734 = vadd.f32 0.0, %v2733
        %2735 = vdwg.mxu0
        %2736 = vmatpush.msra.mxu0 0.0
        %2737 = vmatpush.msra.mxu0 0.0
        %2738 = vmatpush.msra.mxu0 0.0
        %2739 = vmatpush.msra.mxu0 0.0
        %2740 = vmatpush.msra.mxu0 0.0
        %2741 = vmatpush.msra.mxu0 0.0
        %2742 = vmatpush.msra.mxu0 0.0
        %2743 = vmatpush.msra.mxu0 0.0
        %2744 = vmatpush.msra.mxu0 0.0
        %2745 = vmatpush.msra.mxu0 0.0
        %2746 = vmatpush.msra.mxu0 0.0
        %2747 = vmatpush.msra.mxu0 0.0
        %2748 = vmatpush.msra.mxu0 0.0
        %2749 = vmatpush.msra.mxu0 0.0
        %2750 = vmatpush.msra.mxu0 0.0
        %v2751 = vand.u32 %v2706, 4294901760
        %v2752 = vsub.f32 %v2706, %v2751
        %v2753 = vand.u32 %v2752, 4294901760
        %v2754 = vsub.f32 %v2752, %v2753
        %v2755 = vand.u32 %v2754, 4294901760
        %2756 = vmatpush.msra.mxu0 %v2755
        %v2757 = vand.u32 %v2704, 4294901760
        %2758 = vmatmul.f32.gmra.mxu0 %v2757
        %v2759 = vpop.f32.mrf.mxu0
        %v2760 = vadd.f32 %v2734, %v2759
        %2761 = vdwg.mxu0
        %2762 = vmatpush.msra.mxu0 0.0
        %2763 = vmatpush.msra.mxu0 0.0
        %2764 = vmatpush.msra.mxu0 0.0
        %2765 = vmatpush.msra.mxu0 0.0
        %2766 = vmatpush.msra.mxu0 0.0
        %2767 = vmatpush.msra.mxu0 0.0
        %2768 = vmatpush.msra.mxu0 0.0
        %2769 = vmatpush.msra.mxu0 0.0
        %2770 = vmatpush.msra.mxu0 0.0
        %2771 = vmatpush.msra.mxu0 0.0
        %2772 = vmatpush.msra.mxu0 0.0
        %2773 = vmatpush.msra.mxu0 0.0
        %2774 = vmatpush.msra.mxu0 0.0
        %2775 = vmatpush.msra.mxu0 0.0
        %2776 = vmatpush.msra.mxu0 0.0
        %v2777 = vand.u32 %v2706, 4294901760
        %v2778 = vsub.f32 %v2706, %v2777
        %2779 = vmatpush.msra.mxu0 %v2778
        %v2780 = vand.u32 %v2704, 4294901760
        %v2781 = vsub.f32 %v2704, %v2780
        %2782 = vmatmul.f32.gmra.mxu0 %v2781
        %v2783 = vpop.f32.mrf.mxu0
        %v2784 = vadd.f32 %v2760, %v2783
        %2785 = vdwg.mxu0
        %2786 = vmatpush.msra.mxu0 0.0
        %2787 = vmatpush.msra.mxu0 0.0
        %2788 = vmatpush.msra.mxu0 0.0
        %2789 = vmatpush.msra.mxu0 0.0
        %2790 = vmatpush.msra.mxu0 0.0
        %2791 = vmatpush.msra.mxu0 0.0
        %2792 = vmatpush.msra.mxu0 0.0
        %2793 = vmatpush.msra.mxu0 0.0
        %2794 = vmatpush.msra.mxu0 0.0
        %2795 = vmatpush.msra.mxu0 0.0
        %2796 = vmatpush.msra.mxu0 0.0
        %2797 = vmatpush.msra.mxu0 0.0
        %2798 = vmatpush.msra.mxu0 0.0
        %2799 = vmatpush.msra.mxu0 0.0
        %2800 = vmatpush.msra.mxu0 0.0
        %v2801 = vand.u32 %v2706, 4294901760
        %2802 = vmatpush.msra.mxu0 %v2801
        %v2803 = vand.u32 %v2704, 4294901760
        %v2804 = vsub.f32 %v2704, %v2803
        %v2805 = vand.u32 %v2804, 4294901760
        %2806 = vmatmul.f32.gmra.mxu0 %v2805
        %v2807 = vpop.f32.mrf.mxu0
        %v2808 = vadd.f32 %v2784, %v2807
        %2809 = vdwg.mxu0
        %2810 = vmatpush.msra.mxu0 0.0
        %2811 = vmatpush.msra.mxu0 0.0
        %2812 = vmatpush.msra.mxu0 0.0
        %2813 = vmatpush.msra.mxu0 0.0
        %2814 = vmatpush.msra.mxu0 0.0
        %2815 = vmatpush.msra.mxu0 0.0
        %2816 = vmatpush.msra.mxu0 0.0
        %2817 = vmatpush.msra.mxu0 0.0
        %2818 = vmatpush.msra.mxu0 0.0
        %2819 = vmatpush.msra.mxu0 0.0
        %2820 = vmatpush.msra.mxu0 0.0
        %2821 = vmatpush.msra.mxu0 0.0
        %2822 = vmatpush.msra.mxu0 0.0
        %2823 = vmatpush.msra.mxu0 0.0
        %2824 = vmatpush.msra.mxu0 0.0
        %v2825 = vand.u32 %v2706, 4294901760
        %v2826 = vsub.f32 %v2706, %v2825
        %v2827 = vand.u32 %v2826, 4294901760
        %2828 = vmatpush.msra.mxu0 %v2827
        %v2829 = vand.u32 %v2704, 4294901760
        %2830 = vmatmul.f32.gmra.mxu0 %v2829
        %v2831 = vpop.f32.mrf.mxu0
        %v2832 = vadd.f32 %v2808, %v2831
        %2833 = vdwg.mxu0
        %2834 = vmatpush.msra.mxu0 0.0
        %2835 = vmatpush.msra.mxu0 0.0
        %2836 = vmatpush.msra.mxu0 0.0
        %2837 = vmatpush.msra.mxu0 0.0
        %2838 = vmatpush.msra.mxu0 0.0
        %2839 = vmatpush.msra.mxu0 0.0
        %2840 = vmatpush.msra.mxu0 0.0
        %2841 = vmatpush.msra.mxu0 0.0
        %2842 = vmatpush.msra.mxu0 0.0
        %2843 = vmatpush.msra.mxu0 0.0
        %2844 = vmatpush.msra.mxu0 0.0
        %2845 = vmatpush.msra.mxu0 0.0
        %2846 = vmatpush.msra.mxu0 0.0
        %2847 = vmatpush.msra.mxu0 0.0
        %2848 = vmatpush.msra.mxu0 0.0
        %v2849 = vand.u32 %v2706, 4294901760
        %2850 = vmatpush.msra.mxu0 %v2849
        %v2851 = vand.u32 %v2704, 4294901760
        %2852 = vmatmul.f32.gmra.mxu0 %v2851
        %v2853 = vpop.f32.mrf.mxu0
        %v2854 = vadd.f32 %v2832, %v2853
        %2855 = vdwg.mxu0
        %2856 = vmatpush.msra.mxu0 0.0
        %2857 = vmatpush.msra.mxu0 0.0
        %2858 = vmatpush.msra.mxu0 0.0
        %2859 = vmatpush.msra.mxu0 0.0
        %2860 = vmatpush.msra.mxu0 0.0
        %2861 = vmatpush.msra.mxu0 0.0
        %2862 = vmatpush.msra.mxu0 0.0
        %2863 = vmatpush.msra.mxu0 0.0
        %2864 = vmatpush.msra.mxu0 0.0
        %2865 = vmatpush.msra.mxu0 0.0
        %2866 = vmatpush.msra.mxu0 0.0
        %2867 = vmatpush.msra.mxu0 0.0
        %2868 = vmatpush.msra.mxu0 0.0
        %2869 = vmatpush.msra.mxu0 0.0
        %2870 = vmatpush.msra.mxu0 0.0
        %v2871 = vand.u32 %v2708, 4294901760
        %2872 = vmatpush.msra.mxu0 %v2871
        %v2873 = vand.u32 %v2704, 4294901760
        %v2874 = vsub.f32 %v2704, %v2873
        %v2875 = vand.u32 %v2874, 4294901760
        %v2876 = vsub.f32 %v2874, %v2875
        %v2877 = vand.u32 %v2876, 4294901760
        %2878 = vmatmul.f32.gmra.mxu0 %v2877
        %v2879 = vpop.f32.mrf.mxu0
        %v2880 = vadd.f32 0.0, %v2879
        %2881 = vdwg.mxu0
        %2882 = vmatpush.msra.mxu0 0.0
        %2883 = vmatpush.msra.mxu0 0.0
        %2884 = vmatpush.msra.mxu0 0.0
        %2885 = vmatpush.msra.mxu0 0.0
        %2886 = vmatpush.msra.mxu0 0.0
        %2887 = vmatpush.msra.mxu0 0.0
        %2888 = vmatpush.msra.mxu0 0.0
        %2889 = vmatpush.msra.mxu0 0.0
        %2890 = vmatpush.msra.mxu0 0.0
        %2891 = vmatpush.msra.mxu0 0.0
        %2892 = vmatpush.msra.mxu0 0.0
        %2893 = vmatpush.msra.mxu0 0.0
        %2894 = vmatpush.msra.mxu0 0.0
        %2895 = vmatpush.msra.mxu0 0.0
        %2896 = vmatpush.msra.mxu0 0.0
        %v2897 = vand.u32 %v2708, 4294901760
        %v2898 = vsub.f32 %v2708, %v2897
        %v2899 = vand.u32 %v2898, 4294901760
        %v2900 = vsub.f32 %v2898, %v2899
        %v2901 = vand.u32 %v2900, 4294901760
        %2902 = vmatpush.msra.mxu0 %v2901
        %v2903 = vand.u32 %v2704, 4294901760
        %2904 = vmatmul.f32.gmra.mxu0 %v2903
        %v2905 = vpop.f32.mrf.mxu0
        %v2906 = vadd.f32 %v2880, %v2905
        %2907 = vdwg.mxu0
        %2908 = vmatpush.msra.mxu0 0.0
        %2909 = vmatpush.msra.mxu0 0.0
        %2910 = vmatpush.msra.mxu0 0.0
        %2911 = vmatpush.msra.mxu0 0.0
        %2912 = vmatpush.msra.mxu0 0.0
        %2913 = vmatpush.msra.mxu0 0.0
        %2914 = vmatpush.msra.mxu0 0.0
        %2915 = vmatpush.msra.mxu0 0.0
        %2916 = vmatpush.msra.mxu0 0.0
        %2917 = vmatpush.msra.mxu0 0.0
        %2918 = vmatpush.msra.mxu0 0.0
        %2919 = vmatpush.msra.mxu0 0.0
        %2920 = vmatpush.msra.mxu0 0.0
        %2921 = vmatpush.msra.mxu0 0.0
        %2922 = vmatpush.msra.mxu0 0.0
        %v2923 = vand.u32 %v2708, 4294901760
        %v2924 = vsub.f32 %v2708, %v2923
        %2925 = vmatpush.msra.mxu0 %v2924
        %v2926 = vand.u32 %v2704, 4294901760
        %v2927 = vsub.f32 %v2704, %v2926
        %2928 = vmatmul.f32.gmra.mxu0 %v2927
        %v2929 = vpop.f32.mrf.mxu0
        %v2930 = vadd.f32 %v2906, %v2929
        %2931 = vdwg.mxu0
        %2932 = vmatpush.msra.mxu0 0.0
        %2933 = vmatpush.msra.mxu0 0.0
        %2934 = vmatpush.msra.mxu0 0.0
        %2935 = vmatpush.msra.mxu0 0.0
        %2936 = vmatpush.msra.mxu0 0.0
        %2937 = vmatpush.msra.mxu0 0.0
        %2938 = vmatpush.msra.mxu0 0.0
        %2939 = vmatpush.msra.mxu0 0.0
        %2940 = vmatpush.msra.mxu0 0.0
        %2941 = vmatpush.msra.mxu0 0.0
        %2942 = vmatpush.msra.mxu0 0.0
        %2943 = vmatpush.msra.mxu0 0.0
        %2944 = vmatpush.msra.mxu0 0.0
        %2945 = vmatpush.msra.mxu0 0.0
        %2946 = vmatpush.msra.mxu0 0.0
        %v2947 = vand.u32 %v2708, 4294901760
        %2948 = vmatpush.msra.mxu0 %v2947
        %v2949 = vand.u32 %v2704, 4294901760
        %v2950 = vsub.f32 %v2704, %v2949
        %v2951 = vand.u32 %v2950, 4294901760
        %2952 = vmatmul.f32.gmra.mxu0 %v2951
        %v2953 = vpop.f32.mrf.mxu0
        %v2954 = vadd.f32 %v2930, %v2953
        %2955 = vdwg.mxu0
        %2956 = vmatpush.msra.mxu0 0.0
        %2957 = vmatpush.msra.mxu0 0.0
        %2958 = vmatpush.msra.mxu0 0.0
        %2959 = vmatpush.msra.mxu0 0.0
        %2960 = vmatpush.msra.mxu0 0.0
        %2961 = vmatpush.msra.mxu0 0.0
        %2962 = vmatpush.msra.mxu0 0.0
        %2963 = vmatpush.msra.mxu0 0.0
        %2964 = vmatpush.msra.mxu0 0.0
        %2965 = vmatpush.msra.mxu0 0.0
        %2966 = vmatpush.msra.mxu0 0.0
        %2967 = vmatpush.msra.mxu0 0.0
        %2968 = vmatpush.msra.mxu0 0.0
        %2969 = vmatpush.msra.mxu0 0.0
        %2970 = vmatpush.msra.mxu0 0.0
        %v2971 = vand.u32 %v2708, 4294901760
        %v2972 = vsub.f32 %v2708, %v2971
        %v2973 = vand.u32 %v2972, 4294901760
        %2974 = vmatpush.msra.mxu0 %v2973
        %v2975 = vand.u32 %v2704, 4294901760
        %2976 = vmatmul.f32.gmra.mxu0 %v2975
        %v2977 = vpop.f32.mrf.mxu0
        %v2978 = vadd.f32 %v2954, %v2977
        %2979 = vdwg.mxu0
        %2980 = vmatpush.msra.mxu0 0.0
        %2981 = vmatpush.msra.mxu0 0.0
        %2982 = vmatpush.msra.mxu0 0.0
        %2983 = vmatpush.msra.mxu0 0.0
        %2984 = vmatpush.msra.mxu0 0.0
        %2985 = vmatpush.msra.mxu0 0.0
        %2986 = vmatpush.msra.mxu0 0.0
        %2987 = vmatpush.msra.mxu0 0.0
        %2988 = vmatpush.msra.mxu0 0.0
        %2989 = vmatpush.msra.mxu0 0.0
        %2990 = vmatpush.msra.mxu0 0.0
        %2991 = vmatpush.msra.mxu0 0.0
        %2992 = vmatpush.msra.mxu0 0.0
        %2993 = vmatpush.msra.mxu0 0.0
        %2994 = vmatpush.msra.mxu0 0.0
        %v2995 = vand.u32 %v2708, 4294901760
        %2996 = vmatpush.msra.mxu0 %v2995
        %v2997 = vand.u32 %v2704, 4294901760
        %2998 = vmatmul.f32.gmra.mxu0 %v2997
        %v2999 = vpop.f32.mrf.mxu0
        %v3000 = vadd.f32 %v2978, %v2999
        %3001 = vdwg.mxu0
        %v3002 = vadd.f32 %v2664, %v2854
        %v3003 = vadd.f32 %v2665, %v3000
        %v3004 = vld [vmem:[#allocation2] sm:$0xff]
        %v3005 = vld [vmem:[#allocation2 + $0x8] sm:$0xf]
        %s3006 = scalar_lea.vmem %s3, 16
        %v3007 = vld [vmem:[%s3006] ss:$8 sm:$0x3]
        %v3009 = vperm.slane %v3007, 0
        %v3010 = vperm.slane %v3007, 1
        %v3011 = vrot.slane %v3010, 4
        %v3012 = vsel %vm348, %v3009, %v3011
        %3013 = vrot.lane.b32.xlu0 %v3012, 34
        %v3014 = vpop.permute.xlu0 %3013
        %v3015 = vrot.slane %v3014, 4
        %vm3016 = vcmask 277504
        %v3017 = vsel %vm3016, %v3015, %v3014
        %v3020 = vmul.f32 %v3004, %v3017
        %v3021 = vmul.f32 %v3005, %v3015
        %s3022 = scalar_lea.vmem %s270, 64 [#allocation3]
        %v3023 = vld [vmem:[%s3022] sm:$0xff]
        %3026 = vst [vmem:[#allocation1] ss:$2 sm:$0xff] %v3020
        %s3027 = scalar_lea.vmem [#allocation1], 16
        %3028 = vst [vmem:[%s3027] ss:$2 sm:$0xff] %v3021
        %v3029 = vld.sshfl [vmem:[#allocation1] sm:$0xff pattern:$0x75316420]
        %v3030 = vld.sshfl [vmem:[#allocation1 + $0x8] sm:$0xff pattern:$0x75316420]
        %v3031 = vld.sshfl [vmem:[#allocation1 + $0x10] sm:$0xff pattern:$0x75316420]
        %3032 = vrot.lane.b32.xlu0 %v3029, 94
        %v3033 = vpop.permute.xlu0 %3032
        %3034 = vrot.lane.b32.xlu0 %v3030, 94
        %v3035 = vpop.permute.xlu0 %3034
        %3036 = vrot.lane.b32.xlu0 %v3031, 94
        %v3037 = vpop.permute.xlu0 %3036
        %vm3038 = vcmask 769024
        %v3039 = vsel %vm3038, %v3033, %v3035
        %v3040 = vsel %vm3038, %v3035, %v3037
        %v3042 = vsel %vm389, %v3023, 0
        %v3044 = vsel %vm348, %v3039, 0
        %v3046 = vsel %vm348, %v3040, 0
        %3048 = vmatpush.msra.mxu0 0.0
        %3049 = vmatpush.msra.mxu0 0.0
        %3050 = vmatpush.msra.mxu0 0.0
        %3051 = vmatpush.msra.mxu0 0.0
        %3052 = vmatpush.msra.mxu0 0.0
        %3053 = vmatpush.msra.mxu0 0.0
        %3054 = vmatpush.msra.mxu0 0.0
        %3055 = vmatpush.msra.mxu0 0.0
        %3056 = vmatpush.msra.mxu0 0.0
        %3057 = vmatpush.msra.mxu0 0.0
        %3058 = vmatpush.msra.mxu0 0.0
        %3059 = vmatpush.msra.mxu0 0.0
        %3060 = vmatpush.msra.mxu0 0.0
        %3061 = vmatpush.msra.mxu0 0.0
        %3062 = vmatpush.msra.mxu0 0.0
        %v3063 = vand.u32 %v3044, 4294901760
        %3064 = vmatpush.msra.mxu0 %v3063
        %v3065 = vand.u32 %v3042, 4294901760
        %v3066 = vsub.f32 %v3042, %v3065
        %v3067 = vand.u32 %v3066, 4294901760
        %v3068 = vsub.f32 %v3066, %v3067
        %v3069 = vand.u32 %v3068, 4294901760
        %3070 = vmatmul.f32.gmra.mxu0 %v3069
        %v3071 = vpop.f32.mrf.mxu0
        %v3072 = vadd.f32 0.0, %v3071
        %3073 = vdwg.mxu0
        %3074 = vmatpush.msra.mxu0 0.0
        %3075 = vmatpush.msra.mxu0 0.0
        %3076 = vmatpush.msra.mxu0 0.0
        %3077 = vmatpush.msra.mxu0 0.0
        %3078 = vmatpush.msra.mxu0 0.0
        %3079 = vmatpush.msra.mxu0 0.0
        %3080 = vmatpush.msra.mxu0 0.0
        %3081 = vmatpush.msra.mxu0 0.0
        %3082 = vmatpush.msra.mxu0 0.0
        %3083 = vmatpush.msra.mxu0 0.0
        %3084 = vmatpush.msra.mxu0 0.0
        %3085 = vmatpush.msra.mxu0 0.0
        %3086 = vmatpush.msra.mxu0 0.0
        %3087 = vmatpush.msra.mxu0 0.0
        %3088 = vmatpush.msra.mxu0 0.0
        %v3089 = vand.u32 %v3044, 4294901760
        %v3090 = vsub.f32 %v3044, %v3089
        %v3091 = vand.u32 %v3090, 4294901760
        %v3092 = vsub.f32 %v3090, %v3091
        %v3093 = vand.u32 %v3092, 4294901760
        %3094 = vmatpush.msra.mxu0 %v3093
        %v3095 = vand.u32 %v3042, 4294901760
        %3096 = vmatmul.f32.gmra.mxu0 %v3095
        %v3097 = vpop.f32.mrf.mxu0
        %v3098 = vadd.f32 %v3072, %v3097
        %3099 = vdwg.mxu0
        %3100 = vmatpush.msra.mxu0 0.0
        %3101 = vmatpush.msra.mxu0 0.0
        %3102 = vmatpush.msra.mxu0 0.0
        %3103 = vmatpush.msra.mxu0 0.0
        %3104 = vmatpush.msra.mxu0 0.0
        %3105 = vmatpush.msra.mxu0 0.0
        %3106 = vmatpush.msra.mxu0 0.0
        %3107 = vmatpush.msra.mxu0 0.0
        %3108 = vmatpush.msra.mxu0 0.0
        %3109 = vmatpush.msra.mxu0 0.0
        %3110 = vmatpush.msra.mxu0 0.0
        %3111 = vmatpush.msra.mxu0 0.0
        %3112 = vmatpush.msra.mxu0 0.0
        %3113 = vmatpush.msra.mxu0 0.0
        %3114 = vmatpush.msra.mxu0 0.0
        %v3115 = vand.u32 %v3044, 4294901760
        %v3116 = vsub.f32 %v3044, %v3115
        %3117 = vmatpush.msra.mxu0 %v3116
        %v3118 = vand.u32 %v3042, 4294901760
        %v3119 = vsub.f32 %v3042, %v3118
        %3120 = vmatmul.f32.gmra.mxu0 %v3119
        %v3121 = vpop.f32.mrf.mxu0
        %v3122 = vadd.f32 %v3098, %v3121
        %3123 = vdwg.mxu0
        %3124 = vmatpush.msra.mxu0 0.0
        %3125 = vmatpush.msra.mxu0 0.0
        %3126 = vmatpush.msra.mxu0 0.0
        %3127 = vmatpush.msra.mxu0 0.0
        %3128 = vmatpush.msra.mxu0 0.0
        %3129 = vmatpush.msra.mxu0 0.0
        %3130 = vmatpush.msra.mxu0 0.0
        %3131 = vmatpush.msra.mxu0 0.0
        %3132 = vmatpush.msra.mxu0 0.0
        %3133 = vmatpush.msra.mxu0 0.0
        %3134 = vmatpush.msra.mxu0 0.0
        %3135 = vmatpush.msra.mxu0 0.0
        %3136 = vmatpush.msra.mxu0 0.0
        %3137 = vmatpush.msra.mxu0 0.0
        %3138 = vmatpush.msra.mxu0 0.0
        %v3139 = vand.u32 %v3044, 4294901760
        %3140 = vmatpush.msra.mxu0 %v3139
        %v3141 = vand.u32 %v3042, 4294901760
        %v3142 = vsub.f32 %v3042, %v3141
        %v3143 = vand.u32 %v3142, 4294901760
        %3144 = vmatmul.f32.gmra.mxu0 %v3143
        %v3145 = vpop.f32.mrf.mxu0
        %v3146 = vadd.f32 %v3122, %v3145
        %3147 = vdwg.mxu0
        %3148 = vmatpush.msra.mxu0 0.0
        %3149 = vmatpush.msra.mxu0 0.0
        %3150 = vmatpush.msra.mxu0 0.0
        %3151 = vmatpush.msra.mxu0 0.0
        %3152 = vmatpush.msra.mxu0 0.0
        %3153 = vmatpush.msra.mxu0 0.0
        %3154 = vmatpush.msra.mxu0 0.0
        %3155 = vmatpush.msra.mxu0 0.0
        %3156 = vmatpush.msra.mxu0 0.0
        %3157 = vmatpush.msra.mxu0 0.0
        %3158 = vmatpush.msra.mxu0 0.0
        %3159 = vmatpush.msra.mxu0 0.0
        %3160 = vmatpush.msra.mxu0 0.0
        %3161 = vmatpush.msra.mxu0 0.0
        %3162 = vmatpush.msra.mxu0 0.0
        %v3163 = vand.u32 %v3044, 4294901760
        %v3164 = vsub.f32 %v3044, %v3163
        %v3165 = vand.u32 %v3164, 4294901760
        %3166 = vmatpush.msra.mxu0 %v3165
        %v3167 = vand.u32 %v3042, 4294901760
        %3168 = vmatmul.f32.gmra.mxu0 %v3167
        %v3169 = vpop.f32.mrf.mxu0
        %v3170 = vadd.f32 %v3146, %v3169
        %3171 = vdwg.mxu0
        %3172 = vmatpush.msra.mxu0 0.0
        %3173 = vmatpush.msra.mxu0 0.0
        %3174 = vmatpush.msra.mxu0 0.0
        %3175 = vmatpush.msra.mxu0 0.0
        %3176 = vmatpush.msra.mxu0 0.0
        %3177 = vmatpush.msra.mxu0 0.0
        %3178 = vmatpush.msra.mxu0 0.0
        %3179 = vmatpush.msra.mxu0 0.0
        %3180 = vmatpush.msra.mxu0 0.0
        %3181 = vmatpush.msra.mxu0 0.0
        %3182 = vmatpush.msra.mxu0 0.0
        %3183 = vmatpush.msra.mxu0 0.0
        %3184 = vmatpush.msra.mxu0 0.0
        %3185 = vmatpush.msra.mxu0 0.0
        %3186 = vmatpush.msra.mxu0 0.0
        %v3187 = vand.u32 %v3044, 4294901760
        %3188 = vmatpush.msra.mxu0 %v3187
        %v3189 = vand.u32 %v3042, 4294901760
        %3190 = vmatmul.f32.gmra.mxu0 %v3189
        %v3191 = vpop.f32.mrf.mxu0
        %v3192 = vadd.f32 %v3170, %v3191
        %3193 = vdwg.mxu0
        %3194 = vmatpush.msra.mxu0 0.0
        %3195 = vmatpush.msra.mxu0 0.0
        %3196 = vmatpush.msra.mxu0 0.0
        %3197 = vmatpush.msra.mxu0 0.0
        %3198 = vmatpush.msra.mxu0 0.0
        %3199 = vmatpush.msra.mxu0 0.0
        %3200 = vmatpush.msra.mxu0 0.0
        %3201 = vmatpush.msra.mxu0 0.0
        %3202 = vmatpush.msra.mxu0 0.0
        %3203 = vmatpush.msra.mxu0 0.0
        %3204 = vmatpush.msra.mxu0 0.0
        %3205 = vmatpush.msra.mxu0 0.0
        %3206 = vmatpush.msra.mxu0 0.0
        %3207 = vmatpush.msra.mxu0 0.0
        %3208 = vmatpush.msra.mxu0 0.0
        %v3209 = vand.u32 %v3046, 4294901760
        %3210 = vmatpush.msra.mxu0 %v3209
        %v3211 = vand.u32 %v3042, 4294901760
        %v3212 = vsub.f32 %v3042, %v3211
        %v3213 = vand.u32 %v3212, 4294901760
        %v3214 = vsub.f32 %v3212, %v3213
        %v3215 = vand.u32 %v3214, 4294901760
        %3216 = vmatmul.f32.gmra.mxu0 %v3215
        %v3217 = vpop.f32.mrf.mxu0
        %v3218 = vadd.f32 0.0, %v3217
        %3219 = vdwg.mxu0
        %3220 = vmatpush.msra.mxu0 0.0
        %3221 = vmatpush.msra.mxu0 0.0
        %3222 = vmatpush.msra.mxu0 0.0
        %3223 = vmatpush.msra.mxu0 0.0
        %3224 = vmatpush.msra.mxu0 0.0
        %3225 = vmatpush.msra.mxu0 0.0
        %3226 = vmatpush.msra.mxu0 0.0
        %3227 = vmatpush.msra.mxu0 0.0
        %3228 = vmatpush.msra.mxu0 0.0
        %3229 = vmatpush.msra.mxu0 0.0
        %3230 = vmatpush.msra.mxu0 0.0
        %3231 = vmatpush.msra.mxu0 0.0
        %3232 = vmatpush.msra.mxu0 0.0
        %3233 = vmatpush.msra.mxu0 0.0
        %3234 = vmatpush.msra.mxu0 0.0
        %v3235 = vand.u32 %v3046, 4294901760
        %v3236 = vsub.f32 %v3046, %v3235
        %v3237 = vand.u32 %v3236, 4294901760
        %v3238 = vsub.f32 %v3236, %v3237
        %v3239 = vand.u32 %v3238, 4294901760
        %3240 = vmatpush.msra.mxu0 %v3239
        %v3241 = vand.u32 %v3042, 4294901760
        %3242 = vmatmul.f32.gmra.mxu0 %v3241
        %v3243 = vpop.f32.mrf.mxu0
        %v3244 = vadd.f32 %v3218, %v3243
        %3245 = vdwg.mxu0
        %3246 = vmatpush.msra.mxu0 0.0
        %3247 = vmatpush.msra.mxu0 0.0
        %3248 = vmatpush.msra.mxu0 0.0
        %3249 = vmatpush.msra.mxu0 0.0
        %3250 = vmatpush.msra.mxu0 0.0
        %3251 = vmatpush.msra.mxu0 0.0
        %3252 = vmatpush.msra.mxu0 0.0
        %3253 = vmatpush.msra.mxu0 0.0
        %3254 = vmatpush.msra.mxu0 0.0
        %3255 = vmatpush.msra.mxu0 0.0
        %3256 = vmatpush.msra.mxu0 0.0
        %3257 = vmatpush.msra.mxu0 0.0
        %3258 = vmatpush.msra.mxu0 0.0
        %3259 = vmatpush.msra.mxu0 0.0
        %3260 = vmatpush.msra.mxu0 0.0
        %v3261 = vand.u32 %v3046, 4294901760
        %v3262 = vsub.f32 %v3046, %v3261
        %3263 = vmatpush.msra.mxu0 %v3262
        %v3264 = vand.u32 %v3042, 4294901760
        %v3265 = vsub.f32 %v3042, %v3264
        %3266 = vmatmul.f32.gmra.mxu0 %v3265
        %v3267 = vpop.f32.mrf.mxu0
        %v3268 = vadd.f32 %v3244, %v3267
        %3269 = vdwg.mxu0
        %3270 = vmatpush.msra.mxu0 0.0
        %3271 = vmatpush.msra.mxu0 0.0
        %3272 = vmatpush.msra.mxu0 0.0
        %3273 = vmatpush.msra.mxu0 0.0
        %3274 = vmatpush.msra.mxu0 0.0
        %3275 = vmatpush.msra.mxu0 0.0
        %3276 = vmatpush.msra.mxu0 0.0
        %3277 = vmatpush.msra.mxu0 0.0
        %3278 = vmatpush.msra.mxu0 0.0
        %3279 = vmatpush.msra.mxu0 0.0
        %3280 = vmatpush.msra.mxu0 0.0
        %3281 = vmatpush.msra.mxu0 0.0
        %3282 = vmatpush.msra.mxu0 0.0
        %3283 = vmatpush.msra.mxu0 0.0
        %3284 = vmatpush.msra.mxu0 0.0
        %v3285 = vand.u32 %v3046, 4294901760
        %3286 = vmatpush.msra.mxu0 %v3285
        %v3287 = vand.u32 %v3042, 4294901760
        %v3288 = vsub.f32 %v3042, %v3287
        %v3289 = vand.u32 %v3288, 4294901760
        %3290 = vmatmul.f32.gmra.mxu0 %v3289
        %v3291 = vpop.f32.mrf.mxu0
        %v3292 = vadd.f32 %v3268, %v3291
        %3293 = vdwg.mxu0
        %3294 = vmatpush.msra.mxu0 0.0
        %3295 = vmatpush.msra.mxu0 0.0
        %3296 = vmatpush.msra.mxu0 0.0
        %3297 = vmatpush.msra.mxu0 0.0
        %3298 = vmatpush.msra.mxu0 0.0
        %3299 = vmatpush.msra.mxu0 0.0
        %3300 = vmatpush.msra.mxu0 0.0
        %3301 = vmatpush.msra.mxu0 0.0
        %3302 = vmatpush.msra.mxu0 0.0
        %3303 = vmatpush.msra.mxu0 0.0
        %3304 = vmatpush.msra.mxu0 0.0
        %3305 = vmatpush.msra.mxu0 0.0
        %3306 = vmatpush.msra.mxu0 0.0
        %3307 = vmatpush.msra.mxu0 0.0
        %3308 = vmatpush.msra.mxu0 0.0
        %v3309 = vand.u32 %v3046, 4294901760
        %v3310 = vsub.f32 %v3046, %v3309
        %v3311 = vand.u32 %v3310, 4294901760
        %3312 = vmatpush.msra.mxu0 %v3311
        %v3313 = vand.u32 %v3042, 4294901760
        %3314 = vmatmul.f32.gmra.mxu0 %v3313
        %v3315 = vpop.f32.mrf.mxu0
        %v3316 = vadd.f32 %v3292, %v3315
        %3317 = vdwg.mxu0
        %3318 = vmatpush.msra.mxu0 0.0
        %3319 = vmatpush.msra.mxu0 0.0
        %3320 = vmatpush.msra.mxu0 0.0
        %3321 = vmatpush.msra.mxu0 0.0
        %3322 = vmatpush.msra.mxu0 0.0
        %3323 = vmatpush.msra.mxu0 0.0
        %3324 = vmatpush.msra.mxu0 0.0
        %3325 = vmatpush.msra.mxu0 0.0
        %3326 = vmatpush.msra.mxu0 0.0
        %3327 = vmatpush.msra.mxu0 0.0
        %3328 = vmatpush.msra.mxu0 0.0
        %3329 = vmatpush.msra.mxu0 0.0
        %3330 = vmatpush.msra.mxu0 0.0
        %3331 = vmatpush.msra.mxu0 0.0
        %3332 = vmatpush.msra.mxu0 0.0
        %v3333 = vand.u32 %v3046, 4294901760
        %3334 = vmatpush.msra.mxu0 %v3333
        %v3335 = vand.u32 %v3042, 4294901760
        %3336 = vmatmul.f32.gmra.mxu0 %v3335
        %v3337 = vpop.f32.mrf.mxu0
        %v3338 = vadd.f32 %v3316, %v3337
        %3339 = vdwg.mxu0
        %v3340 = vadd.f32 %v3002, %v3192
        %v3341 = vadd.f32 %v3003, %v3338
        %v3342 = vld [vmem:[%s314] sm:$0xff]
        %3344 = vset.pattern.permute.xlu0 0
        %3345 = vperm.xlu0 %3344, %v3342
        %v3346 = vpop.permute.xlu0 %3345
        %v3348 = vadd.f32 %v3340, %v3346
        %v3349 = vadd.f32 %v3341, %v3346
        %3350 = vst [vmem:[%s323] sm:$0xff] %v3348
        %3351 = vst [vmem:[%s323 + $0x8] sm:$0xff] %v3349
        %p3352 = scmp.lt.s32.totalorder %s19, 1
        %s3353 = scalar_select %p3352, %s19, 1
        %p3354 = scmp.lt.s32.totalorder %s20, 1
        %s3355 = scalar_select %p3354, %s20, 1
        %s3356 = smul.addr %s3355, 2
        %s3357 = smul.addr %s3353, 4
        %s3358 = sadd.s32 %s3356, %s3357
        %s3359 = smul.addr %s3358, 8
        %s3360 = scalar_lea.vmem %s4, %s3359
        // Predicated region
        $region75: #{upsample_forward.1} parent=69 // pred_check
          %p3361 = pneg %p146
        $region76: #{upsample_forward.1} parent=69 // pred_check_branch
          %3363 = sbr.rel (%p3361) target = $region78
        $region77: #{upsample_forward.1} parent=69 // pred_region
          _
        $region78: #{upsample_forward.1} parent=69 // pred_fallthru
          _
      $region70: #{upsample_forward.1} parent=5 // pred_fallthru
        _
      %p3364 = scmp.le.s32.totalorder 2, %s10
      // Predicated region
      $region79: #{upsample_forward.1} parent=5 // pred_check
        %p3365 = pneg %p3364
      $region80: #{upsample_forward.1} parent=5 // pred_check_branch
        %3367 = sbr.rel (%p3365) target = $region82
      $region81: #{upsample_forward.1} parent=5 // pred_region
        %s3368 = ssub.s32 %s10, 2
        // Predicated region
        $region83: #{upsample_forward.1} parent=81 // pred_check
          %p3369 = pneg %p152
        $region84: #{upsample_forward.1} parent=81 // pred_check_branch
          %3371 = sbr.rel (%p3369) target = $region86
        $region85: #{upsample_forward.1} parent=81 // pred_region
          %p3372 = scmp.lt.s32.totalorder %s21, 1
          %s3373 = scalar_select %p3372, %s21, 1
          %p3374 = scmp.lt.s32.totalorder %s22, 1
          %s3375 = scalar_select %p3374, %s22, 1
          %s3376 = smul.addr %s3375, 2
          %s3377 = smul.addr %s3373, 4
          %s3378 = sadd.s32 %s3376, %s3377
          %s3379 = smul.addr %s3378, 8
          %s3380 = scalar_lea.vmem %s4, %s3379
        $region86: #{upsample_forward.1} parent=81 // pred_fallthru
          _
      $region82: #{upsample_forward.1} parent=5 // pred_fallthru
        _
    $region6: #{upsample_forward.1} parent=1 // loop_footer
      %s14 = sadd.s32 1, %s10
    $region7: #{upsample_forward.1} parent=1 // loop_footer_branch
      %9 = sbr.rel target = $region3
    $region8: #{upsample_forward.1} parent=1 // loop_exit
      _

</llo_original>
